<compile_context>
chip_gen: v6e
topology: v6e:2x2x1
jax: 0.10.0
libtpu: 0.0.40
codegen_flags: <defaults>
</compile_context>

<pallas_src>
import math

import jax
import jax.numpy as jnp
import numpy as np
from jax.experimental import pallas as pl
from jax.experimental.pallas import tpu as pltpu


def _round_up(v, m):
    return (v + m - 1) // m * m


# Row indices inside the packed "vecs" parameter slab (all f32, width Vp).
_SA_OUT_B, _CA_OUT_B, _B1, _B2 = 0, 1, 2, 3
_N1W, _N1B, _N2W, _N2B, _N3W, _N3B = 4, 5, 6, 7, 8, 9
_DMASK = 10
_NUM_VEC_ROWS = 11


def _dims(D, H, F):
    HD = D // H
    HDe = _round_up(HD, 8)            # per-head pad to 8 lanes only (NOT 128)
    QW = _round_up(H * HDe, 128)      # lane width of each packed q/k/v section
    HO = H * HDe                      # packed context width (heads concatenated)
    Dp = _round_up(D, 128)
    Fp = _round_up(F, 128)
    Vp = max(Dp, Fp)
    return HD, HDe, QW, HO, Dp, Fp, Vp


def pack_params(params, *, D, H, F):
    """One-time host-side re-packing of PyTorch-layout weights.

    * QKV fused into one (Dp, 3*QW) slab per attention block (bf16) with lane
      layout [Q | K | V]; inside each section the H heads are packed HDe lanes
      apart (only HD of them real, rest zero).
    * Output projection stored as (H*HDe, Dp) bf16 so one matmul performs both
      the per-head projection and the head sum.
    * FFN weights pre-transposed, lane padded, bf16.
    * 18 small vectors coalesced into one f32 (11, Vp) slab.
    """
    HD, HDe, QW, HO, Dp, Fp, Vp = _dims(D, H, F)

    def attn(in_w, in_b, out_w):
        in_w = np.asarray(in_w, np.float32)               # (3D, D): [Wq; Wk; Wv]
        in_b = np.asarray(in_b, np.float32).reshape(-1)   # (3D,)
        out_w = np.asarray(out_w, np.float32)              # (D, D)
        wqkv = np.zeros((Dp, 3 * QW), np.float32)
        bqkv = np.zeros((1, 3 * QW), np.float32)
        wo = np.zeros((HO, Dp), np.float32)
        for j in range(3):                                  # q, k, v sections
            for h in range(H):
                rows = slice(j * D + h * HD, j * D + (h + 1) * HD)
                c0 = j * QW + h * HDe
                wqkv[:D, c0:c0 + HD] = in_w[rows, :].T
                bqkv[0, c0:c0 + HD] = in_b[rows]
        for h in range(H):
            wo[h * HDe:h * HDe + HD, :D] = out_w[:, h * HD:(h + 1) * HD].T
        return (jnp.asarray(wqkv).astype(jnp.bfloat16),
                jnp.asarray(bqkv),                          # bias stays f32
                jnp.asarray(wo).astype(jnp.bfloat16))

    sa_wqkv, sa_bqkv, sa_wo = attn(params["sa_in_w"], params["sa_in_b"], params["sa_out_w"])
    ca_wqkv, ca_bqkv, ca_wo = attn(params["ca_in_w"], params["ca_in_b"], params["ca_out_w"])

    w1 = np.zeros((Dp, Fp), np.float32)
    w1[:D, :F] = np.asarray(params["w1"], np.float32).T     # (F, D) -> (D, F)
    w2 = np.zeros((Fp, Dp), np.float32)
    w2[:F, :D] = np.asarray(params["w2"], np.float32).T     # (D, F) -> (F, D)

    vecs = np.zeros((_NUM_VEC_ROWS, Vp), np.float32)
    vecs[_SA_OUT_B, :D] = np.asarray(params["sa_out_b"]).reshape(-1)
    vecs[_CA_OUT_B, :D] = np.asarray(params["ca_out_b"]).reshape(-1)
    vecs[_B1, :F] = np.asarray(params["b1"]).reshape(-1)
    vecs[_B2, :D] = np.asarray(params["b2"]).reshape(-1)
    vecs[_N1W, :D] = np.asarray(params["n1w"]).reshape(-1)
    vecs[_N1B, :D] = np.asarray(params["n1b"]).reshape(-1)
    vecs[_N2W, :D] = np.asarray(params["n2w"]).reshape(-1)
    vecs[_N2B, :D] = np.asarray(params["n2b"]).reshape(-1)
    vecs[_N3W, :D] = np.asarray(params["n3w"]).reshape(-1)
    vecs[_N3B, :D] = np.asarray(params["n3b"]).reshape(-1)
    vecs[_DMASK, :D] = 1.0                                    # real-feature mask for LN

    return dict(sa_wqkv=sa_wqkv, sa_bqkv=sa_bqkv, sa_wo=sa_wo,
                ca_wqkv=ca_wqkv, ca_bqkv=ca_bqkv, ca_wo=ca_wo,
                w1=jnp.asarray(w1).astype(jnp.bfloat16),
                w2=jnp.asarray(w2).astype(jnp.bfloat16),
                vecs=jnp.asarray(vecs))


def make_decoder_forward(B, T, S, D, H, F):
    assert D % H == 0
    assert T % 8 == 0 and S % 8 == 0, "per-batch row blocks must be sublane-aligned"
    HD, HDe, QW, HO, Dp, Fp, Vp = _dims(D, H, F)
    scale = 1.0 / math.sqrt(HD)

    def kernel(x_ref, z_ref,
               sa_wqkv_ref, sa_bqkv_ref, sa_wo_ref,
               ca_wqkv_ref, ca_bqkv_ref, ca_wo_ref,
               w1_ref, w2_ref, vec_ref, out_ref):
        x = x_ref[...]                        # (T, Dp) f32, padded lanes are 0
        z = z_ref[...]                        # (S, Dp) f32
        vecs = vec_ref[...]                   # (11, Vp) f32
        d_mask = vecs[_DMASK:_DMASK + 1, :Dp]

        def layer_norm(v, wrow, brow):
            # masked LayerNorm over the D real features of the padded lane axis (f32)
            mean = jnp.sum(v * d_mask, axis=-1, keepdims=True) * (1.0 / D)
            diff = (v - mean) * d_mask
            var = jnp.sum(diff * diff, axis=-1, keepdims=True) * (1.0 / D)
            return diff * jax.lax.rsqrt(var + 1e-5) * wrow + brow

        def softmax(s):
            m = jnp.max(s, axis=-1, keepdims=True)
            e = jnp.exp(s - m)
            return e * pl.reciprocal(jnp.sum(e, axis=-1, keepdims=True), approx=True)

        # causal additive bias built in-kernel from iota (no dense HBM mask input)
        rows = jax.lax.broadcasted_iota(jnp.int32, (T, T), 0)
        cols = jax.lax.broadcasted_iota(jnp.int32, (T, T), 1)
        causal_bias = jnp.where(cols > rows, -1e30, 0.0).astype(jnp.float32)

        def attend(q_all, k_all, v_all, wo, out_b, bias):
            # q_all: (Tq, QW) f32, k_all/v_all: (Tk, QW) f32; heads packed HDe apart.
            # Scores/context are the only genuinely per-head matmuls; the QKV and
            # output projections are single fused dots.
            ctx_parts = []
            for h in range(H):
                sl = slice(h * HDe, (h + 1) * HDe)
                qh = q_all[:, sl].astype(jnp.bfloat16)
                kh = k_all[:, sl].astype(jnp.bfloat16)
                vh = v_all[:, sl].astype(jnp.bfloat16)
                s = jax.lax.dot_general(qh, kh, (((1,), (1,)), ((), ())),
                                        preferred_element_type=jnp.float32) * scale
                if bias is not None:
                    s = s + bias
                p = softmax(s).astype(jnp.bfloat16)
                ctx_parts.append(jnp.dot(p, vh, preferred_element_type=jnp.float32))
            ctx = jnp.concatenate(ctx_parts, axis=-1).astype(jnp.bfloat16)   # (Tq, HO)
            # single matmul; head reduction happens inside the MXU contraction
            return jnp.dot(ctx, wo, preferred_element_type=jnp.float32) + out_b

        # --- self attention: one fused QKV projection matmul (causal) ---
        qkv = jnp.dot(x.astype(jnp.bfloat16), sa_wqkv_ref[...],
                      preferred_element_type=jnp.float32) + sa_bqkv_ref[...]
        sa = attend(qkv[:, 0:QW], qkv[:, QW:2 * QW], qkv[:, 2 * QW:3 * QW],
                    sa_wo_ref[...], vecs[_SA_OUT_B:_SA_OUT_B + 1, :Dp], causal_bias)
        x1 = layer_norm(x + sa, vecs[_N1W:_N1W + 1, :Dp], vecs[_N1B:_N1B + 1, :Dp])

        # --- cross attention: fused Q matmul + fused KV matmul (no mask needed) ---
        q_all = jnp.dot(x1.astype(jnp.bfloat16), ca_wqkv_ref[:, 0:QW],
                        preferred_element_type=jnp.float32) + ca_bqkv_ref[:, 0:QW]
        kv_all = jnp.dot(z.astype(jnp.bfloat16), ca_wqkv_ref[:, QW:3 * QW],
                         preferred_element_type=jnp.float32) + ca_bqkv_ref[:, QW:3 * QW]
        ca = attend(q_all, kv_all[:, 0:QW], kv_all[:, QW:2 * QW],
                    ca_wo_ref[...], vecs[_CA_OUT_B:_CA_OUT_B + 1, :Dp], None)
        x2 = layer_norm(x1 + ca, vecs[_N2W:_N2W + 1, :Dp], vecs[_N2B:_N2B + 1, :Dp])

        # --- feed forward (ReLU): bf16 matmuls, f32 elementwise ---
        h1 = jnp.dot(x2.astype(jnp.bfloat16), w1_ref[...],
                     preferred_element_type=jnp.float32) + vecs[_B1:_B1 + 1, :Fp]
        h1 = jnp.maximum(h1, 0.0)
        ff = jnp.dot(h1.astype(jnp.bfloat16), w2_ref[...],
                     preferred_element_type=jnp.float32) + vecs[_B2:_B2 + 1, :Dp]
        out_ref[...] = layer_norm(x2 + ff, vecs[_N3W:_N3W + 1, :Dp],
                                  vecs[_N3B:_N3B + 1, :Dp])

    def inv2(shape):
        return pl.BlockSpec(shape, lambda b: (0, 0))        # grid-invariant weight block

    in_specs = [
        pl.BlockSpec((T, Dp), lambda b: (b, 0)),             # x: per-batch row block
        pl.BlockSpec((S, Dp), lambda b: (b, 0)),             # z: per-batch row block
        inv2((Dp, 3 * QW)), inv2((1, 3 * QW)), inv2((HO, Dp)),   # self-attn weights
        inv2((Dp, 3 * QW)), inv2((1, 3 * QW)), inv2((HO, Dp)),   # cross-attn weights
        inv2((Dp, Fp)), inv2((Fp, Dp)),                       # FFN weights
        inv2((_NUM_VEC_ROWS, Vp)),                            # packed vectors
    ]

    # vmem limit derived from the actual block sizes (+ headroom), not hard-coded
    block_bytes = (
        (T + S + T) * Dp * 4                                  # x, z, out blocks (f32)
        + 2 * (Dp * 3 * QW * 2 + 3 * QW * 4 + HO * Dp * 2)    # both attn slabs (bf16/f32)
        + (Dp * Fp + Fp * Dp) * 2                             # FFN weights (bf16)
        + _NUM_VEC_ROWS * Vp * 4)
    vmem_limit = int(2 * block_bytes + (8 << 20))             # dbl-buffered blocks + headroom

    call = pl.pallas_call(
        kernel,
        out_shape=jax.ShapeDtypeStruct((B * T, Dp), jnp.float32),
        grid=(B,),
        in_specs=in_specs,
        out_specs=pl.BlockSpec((T, Dp), lambda b: (b, 0)),    # lane-dense (128-mult) store
        compiler_params=pltpu.CompilerParams(
            dimension_semantics=("parallel",),                # batch axis -> 2 TCs on v7x
            vmem_limit_bytes=vmem_limit,
        ),
    )

    def forward(x, z, packed):
        # pad features to the lane-dense layout; batch stays a grid axis
        x2d = jnp.pad(x.reshape(B * T, D), ((0, 0), (0, Dp - D)))
        z2d = jnp.pad(z.reshape(B * S, D), ((0, 0), (0, Dp - D)))
        out = call(x2d, z2d,
                   packed["sa_wqkv"], packed["sa_bqkv"], packed["sa_wo"],
                   packed["ca_wqkv"], packed["ca_bqkv"], packed["ca_wo"],
                   packed["w1"], packed["w2"], packed["vecs"])
        return out[:, :D].reshape(B, T, D)

    return forward


# ---------------- pure-JAX reference (same math, f32, no Pallas) ----------------
def reference_forward(x, z, p, H):
    D = x.shape[-1]
    HD = D // H
    scale = 1.0 / math.sqrt(HD)

    def ln(v, w, b):
        mean = jnp.mean(v, axis=-1, keepdims=True)
        var = jnp.mean((v - mean) ** 2, axis=-1, keepdims=True)
        return (v - mean) * jax.lax.rsqrt(var + 1e-5) * w + b

    def mha(q_in, kv_in, in_w, in_b, out_w, out_b, causal):
        q = q_in @ in_w[0:D].T + in_b[:, 0:D]
        k = kv_in @ in_w[D:2 * D].T + in_b[:, D:2 * D]
        v = kv_in @ in_w[2 * D:3 * D].T + in_b[:, 2 * D:3 * D]
        B_, Tq, _ = q.shape
        Tk = k.shape[1]
        q = q.reshape(B_, Tq, H, HD).transpose(0, 2, 1, 3)
        k = k.reshape(B_, Tk, H, HD).transpose(0, 2, 1, 3)
        v = v.reshape(B_, Tk, H, HD).transpose(0, 2, 1, 3)
        s = jnp.einsum("bhqd,bhkd->bhqk", q, k) * scale
        if causal:
            row = jnp.arange(Tq)[:, None]
            col = jnp.arange(Tk)[None, :]
            s = jnp.where(col > row, -jnp.inf, s)
        a = jax.nn.softmax(s, axis=-1)
        o = jnp.einsum("bhqk,bhkd->bhqd", a, v).transpose(0, 2, 1, 3).reshape(B_, Tq, D)
        return o @ out_w.T + out_b

    x1 = ln(x + mha(x, x, p["sa_in_w"], p["sa_in_b"], p["sa_out_w"], p["sa_out_b"], True),
            p["n1w"], p["n1b"])
    x2 = ln(x1 + mha(x1, z, p["ca_in_w"], p["ca_in_b"], p["ca_out_w"], p["ca_out_b"], False),
            p["n2w"], p["n2b"])
    h = jnp.maximum(x2 @ p["w1"].T + p["b1"], 0.0)
    ff = h @ p["w2"].T + p["b2"]
    return ln(x2 + ff, p["n3w"], p["n3b"])


if __name__ == "__main__":
    # Small shapes consistent with the module: batch_first (B, T, D) target,
    # (B, S, D) memory, D divisible by nheads=5.
    B, T, S, D, H, F = 2, 8, 8, 10, 5, 10

    key = jax.random.PRNGKey(0)
    ks = jax.random.split(key, 16)

    def nrm(k, shape, s=0.1):
        return jax.random.normal(k, shape, dtype=jnp.float32) * s

    params = dict(
        sa_in_w=nrm(ks[0], (3 * D, D)), sa_in_b=nrm(ks[1], (1, 3 * D)),
        sa_out_w=nrm(ks[2], (D, D)),    sa_out_b=nrm(ks[3], (1, D)),
        ca_in_w=nrm(ks[4], (3 * D, D)), ca_in_b=nrm(ks[5], (1, 3 * D)),
        ca_out_w=nrm(ks[6], (D, D)),    ca_out_b=nrm(ks[7], (1, D)),
        w1=nrm(ks[8], (F, D)),          b1=nrm(ks[9], (1, F)),
        w2=nrm(ks[10], (D, F)),         b2=nrm(ks[11], (1, D)),
        n1w=jnp.ones((1, D), jnp.float32), n1b=jnp.zeros((1, D), jnp.float32),
        n2w=jnp.ones((1, D), jnp.float32), n2b=jnp.zeros((1, D), jnp.float32),
        n3w=jnp.ones((1, D), jnp.float32), n3b=jnp.zeros((1, D), jnp.float32),
    )

    x = jax.random.normal(ks[12], (B, T, D), dtype=jnp.float32)
    z = jax.random.normal(ks[13], (B, S, D), dtype=jnp.float32)

    packed = pack_params(params, D=D, H=H, F=F)          # one-time host packing (bf16)
    decoder = make_decoder_forward(B, T, S, D, H, F)

    out = jax.block_until_ready(decoder(x, z, packed))
    ref = jax.block_until_ready(reference_forward(x, z, params, H))

    assert out.shape == (B, T, D)
    # Tolerance covers bf16 matmul operands (f32 accumulation) and the
    # approximate EUP reciprocal in the softmax denominator.
    np.testing.assert_allclose(np.asarray(out), np.asarray(ref), rtol=2e-2, atol=2e-2)

    print("KERNEL_OK")
</pallas_src>

<mosaic_0001>
module attributes {stable_mosaic.version = 11 : i64} {
  func.func @kernel(%arg0: i32, %arg1: memref<8x128xf32, #tpu.memory_space<vmem>>, %arg2: memref<8x128xf32, #tpu.memory_space<vmem>>, %arg3: memref<128x384xbf16, #tpu.memory_space<vmem>>, %arg4: memref<1x384xf32, #tpu.memory_space<vmem>>, %arg5: memref<40x128xbf16, #tpu.memory_space<vmem>>, %arg6: memref<128x384xbf16, #tpu.memory_space<vmem>>, %arg7: memref<1x384xf32, #tpu.memory_space<vmem>>, %arg8: memref<40x128xbf16, #tpu.memory_space<vmem>>, %arg9: memref<128x128xbf16, #tpu.memory_space<vmem>>, %arg10: memref<128x128xbf16, #tpu.memory_space<vmem>>, %arg11: memref<11x128xf32, #tpu.memory_space<vmem>>, %arg12: memref<8x128xf32, #tpu.memory_space<vmem>>) attributes {dimension_semantics = [#tpu.dimension_semantics<parallel>], iteration_bounds = array<i64: 2>, scalar_prefetch = 0 : i64, scratch_operands = 0 : i64, tpu.core_type = #tpu.core_type<tc>, window_params = [{transform_indices = @transform_0, window_bounds = array<i64: 8, 128>}, {transform_indices = @transform_1, window_bounds = array<i64: 8, 128>}, {pipeline_mode = #tpu.pipeline_mode<synchronous>, transform_indices = @transform_2, window_bounds = array<i64: 128, 384>}, {pipeline_mode = #tpu.pipeline_mode<synchronous>, transform_indices = @transform_3, window_bounds = array<i64: 1, 384>}, {pipeline_mode = #tpu.pipeline_mode<synchronous>, transform_indices = @transform_4, window_bounds = array<i64: 40, 128>}, {pipeline_mode = #tpu.pipeline_mode<synchronous>, transform_indices = @transform_5, window_bounds = array<i64: 128, 384>}, {pipeline_mode = #tpu.pipeline_mode<synchronous>, transform_indices = @transform_6, window_bounds = array<i64: 1, 384>}, {pipeline_mode = #tpu.pipeline_mode<synchronous>, transform_indices = @transform_7, window_bounds = array<i64: 40, 128>}, {pipeline_mode = #tpu.pipeline_mode<synchronous>, transform_indices = @transform_8, window_bounds = array<i64: 128, 128>}, {pipeline_mode = #tpu.pipeline_mode<synchronous>, transform_indices = @transform_9, window_bounds = array<i64: 128, 128>}, {pipeline_mode = #tpu.pipeline_mode<synchronous>, transform_indices = @transform_10, window_bounds = array<i64: 11, 128>}, {transform_indices = @transform_11, window_bounds = array<i64: 8, 128>}]} {
    %c0 = arith.constant 0 : index
    %c0_0 = arith.constant 0 : index
    %0 = vector.load %arg1[%c0, %c0_0] : memref<8x128xf32, #tpu.memory_space<vmem>>, vector<8x128xf32>
    %c0_1 = arith.constant 0 : index
    %c0_2 = arith.constant 0 : index
    %1 = vector.load %arg2[%c0_1, %c0_2] : memref<8x128xf32, #tpu.memory_space<vmem>>, vector<8x128xf32>
    %c0_3 = arith.constant 0 : index
    %c0_4 = arith.constant 0 : index
    %2 = vector.load %arg11[%c0_3, %c0_4] : memref<11x128xf32, #tpu.memory_space<vmem>>, vector<11x128xf32>
    %3 = vector.extract_strided_slice %2 {offsets = [10, 0], sizes = [1, 128], strides = [1, 1]} : vector<11x128xf32> to vector<1x128xf32>
    %4 = tpu.iota {dimensions = array<i32: 0>} : vector<8x8xi32>
    %5 = tpu.iota {dimensions = array<i32: 1>} : vector<8x8xi32>
    %6 = arith.cmpi sgt, %5, %4 : vector<8x8xi32>
    %cst = arith.constant -1.000000e+30 : f32
    %cst_5 = arith.constant 0.000000e+00 : f32
    %7 = vector.broadcast %cst : f32 to vector<8x8xf32>
    %8 = vector.broadcast %cst_5 : f32 to vector<8x8xf32>
    %9 = arith.select %6, %7, %8 : vector<8x8xi1>, vector<8x8xf32>
    %10 = arith.truncf %0 : vector<8x128xf32> to vector<8x128xbf16>
    %c0_6 = arith.constant 0 : index
    %c0_7 = arith.constant 0 : index
    %11 = vector.load %arg3[%c0_6, %c0_7] : memref<128x384xbf16, #tpu.memory_space<vmem>>, vector<128x384xbf16>
    %cst_8 = arith.constant dense<0.000000e+00> : vector<8x384xf32>
    %12 = tpu.matmul %10, %11, %cst_8 {dimension_numbers = #tpu.dot_dimension_numbers<[1], [0], [0], [1], [0, 0, 1, 1], [], []>} : vector<8x128xbf16>, vector<128x384xbf16>, vector<8x384xf32> -> vector<8x384xf32>
    %c0_9 = arith.constant 0 : index
    %c0_10 = arith.constant 0 : index
    %13 = vector.load %arg4[%c0_9, %c0_10] : memref<1x384xf32, #tpu.memory_space<vmem>>, vector<1x384xf32>
    %14 = vector.broadcast %13 : vector<1x384xf32> to vector<8x384xf32>
    %15 = arith.addf %12, %14 : vector<8x384xf32>
    %16 = vector.extract_strided_slice %15 {offsets = [0, 0], sizes = [8, 128], strides = [1, 1]} : vector<8x384xf32> to vector<8x128xf32>
    %17 = vector.extract_strided_slice %15 {offsets = [0, 128], sizes = [8, 128], strides = [1, 1]} : vector<8x384xf32> to vector<8x128xf32>
    %18 = vector.extract_strided_slice %15 {offsets = [0, 256], sizes = [8, 128], strides = [1, 1]} : vector<8x384xf32> to vector<8x128xf32>
    %c0_11 = arith.constant 0 : index
    %c0_12 = arith.constant 0 : index
    %19 = vector.load %arg5[%c0_11, %c0_12] : memref<40x128xbf16, #tpu.memory_space<vmem>>, vector<40x128xbf16>
    %20 = vector.extract_strided_slice %2 {offsets = [0, 0], sizes = [1, 128], strides = [1, 1]} : vector<11x128xf32> to vector<1x128xf32>
    %21 = vector.extract_strided_slice %16 {offsets = [0, 0], sizes = [8, 8], strides = [1, 1]} : vector<8x128xf32> to vector<8x8xf32>
    %22 = arith.truncf %21 : vector<8x8xf32> to vector<8x8xbf16>
    %23 = vector.extract_strided_slice %17 {offsets = [0, 0], sizes = [8, 8], strides = [1, 1]} : vector<8x128xf32> to vector<8x8xf32>
    %24 = arith.truncf %23 : vector<8x8xf32> to vector<8x8xbf16>
    %25 = vector.extract_strided_slice %18 {offsets = [0, 0], sizes = [8, 8], strides = [1, 1]} : vector<8x128xf32> to vector<8x8xf32>
    %26 = arith.truncf %25 : vector<8x8xf32> to vector<8x8xbf16>
    %cst_13 = arith.constant dense<0.000000e+00> : vector<8x8xf32>
    %27 = tpu.matmul %22, %24, %cst_13 {dimension_numbers = #tpu.dot_dimension_numbers<[1], [1], [0], [0], [0, 0, 1, 0], [], []>} : vector<8x8xbf16>, vector<8x8xbf16>, vector<8x8xf32> -> vector<8x8xf32>
    %cst_14 = arith.constant 0.707106769 : f32
    %28 = vector.broadcast %cst_14 : f32 to vector<8x8xf32>
    %29 = arith.mulf %27, %28 : vector<8x8xf32>
    %30 = arith.addf %29, %9 : vector<8x8xf32>
    %cst_15 = arith.constant dense<0xFF800000> : vector<8xf32>
    %31 = vector.multi_reduction <maximumf>, %30, %cst_15 [1] : vector<8x8xf32> to vector<8xf32>
    %32 = vector.shape_cast %31 : vector<8xf32> to vector<8x1xf32>
    %33 = vector.broadcast %32 : vector<8x1xf32> to vector<8x8xf32>
    %34 = arith.subf %30, %33 : vector<8x8xf32>
    %35 = math.exp %34 : vector<8x8xf32>
    %cst_16 = arith.constant dense<0.000000e+00> : vector<8xf32>
    %36 = vector.multi_reduction <add>, %35, %cst_16 [1] : vector<8x8xf32> to vector<8xf32>
    %37 = vector.shape_cast %36 : vector<8xf32> to vector<8x1xf32>
    %38 = tpu.reciprocal %37 {approx = true} : vector<8x1xf32> -> vector<8x1xf32>
    %39 = vector.broadcast %38 : vector<8x1xf32> to vector<8x8xf32>
    %40 = arith.mulf %35, %39 : vector<8x8xf32>
    %41 = arith.truncf %40 : vector<8x8xf32> to vector<8x8xbf16>
    %cst_17 = arith.constant dense<0.000000e+00> : vector<8x8xf32>
    %42 = tpu.matmul %41, %26, %cst_17 {dimension_numbers = #tpu.dot_dimension_numbers<[1], [0], [0], [1], [0, 0, 1, 1], [], []>} : vector<8x8xbf16>, vector<8x8xbf16>, vector<8x8xf32> -> vector<8x8xf32>
    %43 = vector.extract_strided_slice %16 {offsets = [0, 8], sizes = [8, 8], strides = [1, 1]} : vector<8x128xf32> to vector<8x8xf32>
    %44 = arith.truncf %43 : vector<8x8xf32> to vector<8x8xbf16>
    %45 = vector.extract_strided_slice %17 {offsets = [0, 8], sizes = [8, 8], strides = [1, 1]} : vector<8x128xf32> to vector<8x8xf32>
    %46 = arith.truncf %45 : vector<8x8xf32> to vector<8x8xbf16>
    %47 = vector.extract_strided_slice %18 {offsets = [0, 8], sizes = [8, 8], strides = [1, 1]} : vector<8x128xf32> to vector<8x8xf32>
    %48 = arith.truncf %47 : vector<8x8xf32> to vector<8x8xbf16>
    %cst_18 = arith.constant dense<0.000000e+00> : vector<8x8xf32>
    %49 = tpu.matmul %44, %46, %cst_18 {dimension_numbers = #tpu.dot_dimension_numbers<[1], [1], [0], [0], [0, 0, 1, 0], [], []>} : vector<8x8xbf16>, vector<8x8xbf16>, vector<8x8xf32> -> vector<8x8xf32>
    %cst_19 = arith.constant 0.707106769 : f32
    %50 = vector.broadcast %cst_19 : f32 to vector<8x8xf32>
    %51 = arith.mulf %49, %50 : vector<8x8xf32>
    %52 = arith.addf %51, %9 : vector<8x8xf32>
    %cst_20 = arith.constant dense<0xFF800000> : vector<8xf32>
    %53 = vector.multi_reduction <maximumf>, %52, %cst_20 [1] : vector<8x8xf32> to vector<8xf32>
    %54 = vector.shape_cast %53 : vector<8xf32> to vector<8x1xf32>
    %55 = vector.broadcast %54 : vector<8x1xf32> to vector<8x8xf32>
    %56 = arith.subf %52, %55 : vector<8x8xf32>
    %57 = math.exp %56 : vector<8x8xf32>
    %cst_21 = arith.constant dense<0.000000e+00> : vector<8xf32>
    %58 = vector.multi_reduction <add>, %57, %cst_21 [1] : vector<8x8xf32> to vector<8xf32>
    %59 = vector.shape_cast %58 : vector<8xf32> to vector<8x1xf32>
    %60 = tpu.reciprocal %59 {approx = true} : vector<8x1xf32> -> vector<8x1xf32>
    %61 = vector.broadcast %60 : vector<8x1xf32> to vector<8x8xf32>
    %62 = arith.mulf %57, %61 : vector<8x8xf32>
    %63 = arith.truncf %62 : vector<8x8xf32> to vector<8x8xbf16>
    %cst_22 = arith.constant dense<0.000000e+00> : vector<8x8xf32>
    %64 = tpu.matmul %63, %48, %cst_22 {dimension_numbers = #tpu.dot_dimension_numbers<[1], [0], [0], [1], [0, 0, 1, 1], [], []>} : vector<8x8xbf16>, vector<8x8xbf16>, vector<8x8xf32> -> vector<8x8xf32>
    %65 = vector.extract_strided_slice %16 {offsets = [0, 16], sizes = [8, 8], strides = [1, 1]} : vector<8x128xf32> to vector<8x8xf32>
    %66 = arith.truncf %65 : vector<8x8xf32> to vector<8x8xbf16>
    %67 = vector.extract_strided_slice %17 {offsets = [0, 16], sizes = [8, 8], strides = [1, 1]} : vector<8x128xf32> to vector<8x8xf32>
    %68 = arith.truncf %67 : vector<8x8xf32> to vector<8x8xbf16>
    %69 = vector.extract_strided_slice %18 {offsets = [0, 16], sizes = [8, 8], strides = [1, 1]} : vector<8x128xf32> to vector<8x8xf32>
    %70 = arith.truncf %69 : vector<8x8xf32> to vector<8x8xbf16>
    %cst_23 = arith.constant dense<0.000000e+00> : vector<8x8xf32>
    %71 = tpu.matmul %66, %68, %cst_23 {dimension_numbers = #tpu.dot_dimension_numbers<[1], [1], [0], [0], [0, 0, 1, 0], [], []>} : vector<8x8xbf16>, vector<8x8xbf16>, vector<8x8xf32> -> vector<8x8xf32>
    %cst_24 = arith.constant 0.707106769 : f32
    %72 = vector.broadcast %cst_24 : f32 to vector<8x8xf32>
    %73 = arith.mulf %71, %72 : vector<8x8xf32>
    %74 = arith.addf %73, %9 : vector<8x8xf32>
    %cst_25 = arith.constant dense<0xFF800000> : vector<8xf32>
    %75 = vector.multi_reduction <maximumf>, %74, %cst_25 [1] : vector<8x8xf32> to vector<8xf32>
    %76 = vector.shape_cast %75 : vector<8xf32> to vector<8x1xf32>
    %77 = vector.broadcast %76 : vector<8x1xf32> to vector<8x8xf32>
    %78 = arith.subf %74, %77 : vector<8x8xf32>
    %79 = math.exp %78 : vector<8x8xf32>
    %cst_26 = arith.constant dense<0.000000e+00> : vector<8xf32>
    %80 = vector.multi_reduction <add>, %79, %cst_26 [1] : vector<8x8xf32> to vector<8xf32>
    %81 = vector.shape_cast %80 : vector<8xf32> to vector<8x1xf32>
    %82 = tpu.reciprocal %81 {approx = true} : vector<8x1xf32> -> vector<8x1xf32>
    %83 = vector.broadcast %82 : vector<8x1xf32> to vector<8x8xf32>
    %84 = arith.mulf %79, %83 : vector<8x8xf32>
    %85 = arith.truncf %84 : vector<8x8xf32> to vector<8x8xbf16>
    %cst_27 = arith.constant dense<0.000000e+00> : vector<8x8xf32>
    %86 = tpu.matmul %85, %70, %cst_27 {dimension_numbers = #tpu.dot_dimension_numbers<[1], [0], [0], [1], [0, 0, 1, 1], [], []>} : vector<8x8xbf16>, vector<8x8xbf16>, vector<8x8xf32> -> vector<8x8xf32>
    %87 = vector.extract_strided_slice %16 {offsets = [0, 24], sizes = [8, 8], strides = [1, 1]} : vector<8x128xf32> to vector<8x8xf32>
    %88 = arith.truncf %87 : vector<8x8xf32> to vector<8x8xbf16>
    %89 = vector.extract_strided_slice %17 {offsets = [0, 24], sizes = [8, 8], strides = [1, 1]} : vector<8x128xf32> to vector<8x8xf32>
    %90 = arith.truncf %89 : vector<8x8xf32> to vector<8x8xbf16>
    %91 = vector.extract_strided_slice %18 {offsets = [0, 24], sizes = [8, 8], strides = [1, 1]} : vector<8x128xf32> to vector<8x8xf32>
    %92 = arith.truncf %91 : vector<8x8xf32> to vector<8x8xbf16>
    %cst_28 = arith.constant dense<0.000000e+00> : vector<8x8xf32>
    %93 = tpu.matmul %88, %90, %cst_28 {dimension_numbers = #tpu.dot_dimension_numbers<[1], [1], [0], [0], [0, 0, 1, 0], [], []>} : vector<8x8xbf16>, vector<8x8xbf16>, vector<8x8xf32> -> vector<8x8xf32>
    %cst_29 = arith.constant 0.707106769 : f32
    %94 = vector.broadcast %cst_29 : f32 to vector<8x8xf32>
    %95 = arith.mulf %93, %94 : vector<8x8xf32>
    %96 = arith.addf %95, %9 : vector<8x8xf32>
    %cst_30 = arith.constant dense<0xFF800000> : vector<8xf32>
    %97 = vector.multi_reduction <maximumf>, %96, %cst_30 [1] : vector<8x8xf32> to vector<8xf32>
    %98 = vector.shape_cast %97 : vector<8xf32> to vector<8x1xf32>
    %99 = vector.broadcast %98 : vector<8x1xf32> to vector<8x8xf32>
    %100 = arith.subf %96, %99 : vector<8x8xf32>
    %101 = math.exp %100 : vector<8x8xf32>
    %cst_31 = arith.constant dense<0.000000e+00> : vector<8xf32>
    %102 = vector.multi_reduction <add>, %101, %cst_31 [1] : vector<8x8xf32> to vector<8xf32>
    %103 = vector.shape_cast %102 : vector<8xf32> to vector<8x1xf32>
    %104 = tpu.reciprocal %103 {approx = true} : vector<8x1xf32> -> vector<8x1xf32>
    %105 = vector.broadcast %104 : vector<8x1xf32> to vector<8x8xf32>
    %106 = arith.mulf %101, %105 : vector<8x8xf32>
    %107 = arith.truncf %106 : vector<8x8xf32> to vector<8x8xbf16>
    %cst_32 = arith.constant dense<0.000000e+00> : vector<8x8xf32>
    %108 = tpu.matmul %107, %92, %cst_32 {dimension_numbers = #tpu.dot_dimension_numbers<[1], [0], [0], [1], [0, 0, 1, 1], [], []>} : vector<8x8xbf16>, vector<8x8xbf16>, vector<8x8xf32> -> vector<8x8xf32>
    %109 = vector.extract_strided_slice %16 {offsets = [0, 32], sizes = [8, 8], strides = [1, 1]} : vector<8x128xf32> to vector<8x8xf32>
    %110 = arith.truncf %109 : vector<8x8xf32> to vector<8x8xbf16>
    %111 = vector.extract_strided_slice %17 {offsets = [0, 32], sizes = [8, 8], strides = [1, 1]} : vector<8x128xf32> to vector<8x8xf32>
    %112 = arith.truncf %111 : vector<8x8xf32> to vector<8x8xbf16>
    %113 = vector.extract_strided_slice %18 {offsets = [0, 32], sizes = [8, 8], strides = [1, 1]} : vector<8x128xf32> to vector<8x8xf32>
    %114 = arith.truncf %113 : vector<8x8xf32> to vector<8x8xbf16>
    %cst_33 = arith.constant dense<0.000000e+00> : vector<8x8xf32>
    %115 = tpu.matmul %110, %112, %cst_33 {dimension_numbers = #tpu.dot_dimension_numbers<[1], [1], [0], [0], [0, 0, 1, 0], [], []>} : vector<8x8xbf16>, vector<8x8xbf16>, vector<8x8xf32> -> vector<8x8xf32>
    %cst_34 = arith.constant 0.707106769 : f32
    %116 = vector.broadcast %cst_34 : f32 to vector<8x8xf32>
    %117 = arith.mulf %115, %116 : vector<8x8xf32>
    %118 = arith.addf %117, %9 : vector<8x8xf32>
    %cst_35 = arith.constant dense<0xFF800000> : vector<8xf32>
    %119 = vector.multi_reduction <maximumf>, %118, %cst_35 [1] : vector<8x8xf32> to vector<8xf32>
    %120 = vector.shape_cast %119 : vector<8xf32> to vector<8x1xf32>
    %121 = vector.broadcast %120 : vector<8x1xf32> to vector<8x8xf32>
    %122 = arith.subf %118, %121 : vector<8x8xf32>
    %123 = math.exp %122 : vector<8x8xf32>
    %cst_36 = arith.constant dense<0.000000e+00> : vector<8xf32>
    %124 = vector.multi_reduction <add>, %123, %cst_36 [1] : vector<8x8xf32> to vector<8xf32>
    %125 = vector.shape_cast %124 : vector<8xf32> to vector<8x1xf32>
    %126 = tpu.reciprocal %125 {approx = true} : vector<8x1xf32> -> vector<8x1xf32>
    %127 = vector.broadcast %126 : vector<8x1xf32> to vector<8x8xf32>
    %128 = arith.mulf %123, %127 : vector<8x8xf32>
    %129 = arith.truncf %128 : vector<8x8xf32> to vector<8x8xbf16>
    %cst_37 = arith.constant dense<0.000000e+00> : vector<8x8xf32>
    %130 = tpu.matmul %129, %114, %cst_37 {dimension_numbers = #tpu.dot_dimension_numbers<[1], [0], [0], [1], [0, 0, 1, 1], [], []>} : vector<8x8xbf16>, vector<8x8xbf16>, vector<8x8xf32> -> vector<8x8xf32>
    %131 = tpu.concatenate %42, %64, %86, %108, %130 in 1 : vector<8x8xf32>, vector<8x8xf32>, vector<8x8xf32>, vector<8x8xf32>, vector<8x8xf32> -> vector<8x40xf32>
    %132 = arith.truncf %131 : vector<8x40xf32> to vector<8x40xbf16>
    %cst_38 = arith.constant dense<0.000000e+00> : vector<8x128xf32>
    %133 = tpu.matmul %132, %19, %cst_38 {dimension_numbers = #tpu.dot_dimension_numbers<[1], [0], [0], [1], [0, 0, 1, 1], [], []>} : vector<8x40xbf16>, vector<40x128xbf16>, vector<8x128xf32> -> vector<8x128xf32>
    %134 = vector.broadcast %20 : vector<1x128xf32> to vector<8x128xf32>
    %135 = arith.addf %133, %134 : vector<8x128xf32>
    %136 = arith.addf %0, %135 : vector<8x128xf32>
    %137 = vector.extract_strided_slice %2 {offsets = [4, 0], sizes = [1, 128], strides = [1, 1]} : vector<11x128xf32> to vector<1x128xf32>
    %138 = vector.extract_strided_slice %2 {offsets = [5, 0], sizes = [1, 128], strides = [1, 1]} : vector<11x128xf32> to vector<1x128xf32>
    %139 = vector.broadcast %3 : vector<1x128xf32> to vector<8x128xf32>
    %140 = arith.mulf %136, %139 : vector<8x128xf32>
    %cst_39 = arith.constant dense<0.000000e+00> : vector<8xf32>
    %141 = vector.multi_reduction <add>, %140, %cst_39 [1] : vector<8x128xf32> to vector<8xf32>
    %142 = vector.shape_cast %141 : vector<8xf32> to vector<8x1xf32>
    %cst_40 = arith.constant 1.000000e-01 : f32
    %143 = vector.broadcast %cst_40 : f32 to vector<8x1xf32>
    %144 = arith.mulf %142, %143 : vector<8x1xf32>
    %145 = vector.broadcast %144 : vector<8x1xf32> to vector<8x128xf32>
    %146 = arith.subf %136, %145 : vector<8x128xf32>
    %147 = vector.broadcast %3 : vector<1x128xf32> to vector<8x128xf32>
    %148 = arith.mulf %146, %147 : vector<8x128xf32>
    %149 = arith.mulf %148, %148 : vector<8x128xf32>
    %cst_41 = arith.constant dense<0.000000e+00> : vector<8xf32>
    %150 = vector.multi_reduction <add>, %149, %cst_41 [1] : vector<8x128xf32> to vector<8xf32>
    %151 = vector.shape_cast %150 : vector<8xf32> to vector<8x1xf32>
    %cst_42 = arith.constant 1.000000e-01 : f32
    %152 = vector.broadcast %cst_42 : f32 to vector<8x1xf32>
    %153 = arith.mulf %151, %152 : vector<8x1xf32>
    %cst_43 = arith.constant 9.99999974E-6 : f32
    %154 = vector.broadcast %cst_43 : f32 to vector<8x1xf32>
    %155 = arith.addf %153, %154 : vector<8x1xf32>
    %156 = math.rsqrt %155 : vector<8x1xf32>
    %157 = vector.broadcast %156 : vector<8x1xf32> to vector<8x128xf32>
    %158 = arith.mulf %148, %157 : vector<8x128xf32>
    %159 = vector.broadcast %137 : vector<1x128xf32> to vector<8x128xf32>
    %160 = arith.mulf %158, %159 : vector<8x128xf32>
    %161 = vector.broadcast %138 : vector<1x128xf32> to vector<8x128xf32>
    %162 = arith.addf %160, %161 : vector<8x128xf32>
    %163 = arith.truncf %162 : vector<8x128xf32> to vector<8x128xbf16>
    %c0_44 = arith.constant 0 : index
    %c0_45 = arith.constant 0 : index
    %164 = vector.load %arg6[%c0_44, %c0_45] : memref<128x384xbf16, #tpu.memory_space<vmem>>, vector<128x128xbf16>
    %cst_46 = arith.constant dense<0.000000e+00> : vector<8x128xf32>
    %165 = tpu.matmul %163, %164, %cst_46 {dimension_numbers = #tpu.dot_dimension_numbers<[1], [0], [0], [1], [0, 0, 1, 1], [], []>} : vector<8x128xbf16>, vector<128x128xbf16>, vector<8x128xf32> -> vector<8x128xf32>
    %c0_47 = arith.constant 0 : index
    %c0_48 = arith.constant 0 : index
    %166 = vector.load %arg7[%c0_47, %c0_48] : memref<1x384xf32, #tpu.memory_space<vmem>>, vector<1x128xf32>
    %167 = vector.broadcast %166 : vector<1x128xf32> to vector<8x128xf32>
    %168 = arith.addf %165, %167 : vector<8x128xf32>
    %169 = arith.truncf %1 : vector<8x128xf32> to vector<8x128xbf16>
    %c0_49 = arith.constant 0 : index
    %c128 = arith.constant 128 : index
    %170 = vector.load %arg6[%c0_49, %c128] : memref<128x384xbf16, #tpu.memory_space<vmem>>, vector<128x256xbf16>
    %cst_50 = arith.constant dense<0.000000e+00> : vector<8x256xf32>
    %171 = tpu.matmul %169, %170, %cst_50 {dimension_numbers = #tpu.dot_dimension_numbers<[1], [0], [0], [1], [0, 0, 1, 1], [], []>} : vector<8x128xbf16>, vector<128x256xbf16>, vector<8x256xf32> -> vector<8x256xf32>
    %c0_51 = arith.constant 0 : index
    %c128_52 = arith.constant 128 : index
    %172 = vector.load %arg7[%c0_51, %c128_52] : memref<1x384xf32, #tpu.memory_space<vmem>>, vector<1x256xf32>
    %173 = vector.broadcast %172 : vector<1x256xf32> to vector<8x256xf32>
    %174 = arith.addf %171, %173 : vector<8x256xf32>
    %175 = vector.extract_strided_slice %174 {offsets = [0, 0], sizes = [8, 128], strides = [1, 1]} : vector<8x256xf32> to vector<8x128xf32>
    %176 = vector.extract_strided_slice %174 {offsets = [0, 128], sizes = [8, 128], strides = [1, 1]} : vector<8x256xf32> to vector<8x128xf32>
    %c0_53 = arith.constant 0 : index
    %c0_54 = arith.constant 0 : index
    %177 = vector.load %arg8[%c0_53, %c0_54] : memref<40x128xbf16, #tpu.memory_space<vmem>>, vector<40x128xbf16>
    %178 = vector.extract_strided_slice %2 {offsets = [1, 0], sizes = [1, 128], strides = [1, 1]} : vector<11x128xf32> to vector<1x128xf32>
    %179 = vector.extract_strided_slice %168 {offsets = [0, 0], sizes = [8, 8], strides = [1, 1]} : vector<8x128xf32> to vector<8x8xf32>
    %180 = arith.truncf %179 : vector<8x8xf32> to vector<8x8xbf16>
    %181 = vector.extract_strided_slice %175 {offsets = [0, 0], sizes = [8, 8], strides = [1, 1]} : vector<8x128xf32> to vector<8x8xf32>
    %182 = arith.truncf %181 : vector<8x8xf32> to vector<8x8xbf16>
    %183 = vector.extract_strided_slice %176 {offsets = [0, 0], sizes = [8, 8], strides = [1, 1]} : vector<8x128xf32> to vector<8x8xf32>
    %184 = arith.truncf %183 : vector<8x8xf32> to vector<8x8xbf16>
    %cst_55 = arith.constant dense<0.000000e+00> : vector<8x8xf32>
    %185 = tpu.matmul %180, %182, %cst_55 {dimension_numbers = #tpu.dot_dimension_numbers<[1], [1], [0], [0], [0, 0, 1, 0], [], []>} : vector<8x8xbf16>, vector<8x8xbf16>, vector<8x8xf32> -> vector<8x8xf32>
    %cst_56 = arith.constant 0.707106769 : f32
    %186 = vector.broadcast %cst_56 : f32 to vector<8x8xf32>
    %187 = arith.mulf %185, %186 : vector<8x8xf32>
    %cst_57 = arith.constant dense<0xFF800000> : vector<8xf32>
    %188 = vector.multi_reduction <maximumf>, %187, %cst_57 [1] : vector<8x8xf32> to vector<8xf32>
    %189 = vector.shape_cast %188 : vector<8xf32> to vector<8x1xf32>
    %190 = vector.broadcast %189 : vector<8x1xf32> to vector<8x8xf32>
    %191 = arith.subf %187, %190 : vector<8x8xf32>
    %192 = math.exp %191 : vector<8x8xf32>
    %cst_58 = arith.constant dense<0.000000e+00> : vector<8xf32>
    %193 = vector.multi_reduction <add>, %192, %cst_58 [1] : vector<8x8xf32> to vector<8xf32>
    %194 = vector.shape_cast %193 : vector<8xf32> to vector<8x1xf32>
    %195 = tpu.reciprocal %194 {approx = true} : vector<8x1xf32> -> vector<8x1xf32>
    %196 = vector.broadcast %195 : vector<8x1xf32> to vector<8x8xf32>
    %197 = arith.mulf %192, %196 : vector<8x8xf32>
    %198 = arith.truncf %197 : vector<8x8xf32> to vector<8x8xbf16>
    %cst_59 = arith.constant dense<0.000000e+00> : vector<8x8xf32>
    %199 = tpu.matmul %198, %184, %cst_59 {dimension_numbers = #tpu.dot_dimension_numbers<[1], [0], [0], [1], [0, 0, 1, 1], [], []>} : vector<8x8xbf16>, vector<8x8xbf16>, vector<8x8xf32> -> vector<8x8xf32>
    %200 = vector.extract_strided_slice %168 {offsets = [0, 8], sizes = [8, 8], strides = [1, 1]} : vector<8x128xf32> to vector<8x8xf32>
    %201 = arith.truncf %200 : vector<8x8xf32> to vector<8x8xbf16>
    %202 = vector.extract_strided_slice %175 {offsets = [0, 8], sizes = [8, 8], strides = [1, 1]} : vector<8x128xf32> to vector<8x8xf32>
    %203 = arith.truncf %202 : vector<8x8xf32> to vector<8x8xbf16>
    %204 = vector.extract_strided_slice %176 {offsets = [0, 8], sizes = [8, 8], strides = [1, 1]} : vector<8x128xf32> to vector<8x8xf32>
    %205 = arith.truncf %204 : vector<8x8xf32> to vector<8x8xbf16>
    %cst_60 = arith.constant dense<0.000000e+00> : vector<8x8xf32>
    %206 = tpu.matmul %201, %203, %cst_60 {dimension_numbers = #tpu.dot_dimension_numbers<[1], [1], [0], [0], [0, 0, 1, 0], [], []>} : vector<8x8xbf16>, vector<8x8xbf16>, vector<8x8xf32> -> vector<8x8xf32>
    %cst_61 = arith.constant 0.707106769 : f32
    %207 = vector.broadcast %cst_61 : f32 to vector<8x8xf32>
    %208 = arith.mulf %206, %207 : vector<8x8xf32>
    %cst_62 = arith.constant dense<0xFF800000> : vector<8xf32>
    %209 = vector.multi_reduction <maximumf>, %208, %cst_62 [1] : vector<8x8xf32> to vector<8xf32>
    %210 = vector.shape_cast %209 : vector<8xf32> to vector<8x1xf32>
    %211 = vector.broadcast %210 : vector<8x1xf32> to vector<8x8xf32>
    %212 = arith.subf %208, %211 : vector<8x8xf32>
    %213 = math.exp %212 : vector<8x8xf32>
    %cst_63 = arith.constant dense<0.000000e+00> : vector<8xf32>
    %214 = vector.multi_reduction <add>, %213, %cst_63 [1] : vector<8x8xf32> to vector<8xf32>
    %215 = vector.shape_cast %214 : vector<8xf32> to vector<8x1xf32>
    %216 = tpu.reciprocal %215 {approx = true} : vector<8x1xf32> -> vector<8x1xf32>
    %217 = vector.broadcast %216 : vector<8x1xf32> to vector<8x8xf32>
    %218 = arith.mulf %213, %217 : vector<8x8xf32>
    %219 = arith.truncf %218 : vector<8x8xf32> to vector<8x8xbf16>
    %cst_64 = arith.constant dense<0.000000e+00> : vector<8x8xf32>
    %220 = tpu.matmul %219, %205, %cst_64 {dimension_numbers = #tpu.dot_dimension_numbers<[1], [0], [0], [1], [0, 0, 1, 1], [], []>} : vector<8x8xbf16>, vector<8x8xbf16>, vector<8x8xf32> -> vector<8x8xf32>
    %221 = vector.extract_strided_slice %168 {offsets = [0, 16], sizes = [8, 8], strides = [1, 1]} : vector<8x128xf32> to vector<8x8xf32>
    %222 = arith.truncf %221 : vector<8x8xf32> to vector<8x8xbf16>
    %223 = vector.extract_strided_slice %175 {offsets = [0, 16], sizes = [8, 8], strides = [1, 1]} : vector<8x128xf32> to vector<8x8xf32>
    %224 = arith.truncf %223 : vector<8x8xf32> to vector<8x8xbf16>
    %225 = vector.extract_strided_slice %176 {offsets = [0, 16], sizes = [8, 8], strides = [1, 1]} : vector<8x128xf32> to vector<8x8xf32>
    %226 = arith.truncf %225 : vector<8x8xf32> to vector<8x8xbf16>
    %cst_65 = arith.constant dense<0.000000e+00> : vector<8x8xf32>
    %227 = tpu.matmul %222, %224, %cst_65 {dimension_numbers = #tpu.dot_dimension_numbers<[1], [1], [0], [0], [0, 0, 1, 0], [], []>} : vector<8x8xbf16>, vector<8x8xbf16>, vector<8x8xf32> -> vector<8x8xf32>
    %cst_66 = arith.constant 0.707106769 : f32
    %228 = vector.broadcast %cst_66 : f32 to vector<8x8xf32>
    %229 = arith.mulf %227, %228 : vector<8x8xf32>
    %cst_67 = arith.constant dense<0xFF800000> : vector<8xf32>
    %230 = vector.multi_reduction <maximumf>, %229, %cst_67 [1] : vector<8x8xf32> to vector<8xf32>
    %231 = vector.shape_cast %230 : vector<8xf32> to vector<8x1xf32>
    %232 = vector.broadcast %231 : vector<8x1xf32> to vector<8x8xf32>
    %233 = arith.subf %229, %232 : vector<8x8xf32>
    %234 = math.exp %233 : vector<8x8xf32>
    %cst_68 = arith.constant dense<0.000000e+00> : vector<8xf32>
    %235 = vector.multi_reduction <add>, %234, %cst_68 [1] : vector<8x8xf32> to vector<8xf32>
    %236 = vector.shape_cast %235 : vector<8xf32> to vector<8x1xf32>
    %237 = tpu.reciprocal %236 {approx = true} : vector<8x1xf32> -> vector<8x1xf32>
    %238 = vector.broadcast %237 : vector<8x1xf32> to vector<8x8xf32>
    %239 = arith.mulf %234, %238 : vector<8x8xf32>
    %240 = arith.truncf %239 : vector<8x8xf32> to vector<8x8xbf16>
    %cst_69 = arith.constant dense<0.000000e+00> : vector<8x8xf32>
    %241 = tpu.matmul %240, %226, %cst_69 {dimension_numbers = #tpu.dot_dimension_numbers<[1], [0], [0], [1], [0, 0, 1, 1], [], []>} : vector<8x8xbf16>, vector<8x8xbf16>, vector<8x8xf32> -> vector<8x8xf32>
    %242 = vector.extract_strided_slice %168 {offsets = [0, 24], sizes = [8, 8], strides = [1, 1]} : vector<8x128xf32> to vector<8x8xf32>
    %243 = arith.truncf %242 : vector<8x8xf32> to vector<8x8xbf16>
    %244 = vector.extract_strided_slice %175 {offsets = [0, 24], sizes = [8, 8], strides = [1, 1]} : vector<8x128xf32> to vector<8x8xf32>
    %245 = arith.truncf %244 : vector<8x8xf32> to vector<8x8xbf16>
    %246 = vector.extract_strided_slice %176 {offsets = [0, 24], sizes = [8, 8], strides = [1, 1]} : vector<8x128xf32> to vector<8x8xf32>
    %247 = arith.truncf %246 : vector<8x8xf32> to vector<8x8xbf16>
    %cst_70 = arith.constant dense<0.000000e+00> : vector<8x8xf32>
    %248 = tpu.matmul %243, %245, %cst_70 {dimension_numbers = #tpu.dot_dimension_numbers<[1], [1], [0], [0], [0, 0, 1, 0], [], []>} : vector<8x8xbf16>, vector<8x8xbf16>, vector<8x8xf32> -> vector<8x8xf32>
    %cst_71 = arith.constant 0.707106769 : f32
    %249 = vector.broadcast %cst_71 : f32 to vector<8x8xf32>
    %250 = arith.mulf %248, %249 : vector<8x8xf32>
    %cst_72 = arith.constant dense<0xFF800000> : vector<8xf32>
    %251 = vector.multi_reduction <maximumf>, %250, %cst_72 [1] : vector<8x8xf32> to vector<8xf32>
    %252 = vector.shape_cast %251 : vector<8xf32> to vector<8x1xf32>
    %253 = vector.broadcast %252 : vector<8x1xf32> to vector<8x8xf32>
    %254 = arith.subf %250, %253 : vector<8x8xf32>
    %255 = math.exp %254 : vector<8x8xf32>
    %cst_73 = arith.constant dense<0.000000e+00> : vector<8xf32>
    %256 = vector.multi_reduction <add>, %255, %cst_73 [1] : vector<8x8xf32> to vector<8xf32>
    %257 = vector.shape_cast %256 : vector<8xf32> to vector<8x1xf32>
    %258 = tpu.reciprocal %257 {approx = true} : vector<8x1xf32> -> vector<8x1xf32>
    %259 = vector.broadcast %258 : vector<8x1xf32> to vector<8x8xf32>
    %260 = arith.mulf %255, %259 : vector<8x8xf32>
    %261 = arith.truncf %260 : vector<8x8xf32> to vector<8x8xbf16>
    %cst_74 = arith.constant dense<0.000000e+00> : vector<8x8xf32>
    %262 = tpu.matmul %261, %247, %cst_74 {dimension_numbers = #tpu.dot_dimension_numbers<[1], [0], [0], [1], [0, 0, 1, 1], [], []>} : vector<8x8xbf16>, vector<8x8xbf16>, vector<8x8xf32> -> vector<8x8xf32>
    %263 = vector.extract_strided_slice %168 {offsets = [0, 32], sizes = [8, 8], strides = [1, 1]} : vector<8x128xf32> to vector<8x8xf32>
    %264 = arith.truncf %263 : vector<8x8xf32> to vector<8x8xbf16>
    %265 = vector.extract_strided_slice %175 {offsets = [0, 32], sizes = [8, 8], strides = [1, 1]} : vector<8x128xf32> to vector<8x8xf32>
    %266 = arith.truncf %265 : vector<8x8xf32> to vector<8x8xbf16>
    %267 = vector.extract_strided_slice %176 {offsets = [0, 32], sizes = [8, 8], strides = [1, 1]} : vector<8x128xf32> to vector<8x8xf32>
    %268 = arith.truncf %267 : vector<8x8xf32> to vector<8x8xbf16>
    %cst_75 = arith.constant dense<0.000000e+00> : vector<8x8xf32>
    %269 = tpu.matmul %264, %266, %cst_75 {dimension_numbers = #tpu.dot_dimension_numbers<[1], [1], [0], [0], [0, 0, 1, 0], [], []>} : vector<8x8xbf16>, vector<8x8xbf16>, vector<8x8xf32> -> vector<8x8xf32>
    %cst_76 = arith.constant 0.707106769 : f32
    %270 = vector.broadcast %cst_76 : f32 to vector<8x8xf32>
    %271 = arith.mulf %269, %270 : vector<8x8xf32>
    %cst_77 = arith.constant dense<0xFF800000> : vector<8xf32>
    %272 = vector.multi_reduction <maximumf>, %271, %cst_77 [1] : vector<8x8xf32> to vector<8xf32>
    %273 = vector.shape_cast %272 : vector<8xf32> to vector<8x1xf32>
    %274 = vector.broadcast %273 : vector<8x1xf32> to vector<8x8xf32>
    %275 = arith.subf %271, %274 : vector<8x8xf32>
    %276 = math.exp %275 : vector<8x8xf32>
    %cst_78 = arith.constant dense<0.000000e+00> : vector<8xf32>
    %277 = vector.multi_reduction <add>, %276, %cst_78 [1] : vector<8x8xf32> to vector<8xf32>
    %278 = vector.shape_cast %277 : vector<8xf32> to vector<8x1xf32>
    %279 = tpu.reciprocal %278 {approx = true} : vector<8x1xf32> -> vector<8x1xf32>
    %280 = vector.broadcast %279 : vector<8x1xf32> to vector<8x8xf32>
    %281 = arith.mulf %276, %280 : vector<8x8xf32>
    %282 = arith.truncf %281 : vector<8x8xf32> to vector<8x8xbf16>
    %cst_79 = arith.constant dense<0.000000e+00> : vector<8x8xf32>
    %283 = tpu.matmul %282, %268, %cst_79 {dimension_numbers = #tpu.dot_dimension_numbers<[1], [0], [0], [1], [0, 0, 1, 1], [], []>} : vector<8x8xbf16>, vector<8x8xbf16>, vector<8x8xf32> -> vector<8x8xf32>
    %284 = tpu.concatenate %199, %220, %241, %262, %283 in 1 : vector<8x8xf32>, vector<8x8xf32>, vector<8x8xf32>, vector<8x8xf32>, vector<8x8xf32> -> vector<8x40xf32>
    %285 = arith.truncf %284 : vector<8x40xf32> to vector<8x40xbf16>
    %cst_80 = arith.constant dense<0.000000e+00> : vector<8x128xf32>
    %286 = tpu.matmul %285, %177, %cst_80 {dimension_numbers = #tpu.dot_dimension_numbers<[1], [0], [0], [1], [0, 0, 1, 1], [], []>} : vector<8x40xbf16>, vector<40x128xbf16>, vector<8x128xf32> -> vector<8x128xf32>
    %287 = vector.broadcast %178 : vector<1x128xf32> to vector<8x128xf32>
    %288 = arith.addf %286, %287 : vector<8x128xf32>
    %289 = arith.addf %162, %288 : vector<8x128xf32>
    %290 = vector.extract_strided_slice %2 {offsets = [6, 0], sizes = [1, 128], strides = [1, 1]} : vector<11x128xf32> to vector<1x128xf32>
    %291 = vector.extract_strided_slice %2 {offsets = [7, 0], sizes = [1, 128], strides = [1, 1]} : vector<11x128xf32> to vector<1x128xf32>
    %292 = vector.broadcast %3 : vector<1x128xf32> to vector<8x128xf32>
    %293 = arith.mulf %289, %292 : vector<8x128xf32>
    %cst_81 = arith.constant dense<0.000000e+00> : vector<8xf32>
    %294 = vector.multi_reduction <add>, %293, %cst_81 [1] : vector<8x128xf32> to vector<8xf32>
    %295 = vector.shape_cast %294 : vector<8xf32> to vector<8x1xf32>
    %cst_82 = arith.constant 1.000000e-01 : f32
    %296 = vector.broadcast %cst_82 : f32 to vector<8x1xf32>
    %297 = arith.mulf %295, %296 : vector<8x1xf32>
    %298 = vector.broadcast %297 : vector<8x1xf32> to vector<8x128xf32>
    %299 = arith.subf %289, %298 : vector<8x128xf32>
    %300 = vector.broadcast %3 : vector<1x128xf32> to vector<8x128xf32>
    %301 = arith.mulf %299, %300 : vector<8x128xf32>
    %302 = arith.mulf %301, %301 : vector<8x128xf32>
    %cst_83 = arith.constant dense<0.000000e+00> : vector<8xf32>
    %303 = vector.multi_reduction <add>, %302, %cst_83 [1] : vector<8x128xf32> to vector<8xf32>
    %304 = vector.shape_cast %303 : vector<8xf32> to vector<8x1xf32>
    %cst_84 = arith.constant 1.000000e-01 : f32
    %305 = vector.broadcast %cst_84 : f32 to vector<8x1xf32>
    %306 = arith.mulf %304, %305 : vector<8x1xf32>
    %cst_85 = arith.constant 9.99999974E-6 : f32
    %307 = vector.broadcast %cst_85 : f32 to vector<8x1xf32>
    %308 = arith.addf %306, %307 : vector<8x1xf32>
    %309 = math.rsqrt %308 : vector<8x1xf32>
    %310 = vector.broadcast %309 : vector<8x1xf32> to vector<8x128xf32>
    %311 = arith.mulf %301, %310 : vector<8x128xf32>
    %312 = vector.broadcast %290 : vector<1x128xf32> to vector<8x128xf32>
    %313 = arith.mulf %311, %312 : vector<8x128xf32>
    %314 = vector.broadcast %291 : vector<1x128xf32> to vector<8x128xf32>
    %315 = arith.addf %313, %314 : vector<8x128xf32>
    %316 = arith.truncf %315 : vector<8x128xf32> to vector<8x128xbf16>
    %c0_86 = arith.constant 0 : index
    %c0_87 = arith.constant 0 : index
    %317 = vector.load %arg9[%c0_86, %c0_87] : memref<128x128xbf16, #tpu.memory_space<vmem>>, vector<128x128xbf16>
    %cst_88 = arith.constant dense<0.000000e+00> : vector<8x128xf32>
    %318 = tpu.matmul %316, %317, %cst_88 {dimension_numbers = #tpu.dot_dimension_numbers<[1], [0], [0], [1], [0, 0, 1, 1], [], []>} : vector<8x128xbf16>, vector<128x128xbf16>, vector<8x128xf32> -> vector<8x128xf32>
    %319 = vector.extract_strided_slice %2 {offsets = [2, 0], sizes = [1, 128], strides = [1, 1]} : vector<11x128xf32> to vector<1x128xf32>
    %320 = vector.broadcast %319 : vector<1x128xf32> to vector<8x128xf32>
    %321 = arith.addf %318, %320 : vector<8x128xf32>
    %cst_89 = arith.constant 0.000000e+00 : f32
    %322 = vector.broadcast %cst_89 : f32 to vector<8x128xf32>
    %323 = arith.maximumf %321, %322 : vector<8x128xf32>
    %324 = arith.truncf %323 : vector<8x128xf32> to vector<8x128xbf16>
    %c0_90 = arith.constant 0 : index
    %c0_91 = arith.constant 0 : index
    %325 = vector.load %arg10[%c0_90, %c0_91] : memref<128x128xbf16, #tpu.memory_space<vmem>>, vector<128x128xbf16>
    %cst_92 = arith.constant dense<0.000000e+00> : vector<8x128xf32>
    %326 = tpu.matmul %324, %325, %cst_92 {dimension_numbers = #tpu.dot_dimension_numbers<[1], [0], [0], [1], [0, 0, 1, 1], [], []>} : vector<8x128xbf16>, vector<128x128xbf16>, vector<8x128xf32> -> vector<8x128xf32>
    %327 = vector.extract_strided_slice %2 {offsets = [3, 0], sizes = [1, 128], strides = [1, 1]} : vector<11x128xf32> to vector<1x128xf32>
    %328 = vector.broadcast %327 : vector<1x128xf32> to vector<8x128xf32>
    %329 = arith.addf %326, %328 : vector<8x128xf32>
    %330 = arith.addf %315, %329 : vector<8x128xf32>
    %331 = vector.extract_strided_slice %2 {offsets = [8, 0], sizes = [1, 128], strides = [1, 1]} : vector<11x128xf32> to vector<1x128xf32>
    %332 = vector.extract_strided_slice %2 {offsets = [9, 0], sizes = [1, 128], strides = [1, 1]} : vector<11x128xf32> to vector<1x128xf32>
    %333 = vector.broadcast %3 : vector<1x128xf32> to vector<8x128xf32>
    %334 = arith.mulf %330, %333 : vector<8x128xf32>
    %cst_93 = arith.constant dense<0.000000e+00> : vector<8xf32>
    %335 = vector.multi_reduction <add>, %334, %cst_93 [1] : vector<8x128xf32> to vector<8xf32>
    %336 = vector.shape_cast %335 : vector<8xf32> to vector<8x1xf32>
    %cst_94 = arith.constant 1.000000e-01 : f32
    %337 = vector.broadcast %cst_94 : f32 to vector<8x1xf32>
    %338 = arith.mulf %336, %337 : vector<8x1xf32>
    %339 = vector.broadcast %338 : vector<8x1xf32> to vector<8x128xf32>
    %340 = arith.subf %330, %339 : vector<8x128xf32>
    %341 = vector.broadcast %3 : vector<1x128xf32> to vector<8x128xf32>
    %342 = arith.mulf %340, %341 : vector<8x128xf32>
    %343 = arith.mulf %342, %342 : vector<8x128xf32>
    %cst_95 = arith.constant dense<0.000000e+00> : vector<8xf32>
    %344 = vector.multi_reduction <add>, %343, %cst_95 [1] : vector<8x128xf32> to vector<8xf32>
    %345 = vector.shape_cast %344 : vector<8xf32> to vector<8x1xf32>
    %cst_96 = arith.constant 1.000000e-01 : f32
    %346 = vector.broadcast %cst_96 : f32 to vector<8x1xf32>
    %347 = arith.mulf %345, %346 : vector<8x1xf32>
    %cst_97 = arith.constant 9.99999974E-6 : f32
    %348 = vector.broadcast %cst_97 : f32 to vector<8x1xf32>
    %349 = arith.addf %347, %348 : vector<8x1xf32>
    %350 = math.rsqrt %349 : vector<8x1xf32>
    %351 = vector.broadcast %350 : vector<8x1xf32> to vector<8x128xf32>
    %352 = arith.mulf %342, %351 : vector<8x128xf32>
    %353 = vector.broadcast %331 : vector<1x128xf32> to vector<8x128xf32>
    %354 = arith.mulf %352, %353 : vector<8x128xf32>
    %355 = vector.broadcast %332 : vector<1x128xf32> to vector<8x128xf32>
    %356 = arith.addf %354, %355 : vector<8x128xf32>
    %c0_98 = arith.constant 0 : index
    %c0_99 = arith.constant 0 : index
    %357 = vector.load %arg12[%c0_98, %c0_99] : memref<8x128xf32, #tpu.memory_space<vmem>>, vector<8x128xf32>
    tpu.vector_store %arg12[%c0_98, %c0_99], %356 {strides = array<i32>} : memref<8x128xf32, #tpu.memory_space<vmem>>, vector<8x128xf32>,
    return
  }
  func.func @transform_0(%arg0: i32) -> (i32, i32) {
    %c0_i32 = arith.constant 0 : i32
    %c0_i32_0 = arith.constant 0 : i32
    return %arg0, %c0_i32 : i32, i32
  }
  func.func @transform_1(%arg0: i32) -> (i32, i32) {
    %c0_i32 = arith.constant 0 : i32
    %c0_i32_0 = arith.constant 0 : i32
    return %arg0, %c0_i32 : i32, i32
  }
  func.func @transform_2(%arg0: i32) -> (i32, i32) {
    %c0_i32 = arith.constant 0 : i32
    %c0_i32_0 = arith.constant 0 : i32
    %c0_i32_1 = arith.constant 0 : i32
    return %c0_i32, %c0_i32_0 : i32, i32
  }
  func.func @transform_3(%arg0: i32) -> (i32, i32) {
    %c0_i32 = arith.constant 0 : i32
    %c0_i32_0 = arith.constant 0 : i32
    %c0_i32_1 = arith.constant 0 : i32
    return %c0_i32, %c0_i32_0 : i32, i32
  }
  func.func @transform_4(%arg0: i32) -> (i32, i32) {
    %c0_i32 = arith.constant 0 : i32
    %c0_i32_0 = arith.constant 0 : i32
    %c0_i32_1 = arith.constant 0 : i32
    return %c0_i32, %c0_i32_0 : i32, i32
  }
  func.func @transform_5(%arg0: i32) -> (i32, i32) {
    %c0_i32 = arith.constant 0 : i32
    %c0_i32_0 = arith.constant 0 : i32
    %c0_i32_1 = arith.constant 0 : i32
    return %c0_i32, %c0_i32_0 : i32, i32
  }
  func.func @transform_6(%arg0: i32) -> (i32, i32) {
    %c0_i32 = arith.constant 0 : i32
    %c0_i32_0 = arith.constant 0 : i32
    %c0_i32_1 = arith.constant 0 : i32
    return %c0_i32, %c0_i32_0 : i32, i32
  }
  func.func @transform_7(%arg0: i32) -> (i32, i32) {
    %c0_i32 = arith.constant 0 : i32
    %c0_i32_0 = arith.constant 0 : i32
    %c0_i32_1 = arith.constant 0 : i32
    return %c0_i32, %c0_i32_0 : i32, i32
  }
  func.func @transform_8(%arg0: i32) -> (i32, i32) {
    %c0_i32 = arith.constant 0 : i32
    %c0_i32_0 = arith.constant 0 : i32
    %c0_i32_1 = arith.constant 0 : i32
    return %c0_i32, %c0_i32_0 : i32, i32
  }
  func.func @transform_9(%arg0: i32) -> (i32, i32) {
    %c0_i32 = arith.constant 0 : i32
    %c0_i32_0 = arith.constant 0 : i32
    %c0_i32_1 = arith.constant 0 : i32
    return %c0_i32, %c0_i32_0 : i32, i32
  }
  func.func @transform_10(%arg0: i32) -> (i32, i32) {
    %c0_i32 = arith.constant 0 : i32
    %c0_i32_0 = arith.constant 0 : i32
    %c0_i32_1 = arith.constant 0 : i32
    return %c0_i32, %c0_i32_0 : i32, i32
  }
  func.func @transform_11(%arg0: i32) -> (i32, i32) {
    %c0_i32 = arith.constant 0 : i32
    %c0_i32_0 = arith.constant 0 : i32
    return %arg0, %c0_i32 : i32, i32
  }
}

</mosaic_0001>

<llo_original>
// kernel: tpu_custom_call.1
$region0: #{tpu_custom_call.1}
  #allocation0 [shape = 'u32[]', space=smem, size = 0x4, offset = 0x4, fixed_abs, tag = 'smem constant byte address 0x4 - core index']
  #allocation1 [shape = 'u32[144,128]{1,0:T(1,128)}', space=vmem, size = 0x12000, scoped, tag = 'internal scratch']
  %s0 = inlined_call_operand.hbm [shape: f32[16,128], index: 0, kind: input, shape index: {}]
  %s1 = inlined_call_operand.hbm [shape: f32[16,128], index: 1, kind: input, shape index: {}]
  %s2 = inlined_call_operand.hbm [shape: bf16[128,384], index: 2, kind: input, shape index: {}]
  %s3 = inlined_call_operand.hbm [shape: f32[1,384], index: 3, kind: input, shape index: {}]
  %s4 = inlined_call_operand.hbm [shape: bf16[40,128], index: 4, kind: input, shape index: {}]
  %s5 = inlined_call_operand.hbm [shape: bf16[128,384], index: 5, kind: input, shape index: {}]
  %s6 = inlined_call_operand.hbm [shape: f32[1,384], index: 6, kind: input, shape index: {}]
  %s7 = inlined_call_operand.hbm [shape: bf16[40,128], index: 7, kind: input, shape index: {}]
  %s8 = inlined_call_operand.hbm [shape: bf16[128,128], index: 8, kind: input, shape index: {}]
  %s9 = inlined_call_operand.hbm [shape: bf16[128,128], index: 9, kind: input, shape index: {}]
  %s10 = inlined_call_operand.vmem [shape: f32[11,128], index: 10, kind: input, shape index: {}]
  %s11 = inlined_call_operand.hbm [shape: f32[16,128], index: 11, kind: output, shape index: {}]
  %s12 = sld [smem:[#allocation0]]
  $region117: #{tpu_custom_call.1} parent=0
    _
  %s14 = ssub.s32 1, %s12
  %s15 = scalar_select 0, %s14, %s12
  $region1: #{tpu_custom_call.1} parent=0
    #allocation2 [shape = 'u8[8192]{0}', space=vmem, size = 0x2000, scoped, tag = 'input window, operand 0']
    #allocation3 [shape = 's32[2]{0}', space=sflag, size = 0x8, scoped, tag = 'scoped memory for tpu_custom_call.1']
    #allocation4 [shape = 's32[2]{0}', space=sflag, size = 0x8, scoped, tag = 'scoped memory for tpu_custom_call.1']
    #allocation5 [shape = 'u8[8192]{0}', space=vmem, size = 0x2000, scoped, tag = 'input window, operand 1']
    #allocation6 [shape = 's32[2]{0}', space=sflag, size = 0x8, scoped, tag = 'scoped memory for tpu_custom_call.1']
    #allocation7 [shape = 'u8[98304]{0}', space=vmem, size = 0x18000, scoped, tag = 'input window, operand 2, single buffered']
    #allocation8 [shape = 'u8[1536]{0}', space=vmem, size = 0x800, scoped, tag = 'input window, operand 3, single buffered']
    #allocation9 [shape = 's32[1]{0}', space=sflag, size = 0x4, scoped, tag = 'scoped memory for tpu_custom_call.1']
    #allocation10 [shape = 'u8[10240]{0}', space=vmem, size = 0x2800, scoped, tag = 'input window, operand 4, single buffered']
    #allocation11 [shape = 'u8[98304]{0}', space=vmem, size = 0x18000, scoped, tag = 'input window, operand 5, single buffered']
    #allocation12 [shape = 's32[1]{0}', space=sflag, size = 0x4, scoped, tag = 'scoped memory for tpu_custom_call.1']
    #allocation13 [shape = 'u8[1536]{0}', space=vmem, size = 0x800, scoped, tag = 'input window, operand 6, single buffered']
    #allocation14 [shape = 'u8[10240]{0}', space=vmem, size = 0x2800, scoped, tag = 'input window, operand 7, single buffered']
    #allocation15 [shape = 's32[1]{0}', space=sflag, size = 0x4, scoped, tag = 'scoped memory for tpu_custom_call.1']
    #allocation16 [shape = 'u8[32768]{0}', space=vmem, size = 0x8000, scoped, tag = 'input window, operand 8, single buffered']
    #allocation17 [shape = 'u8[32768]{0}', space=vmem, size = 0x8000, scoped, tag = 'input window, operand 9, single buffered']
    #allocation18 [shape = 's32[1]{0}', space=sflag, size = 0x4, scoped, tag = 'scoped memory for tpu_custom_call.1']
    #allocation19 [shape = 'u8[8192]{0}', space=vmem, size = 0x2000, scoped, tag = 'output window, operand 0']
    %16 = vsyncpa [#allocation3], 0
    %s17 = scalar_lea.sflag [#allocation3], 1
    %18 = vsyncpa %s17, 0
    %19 = vsyncpa [#allocation6], 0
    %s20 = scalar_lea.sflag [#allocation6], 1
    %21 = vsyncpa %s20, 0
    %22 = vsyncpa [#allocation9], 0
    %23 = vsyncpa [#allocation12], 0
    %24 = vsyncpa [#allocation15], 0
    %25 = vsyncpa [#allocation18], 0
    %26 = vsyncpa [#allocation4], 0
    %s27 = scalar_lea.sflag [#allocation4], 1
    %28 = vsyncpa %s27, 0
    loop: start=0, step=1, limit=4
    $region2: #{tpu_custom_call.1} parent=1 // loop_pre_header
      _
    $region3: #{tpu_custom_call.1} parent=1 // loop_header
      %s30 = sphi 0, %s34
      %p31 = scmp.ge.s32.totalorder %s30, 4
      %s40 = sphi 0, %s42
      %s43 = sphi 0, %s40
      %s44 = sphi 0, %s43
      %s60 = sphi 0, %s44
      %s66 = sphi 0, %s68
      %s69 = sphi 0, %s66
      %s70 = sphi 0, %s69
      %s86 = sphi 0, %s70
      %s90 = sphi 0, %s90
      %s92 = sphi 0, %s90
      %s93 = sphi 0, %s92
      %s107 = sphi 0, %s93
      %s111 = sphi 0, %s111
      %s113 = sphi 0, %s111
      %s114 = sphi 0, %s113
      %s128 = sphi 0, %s114
      %s132 = sphi 0, %s132
      %s134 = sphi 0, %s132
      %s135 = sphi 0, %s134
      %s149 = sphi 0, %s135
      %s153 = sphi 0, %s153
      %s155 = sphi 0, %s153
      %s156 = sphi 0, %s155
      %s170 = sphi 0, %s156
      %s174 = sphi 0, %s174
      %s176 = sphi 0, %s174
      %s177 = sphi 0, %s176
      %s191 = sphi 0, %s177
      %s195 = sphi 0, %s195
      %s197 = sphi 0, %s195
      %s198 = sphi 0, %s197
      %s212 = sphi 0, %s198
      %s216 = sphi 0, %s216
      %s218 = sphi 0, %s216
      %s219 = sphi 0, %s218
      %s233 = sphi 0, %s219
      %s237 = sphi 0, %s237
      %s239 = sphi 0, %s237
      %s240 = sphi 0, %s239
      %s254 = sphi 0, %s240
      %s258 = sphi 0, %s258
      %s260 = sphi 0, %s258
      %s261 = sphi 0, %s260
      %s275 = sphi 0, %s261
      %s281 = sphi 0, %s283
      %s284 = sphi 0, %s281
      %s285 = sphi 0, %s284
      %s301 = sphi 0, %s285
    $region4: #{tpu_custom_call.1} parent=1 // loop_header_branch
      %33 = sbr.rel (%p31) target = $region8
    $region5: #{tpu_custom_call.1} parent=1 // loop_body
      %s35 = ssub.s32 %s30, 1
      %s36 = ssub.s32 %s30, 2
      %s37 = sadd.s32 %s30, 1
      %s38 = ssub.s32 %s30, %s37
      %p39 = scmp.eq.s32.totalorder %s38, 0
      %s41 = sadd.s32 %s40, 1
      %s42 = scalar_select %p39, %s40, %s41
      %p45 = pneg %p39
      %p46 = scmp.eq.s32.totalorder %s30, 1
      %p47 = por %p45, %p46
      %p48 = scmp.ne.s32.totalorder %s40, %s43
      %p49 = scmp.eq.s32.totalorder %s30, 0
      %p50 = por %p48, %p49
      %p51 = scmp.ne.s32.totalorder %s40, %s43
      %p52 = scmp.eq.s32.totalorder %s35, 1
      %p53 = por %p51, %p52
      %p54 = scmp.ne.s32.totalorder %s43, %s44
      %p55 = scmp.eq.s32.totalorder %s35, 0
      %p56 = por %p54, %p55
      %p57 = scmp.ne.s32.totalorder %s43, %s44
      %p58 = scmp.eq.s32.totalorder %s36, 1
      %p59 = por %p57, %p58
      %p61 = scmp.ne.s32.totalorder %s44, %s60
      %p62 = scmp.eq.s32.totalorder %s36, 0
      %p63 = por %p61, %p62
      %s64 = ssub.s32 %s30, %s37
      %p65 = scmp.eq.s32.totalorder %s64, 0
      %s67 = sadd.s32 %s66, 1
      %s68 = scalar_select %p65, %s66, %s67
      %p71 = pneg %p65
      %p72 = scmp.eq.s32.totalorder %s30, 1
      %p73 = por %p71, %p72
      %p74 = scmp.ne.s32.totalorder %s66, %s69
      %p75 = scmp.eq.s32.totalorder %s30, 0
      %p76 = por %p74, %p75
      %p77 = scmp.ne.s32.totalorder %s66, %s69
      %p78 = scmp.eq.s32.totalorder %s35, 1
      %p79 = por %p77, %p78
      %p80 = scmp.ne.s32.totalorder %s69, %s70
      %p81 = scmp.eq.s32.totalorder %s35, 0
      %p82 = por %p80, %p81
      %p83 = scmp.ne.s32.totalorder %s69, %s70
      %p84 = scmp.eq.s32.totalorder %s36, 1
      %p85 = por %p83, %p84
      %p87 = scmp.ne.s32.totalorder %s70, %s86
      %p88 = scmp.eq.s32.totalorder %s36, 0
      %p89 = por %p87, %p88
      %s91 = sadd.s32 %s90, 1
      %p94 = scmp.eq.s32.totalorder %s30, 1
      %p95 = scmp.ne.s32.totalorder %s90, %s92
      %p96 = scmp.eq.s32.totalorder %s30, 0
      %p97 = por %p95, %p96
      %p98 = scmp.ne.s32.totalorder %s90, %s92
      %p99 = scmp.eq.s32.totalorder %s35, 1
      %p100 = por %p98, %p99
      %p101 = scmp.ne.s32.totalorder %s92, %s93
      %p102 = scmp.eq.s32.totalorder %s35, 0
      %p103 = por %p101, %p102
      %p104 = scmp.ne.s32.totalorder %s92, %s93
      %p105 = scmp.eq.s32.totalorder %s36, 1
      %p106 = por %p104, %p105
      %p108 = scmp.ne.s32.totalorder %s93, %s107
      %p109 = scmp.eq.s32.totalorder %s36, 0
      %p110 = por %p108, %p109
      %s112 = sadd.s32 %s111, 1
      %p115 = scmp.eq.s32.totalorder %s30, 1
      %p116 = scmp.ne.s32.totalorder %s111, %s113
      %p117 = scmp.eq.s32.totalorder %s30, 0
      %p118 = por %p116, %p117
      %p119 = scmp.ne.s32.totalorder %s111, %s113
      %p120 = scmp.eq.s32.totalorder %s35, 1
      %p121 = por %p119, %p120
      %p122 = scmp.ne.s32.totalorder %s113, %s114
      %p123 = scmp.eq.s32.totalorder %s35, 0
      %p124 = por %p122, %p123
      %p125 = scmp.ne.s32.totalorder %s113, %s114
      %p126 = scmp.eq.s32.totalorder %s36, 1
      %p127 = por %p125, %p126
      %p129 = scmp.ne.s32.totalorder %s114, %s128
      %p130 = scmp.eq.s32.totalorder %s36, 0
      %p131 = por %p129, %p130
      %s133 = sadd.s32 %s132, 1
      %p136 = scmp.eq.s32.totalorder %s30, 1
      %p137 = scmp.ne.s32.totalorder %s132, %s134
      %p138 = scmp.eq.s32.totalorder %s30, 0
      %p139 = por %p137, %p138
      %p140 = scmp.ne.s32.totalorder %s132, %s134
      %p141 = scmp.eq.s32.totalorder %s35, 1
      %p142 = por %p140, %p141
      %p143 = scmp.ne.s32.totalorder %s134, %s135
      %p144 = scmp.eq.s32.totalorder %s35, 0
      %p145 = por %p143, %p144
      %p146 = scmp.ne.s32.totalorder %s134, %s135
      %p147 = scmp.eq.s32.totalorder %s36, 1
      %p148 = por %p146, %p147
      %p150 = scmp.ne.s32.totalorder %s135, %s149
      %p151 = scmp.eq.s32.totalorder %s36, 0
      %p152 = por %p150, %p151
      %s154 = sadd.s32 %s153, 1
      %p157 = scmp.eq.s32.totalorder %s30, 1
      %p158 = scmp.ne.s32.totalorder %s153, %s155
      %p159 = scmp.eq.s32.totalorder %s30, 0
      %p160 = por %p158, %p159
      %p161 = scmp.ne.s32.totalorder %s153, %s155
      %p162 = scmp.eq.s32.totalorder %s35, 1
      %p163 = por %p161, %p162
      %p164 = scmp.ne.s32.totalorder %s155, %s156
      %p165 = scmp.eq.s32.totalorder %s35, 0
      %p166 = por %p164, %p165
      %p167 = scmp.ne.s32.totalorder %s155, %s156
      %p168 = scmp.eq.s32.totalorder %s36, 1
      %p169 = por %p167, %p168
      %p171 = scmp.ne.s32.totalorder %s156, %s170
      %p172 = scmp.eq.s32.totalorder %s36, 0
      %p173 = por %p171, %p172
      %s175 = sadd.s32 %s174, 1
      %p178 = scmp.eq.s32.totalorder %s30, 1
      %p179 = scmp.ne.s32.totalorder %s174, %s176
      %p180 = scmp.eq.s32.totalorder %s30, 0
      %p181 = por %p179, %p180
      %p182 = scmp.ne.s32.totalorder %s174, %s176
      %p183 = scmp.eq.s32.totalorder %s35, 1
      %p184 = por %p182, %p183
      %p185 = scmp.ne.s32.totalorder %s176, %s177
      %p186 = scmp.eq.s32.totalorder %s35, 0
      %p187 = por %p185, %p186
      %p188 = scmp.ne.s32.totalorder %s176, %s177
      %p189 = scmp.eq.s32.totalorder %s36, 1
      %p190 = por %p188, %p189
      %p192 = scmp.ne.s32.totalorder %s177, %s191
      %p193 = scmp.eq.s32.totalorder %s36, 0
      %p194 = por %p192, %p193
      %s196 = sadd.s32 %s195, 1
      %p199 = scmp.eq.s32.totalorder %s30, 1
      %p200 = scmp.ne.s32.totalorder %s195, %s197
      %p201 = scmp.eq.s32.totalorder %s30, 0
      %p202 = por %p200, %p201
      %p203 = scmp.ne.s32.totalorder %s195, %s197
      %p204 = scmp.eq.s32.totalorder %s35, 1
      %p205 = por %p203, %p204
      %p206 = scmp.ne.s32.totalorder %s197, %s198
      %p207 = scmp.eq.s32.totalorder %s35, 0
      %p208 = por %p206, %p207
      %p209 = scmp.ne.s32.totalorder %s197, %s198
      %p210 = scmp.eq.s32.totalorder %s36, 1
      %p211 = por %p209, %p210
      %p213 = scmp.ne.s32.totalorder %s198, %s212
      %p214 = scmp.eq.s32.totalorder %s36, 0
      %p215 = por %p213, %p214
      %s217 = sadd.s32 %s216, 1
      %p220 = scmp.eq.s32.totalorder %s30, 1
      %p221 = scmp.ne.s32.totalorder %s216, %s218
      %p222 = scmp.eq.s32.totalorder %s30, 0
      %p223 = por %p221, %p222
      %p224 = scmp.ne.s32.totalorder %s216, %s218
      %p225 = scmp.eq.s32.totalorder %s35, 1
      %p226 = por %p224, %p225
      %p227 = scmp.ne.s32.totalorder %s218, %s219
      %p228 = scmp.eq.s32.totalorder %s35, 0
      %p229 = por %p227, %p228
      %p230 = scmp.ne.s32.totalorder %s218, %s219
      %p231 = scmp.eq.s32.totalorder %s36, 1
      %p232 = por %p230, %p231
      %p234 = scmp.ne.s32.totalorder %s219, %s233
      %p235 = scmp.eq.s32.totalorder %s36, 0
      %p236 = por %p234, %p235
      %s238 = sadd.s32 %s237, 1
      %p241 = scmp.eq.s32.totalorder %s30, 1
      %p242 = scmp.ne.s32.totalorder %s237, %s239
      %p243 = scmp.eq.s32.totalorder %s30, 0
      %p244 = por %p242, %p243
      %p245 = scmp.ne.s32.totalorder %s237, %s239
      %p246 = scmp.eq.s32.totalorder %s35, 1
      %p247 = por %p245, %p246
      %p248 = scmp.ne.s32.totalorder %s239, %s240
      %p249 = scmp.eq.s32.totalorder %s35, 0
      %p250 = por %p248, %p249
      %p251 = scmp.ne.s32.totalorder %s239, %s240
      %p252 = scmp.eq.s32.totalorder %s36, 1
      %p253 = por %p251, %p252
      %p255 = scmp.ne.s32.totalorder %s240, %s254
      %p256 = scmp.eq.s32.totalorder %s36, 0
      %p257 = por %p255, %p256
      %s259 = sadd.s32 %s258, 1
      %p262 = scmp.eq.s32.totalorder %s30, 1
      %p263 = scmp.ne.s32.totalorder %s258, %s260
      %p264 = scmp.eq.s32.totalorder %s30, 0
      %p265 = por %p263, %p264
      %p266 = scmp.ne.s32.totalorder %s258, %s260
      %p267 = scmp.eq.s32.totalorder %s35, 1
      %p268 = por %p266, %p267
      %p269 = scmp.ne.s32.totalorder %s260, %s261
      %p270 = scmp.eq.s32.totalorder %s35, 0
      %p271 = por %p269, %p270
      %p272 = scmp.ne.s32.totalorder %s260, %s261
      %p273 = scmp.eq.s32.totalorder %s36, 1
      %p274 = por %p272, %p273
      %p276 = scmp.ne.s32.totalorder %s261, %s275
      %p277 = scmp.eq.s32.totalorder %s36, 0
      %p278 = por %p276, %p277
      %s279 = ssub.s32 %s30, %s37
      %p280 = scmp.eq.s32.totalorder %s279, 0
      %s282 = sadd.s32 %s281, 1
      %s283 = scalar_select %p280, %s281, %s282
      %p286 = pneg %p280
      %p287 = scmp.eq.s32.totalorder %s30, 1
      %p288 = por %p286, %p287
      %p289 = scmp.ne.s32.totalorder %s281, %s284
      %p290 = scmp.eq.s32.totalorder %s30, 0
      %p291 = por %p289, %p290
      %p292 = scmp.ne.s32.totalorder %s281, %s284
      %p293 = scmp.eq.s32.totalorder %s35, 1
      %p294 = por %p292, %p293
      %p295 = scmp.ne.s32.totalorder %s284, %s285
      %p296 = scmp.eq.s32.totalorder %s35, 0
      %p297 = por %p295, %p296
      %p298 = scmp.ne.s32.totalorder %s284, %s285
      %p299 = scmp.eq.s32.totalorder %s36, 1
      %p300 = por %p298, %p299
      %p302 = scmp.ne.s32.totalorder %s285, %s301
      %p303 = scmp.eq.s32.totalorder %s36, 0
      %p304 = por %p302, %p303
      %p305 = scmp.le.s32.totalorder 1, %s30
      %p306 = scmp.lt.s32.totalorder %s30, 3
      %p307 = pnand %p305, %p306
      %p308 = pneg %p307
      // Predicated region
      $region9: #{tpu_custom_call.1} parent=5 // pred_check
        _
      $region10: #{tpu_custom_call.1} parent=5 // pred_check_branch
        %310 = sbr.rel (%p307) target = $region12
      $region11: #{tpu_custom_call.1} parent=5 // pred_region
        %s311 = ssub.s32 %s30, 1
        // Predicated region
        $region13: #{tpu_custom_call.1} parent=11 // pred_check
          %p312 = pneg %p103
        $region14: #{tpu_custom_call.1} parent=11 // pred_check_branch
          %314 = sbr.rel (%p312) target = $region16
        $region15: #{tpu_custom_call.1} parent=11 // pred_region
          %s316 = ssub.s32 3072, 3072
          %317 = vsyncadd [#allocation6], %s316
          %s318 = sshll.u32 [#allocation7], 4
          %s319 = int_to_ptr.vmem [resolvable:$true] %s318
          %324 = dma.hbm_to_vmem [thread:$0]  %s2, 3072, %s319, [#allocation6], 192, 192, 12
        $region16: #{tpu_custom_call.1} parent=11 // pred_fallthru
          _
        // Predicated region
        $region17: #{tpu_custom_call.1} parent=11 // pred_check
          %p325 = pneg %p124
        $region18: #{tpu_custom_call.1} parent=11 // pred_check_branch
          %327 = sbr.rel (%p325) target = $region20
        $region19: #{tpu_custom_call.1} parent=11 // pred_region
          %s329 = ssub.s32 48, 48
          %330 = vsyncadd [#allocation9], %s329
          %s332 = sshll.u32 [#allocation8], 4
          %s333 = int_to_ptr.vmem [resolvable:$true] %s332
          %335 = dma.hbm_to_vmem [thread:$0]  %s3, 48, %s333, [#allocation9]
        $region20: #{tpu_custom_call.1} parent=11 // pred_fallthru
          _
        // Predicated region
        $region21: #{tpu_custom_call.1} parent=11 // pred_check
          %p336 = pneg %p145
        $region22: #{tpu_custom_call.1} parent=11 // pred_check_branch
          %338 = sbr.rel (%p336) target = $region24
        $region23: #{tpu_custom_call.1} parent=11 // pred_region
          %s340 = ssub.s32 320, 320
          %341 = vsyncadd [#allocation9], %s340
          %s342 = sshll.u32 [#allocation10], 4
          %s343 = int_to_ptr.vmem [resolvable:$true] %s342
          %348 = dma.hbm_to_vmem [thread:$0]  %s4, 320, %s343, [#allocation9], 64, 64, 4
        $region24: #{tpu_custom_call.1} parent=11 // pred_fallthru
          _
        // Predicated region
        $region25: #{tpu_custom_call.1} parent=11 // pred_check
          %p349 = pneg %p166
        $region26: #{tpu_custom_call.1} parent=11 // pred_check_branch
          %351 = sbr.rel (%p349) target = $region28
        $region27: #{tpu_custom_call.1} parent=11 // pred_region
          %s353 = ssub.s32 3072, 3072
          %354 = vsyncadd [#allocation12], %s353
          %s355 = sshll.u32 [#allocation11], 4
          %s356 = int_to_ptr.vmem [resolvable:$true] %s355
          %361 = dma.hbm_to_vmem [thread:$0]  %s5, 3072, %s356, [#allocation12], 192, 192, 12
        $region28: #{tpu_custom_call.1} parent=11 // pred_fallthru
          _
        // Predicated region
        $region29: #{tpu_custom_call.1} parent=11 // pred_check
          %p362 = pneg %p187
        $region30: #{tpu_custom_call.1} parent=11 // pred_check_branch
          %364 = sbr.rel (%p362) target = $region32
        $region31: #{tpu_custom_call.1} parent=11 // pred_region
          %s366 = ssub.s32 48, 48
          %367 = vsyncadd [#allocation12], %s366
          %s369 = sshll.u32 [#allocation13], 4
          %s370 = int_to_ptr.vmem [resolvable:$true] %s369
          %372 = dma.hbm_to_vmem [thread:$0]  %s6, 48, %s370, [#allocation12]
        $region32: #{tpu_custom_call.1} parent=11 // pred_fallthru
          _
        // Predicated region
        $region33: #{tpu_custom_call.1} parent=11 // pred_check
          %p373 = pneg %p208
        $region34: #{tpu_custom_call.1} parent=11 // pred_check_branch
          %375 = sbr.rel (%p373) target = $region36
        $region35: #{tpu_custom_call.1} parent=11 // pred_region
          %s377 = ssub.s32 320, 320
          %378 = vsyncadd [#allocation15], %s377
          %s379 = sshll.u32 [#allocation14], 4
          %s380 = int_to_ptr.vmem [resolvable:$true] %s379
          %385 = dma.hbm_to_vmem [thread:$0]  %s7, 320, %s380, [#allocation15], 64, 64, 4
        $region36: #{tpu_custom_call.1} parent=11 // pred_fallthru
          _
        // Predicated region
        $region37: #{tpu_custom_call.1} parent=11 // pred_check
          %p386 = pneg %p229
        $region38: #{tpu_custom_call.1} parent=11 // pred_check_branch
          %388 = sbr.rel (%p386) target = $region40
        $region39: #{tpu_custom_call.1} parent=11 // pred_region
          %s390 = ssub.s32 1024, 1024
          %391 = vsyncadd [#allocation15], %s390
          %s392 = sshll.u32 [#allocation16], 4
          %s393 = int_to_ptr.vmem [resolvable:$true] %s392
          %398 = dma.hbm_to_vmem [thread:$0]  %s8, 1024, %s393, [#allocation15], 64, 64, 4
        $region40: #{tpu_custom_call.1} parent=11 // pred_fallthru
          _
        // Predicated region
        $region41: #{tpu_custom_call.1} parent=11 // pred_check
          %p399 = pneg %p250
        $region42: #{tpu_custom_call.1} parent=11 // pred_check_branch
          %401 = sbr.rel (%p399) target = $region44
        $region43: #{tpu_custom_call.1} parent=11 // pred_region
          %s403 = ssub.s32 1024, 1024
          %404 = vsyncadd [#allocation18], %s403
          %s405 = sshll.u32 [#allocation17], 4
          %s406 = int_to_ptr.vmem [resolvable:$true] %s405
          %411 = dma.hbm_to_vmem [thread:$0]  %s9, 1024, %s406, [#allocation18], 64, 64, 4
        $region44: #{tpu_custom_call.1} parent=11 // pred_fallthru
          _
        // Predicated region
        $region45: #{tpu_custom_call.1} parent=11 // pred_check
          %p412 = pneg %p271
        $region46: #{tpu_custom_call.1} parent=11 // pred_check_branch
          %414 = sbr.rel (%p412) target = $region48
        $region47: #{tpu_custom_call.1} parent=11 // pred_region
          _
        $region48: #{tpu_custom_call.1} parent=11 // pred_fallthru
          _
      $region12: #{tpu_custom_call.1} parent=5 // pred_fallthru
        _
      %p415 = scmp.lt.s32.totalorder %s30, 2
      // Predicated region
      $region49: #{tpu_custom_call.1} parent=5 // pred_check
        %p416 = pneg %p415
      $region50: #{tpu_custom_call.1} parent=5 // pred_check_branch
        %418 = sbr.rel (%p416) target = $region52
      $region51: #{tpu_custom_call.1} parent=5 // pred_region
        // Predicated region
        $region53: #{tpu_custom_call.1} parent=51 // pred_check
          %p419 = pneg %p50
        $region54: #{tpu_custom_call.1} parent=51 // pred_check_branch
          %421 = sbr.rel (%p419) target = $region56
        $region55: #{tpu_custom_call.1} parent=51 // pred_region
          %s422 = sand.u32 %s40, 1
          %s423 = scalar_lea.sflag [#allocation3], %s422
          %s424 = sand.u32 %s40, 1
          %s425 = smul.addr %s424, 8
          %s426 = scalar_lea.vmem [#allocation2], %s425
          %s428 = ssub.s32 128, 128
          %429 = vsyncadd %s423, %s428
          %s430 = smul.addr %s30, 128
          %s431 = scalar_lea.hbm %s0, %s430
          %s433 = sshll.u32 %s426, 4
          %s434 = int_to_ptr.vmem [resolvable:$true] %s433
          %436 = dma.hbm_to_vmem [thread:$0]  %s431, 128, %s434, %s423
        $region56: #{tpu_custom_call.1} parent=51 // pred_fallthru
          _
        // Predicated region
        $region57: #{tpu_custom_call.1} parent=51 // pred_check
          %p437 = pneg %p76
        $region58: #{tpu_custom_call.1} parent=51 // pred_check_branch
          %439 = sbr.rel (%p437) target = $region60
        $region59: #{tpu_custom_call.1} parent=51 // pred_region
          %s440 = sand.u32 %s30, 1
          %s441 = scalar_lea.sflag [#allocation6], %s440
          %s442 = sand.u32 %s66, 1
          %s443 = smul.addr %s442, 8
          %s444 = scalar_lea.vmem [#allocation5], %s443
          %s446 = ssub.s32 128, 128
          %447 = vsyncadd %s441, %s446
          %s448 = smul.addr %s30, 128
          %s449 = scalar_lea.hbm %s1, %s448
          %s451 = sshll.u32 %s444, 4
          %s452 = int_to_ptr.vmem [resolvable:$true] %s451
          %454 = dma.hbm_to_vmem [thread:$0]  %s449, 128, %s452, %s441
        $region60: #{tpu_custom_call.1} parent=51 // pred_fallthru
          _
      $region52: #{tpu_custom_call.1} parent=5 // pred_fallthru
        _
      %p455 = scmp.le.s32.totalorder 1, %s30
      %p456 = scmp.lt.s32.totalorder %s30, 3
      %p457 = pnand %p455, %p456
      %p458 = pneg %p457
      // Predicated region
      $region61: #{tpu_custom_call.1} parent=5 // pred_check
        _
      $region62: #{tpu_custom_call.1} parent=5 // pred_check_branch
        %460 = sbr.rel (%p457) target = $region64
      $region63: #{tpu_custom_call.1} parent=5 // pred_region
        %s461 = ssub.s32 %s30, 1
        %s462 = sand.u32 %s43, 1
        %s463 = scalar_lea.sflag [#allocation3], %s462
        %s464 = sand.u32 %s43, 1
        %s465 = smul.addr %s464, 8
        %s466 = scalar_lea.vmem [#allocation2], %s465
        // Predicated region
        $region65: #{tpu_custom_call.1} parent=63 // pred_check
          %p467 = pneg %p56
        $region66: #{tpu_custom_call.1} parent=63 // pred_check_branch
          %469 = sbr.rel (%p467) target = $region68
        $region67: #{tpu_custom_call.1} parent=63 // pred_region
          %470 = dma.done %s463, 128
        $region68: #{tpu_custom_call.1} parent=63 // pred_fallthru
          _
        %s471 = sand.u32 %s35, 1
        %s472 = scalar_lea.sflag [#allocation6], %s471
        %s473 = sand.u32 %s69, 1
        %s474 = smul.addr %s473, 8
        %s475 = scalar_lea.vmem [#allocation5], %s474
        // Predicated region
        $region69: #{tpu_custom_call.1} parent=63 // pred_check
          %p476 = pneg %p82
        $region70: #{tpu_custom_call.1} parent=63 // pred_check_branch
          %478 = sbr.rel (%p476) target = $region72
        $region71: #{tpu_custom_call.1} parent=63 // pred_region
          %479 = dma.done %s472, 128
        $region72: #{tpu_custom_call.1} parent=63 // pred_fallthru
          _
        // Predicated region
        $region73: #{tpu_custom_call.1} parent=63 // pred_check
          %p480 = pneg %p103
        $region74: #{tpu_custom_call.1} parent=63 // pred_check_branch
          %482 = sbr.rel (%p480) target = $region76
        $region75: #{tpu_custom_call.1} parent=63 // pred_region
          %483 = dma.done [#allocation6], 3072
        $region76: #{tpu_custom_call.1} parent=63 // pred_fallthru
          _
        // Predicated region
        $region77: #{tpu_custom_call.1} parent=63 // pred_check
          %p484 = pneg %p124
        $region78: #{tpu_custom_call.1} parent=63 // pred_check_branch
          %486 = sbr.rel (%p484) target = $region80
        $region79: #{tpu_custom_call.1} parent=63 // pred_region
          %487 = dma.done [#allocation9], 48
        $region80: #{tpu_custom_call.1} parent=63 // pred_fallthru
          _
        // Predicated region
        $region81: #{tpu_custom_call.1} parent=63 // pred_check
          %p488 = pneg %p145
        $region82: #{tpu_custom_call.1} parent=63 // pred_check_branch
          %490 = sbr.rel (%p488) target = $region84
        $region83: #{tpu_custom_call.1} parent=63 // pred_region
          %491 = dma.done [#allocation9], 320
        $region84: #{tpu_custom_call.1} parent=63 // pred_fallthru
          _
        // Predicated region
        $region85: #{tpu_custom_call.1} parent=63 // pred_check
          %p492 = pneg %p166
        $region86: #{tpu_custom_call.1} parent=63 // pred_check_branch
          %494 = sbr.rel (%p492) target = $region88
        $region87: #{tpu_custom_call.1} parent=63 // pred_region
          %495 = dma.done [#allocation12], 3072
        $region88: #{tpu_custom_call.1} parent=63 // pred_fallthru
          _
        // Predicated region
        $region89: #{tpu_custom_call.1} parent=63 // pred_check
          %p496 = pneg %p187
        $region90: #{tpu_custom_call.1} parent=63 // pred_check_branch
          %498 = sbr.rel (%p496) target = $region92
        $region91: #{tpu_custom_call.1} parent=63 // pred_region
          %499 = dma.done [#allocation12], 48
        $region92: #{tpu_custom_call.1} parent=63 // pred_fallthru
          _
        // Predicated region
        $region93: #{tpu_custom_call.1} parent=63 // pred_check
          %p500 = pneg %p208
        $region94: #{tpu_custom_call.1} parent=63 // pred_check_branch
          %502 = sbr.rel (%p500) target = $region96
        $region95: #{tpu_custom_call.1} parent=63 // pred_region
          %503 = dma.done [#allocation15], 320
        $region96: #{tpu_custom_call.1} parent=63 // pred_fallthru
          _
        // Predicated region
        $region97: #{tpu_custom_call.1} parent=63 // pred_check
          %p504 = pneg %p229
        $region98: #{tpu_custom_call.1} parent=63 // pred_check_branch
          %506 = sbr.rel (%p504) target = $region100
        $region99: #{tpu_custom_call.1} parent=63 // pred_region
          %507 = dma.done [#allocation15], 1024
        $region100: #{tpu_custom_call.1} parent=63 // pred_fallthru
          _
        // Predicated region
        $region101: #{tpu_custom_call.1} parent=63 // pred_check
          %p508 = pneg %p250
        $region102: #{tpu_custom_call.1} parent=63 // pred_check_branch
          %510 = sbr.rel (%p508) target = $region104
        $region103: #{tpu_custom_call.1} parent=63 // pred_region
          %511 = dma.done [#allocation18], 1024
        $region104: #{tpu_custom_call.1} parent=63 // pred_fallthru
          _
        %s512 = sand.u32 %s43, 1
        %s513 = scalar_lea.sflag [#allocation3], %s512
        %s514 = sand.u32 %s43, 1
        %s515 = smul.addr %s514, 8
        %s516 = scalar_lea.vmem [#allocation2], %s515
        %p517 = pneg %p56
        %p518 = pneg %p53
        %s519 = sand.u32 %s35, 1
        %s520 = scalar_lea.sflag [#allocation6], %s519
        %s521 = sand.u32 %s69, 1
        %s522 = smul.addr %s521, 8
        %s523 = scalar_lea.vmem [#allocation5], %s522
        %p524 = pneg %p82
        %p525 = pneg %p79
        %p526 = pneg %p103
        %p527 = pneg %p100
        %p528 = pneg %p124
        %p529 = pneg %p121
        %p530 = pneg %p145
        %p531 = pneg %p142
        %p532 = pneg %p166
        %p533 = pneg %p163
        %p534 = pneg %p187
        %p535 = pneg %p184
        %p536 = pneg %p208
        %p537 = pneg %p205
        %p538 = pneg %p229
        %p539 = pneg %p226
        %p540 = pneg %p250
        %p541 = pneg %p247
        %p542 = pneg %p271
        %p543 = pneg %p268
        %p544 = pneg %p297
        %p545 = pneg %p294
        %s546 = sand.u32 %s284, 1
        %s547 = scalar_lea.sflag [#allocation4], %s546
        %s548 = sand.u32 %s284, 1
        %s549 = smul.addr %s548, 8
        %s550 = scalar_lea.vmem [#allocation19], %s549
        %v552 = vld [vmem:[%s466] sm:$0xff]
        %v553 = vld [vmem:[%s475] sm:$0xff]
        %v554 = vld [vmem:[%s10] sm:$0xff]
        %v555 = vld [vmem:[%s10 + $0x8] sm:$0x7]
        %v556 = vlaneseq
        %v557 = vshrl.u32 %v556, 7
        %v558 = vlaneseq
        %v559 = vand.u32 %v558, 127
        %vm560 = vcmp.gt.s32.totalorder %v559, %v557
        %v561 = vsel %vm560, -1e+30, 0.0
        %v562 = vpack.c.bf16 %v552, %v552
        %v563 = vld [vmem:[#allocation7] sm:$0xff]
        %v564 = vld [vmem:[#allocation7 + $0x8] sm:$0xf]
        %v565 = vld [vmem:[#allocation7 + $0xc] sm:$0xff]
        %v566 = vld [vmem:[#allocation7 + $0x14] sm:$0xf]
        %v567 = vld [vmem:[#allocation7 + $0x18] sm:$0xff]
        %v568 = vld [vmem:[#allocation7 + $0x20] sm:$0xf]
        %v569 = vld [vmem:[#allocation7 + $0x24] sm:$0xff]
        %v570 = vld [vmem:[#allocation7 + $0x2c] sm:$0xf]
        %v571 = vld [vmem:[#allocation7 + $0x30] sm:$0xff]
        %v572 = vld [vmem:[#allocation7 + $0x38] sm:$0xf]
        %v573 = vld [vmem:[#allocation7 + $0x3c] sm:$0xff]
        %v574 = vld [vmem:[#allocation7 + $0x44] sm:$0xf]
        %v575 = vld [vmem:[#allocation7 + $0x48] sm:$0xff]
        %v576 = vld [vmem:[#allocation7 + $0x50] sm:$0xf]
        %v577 = vld [vmem:[#allocation7 + $0x54] sm:$0xff]
        %v578 = vld [vmem:[#allocation7 + $0x5c] sm:$0xf]
        %v579 = vld [vmem:[#allocation7 + $0x60] sm:$0xff]
        %v580 = vld [vmem:[#allocation7 + $0x68] sm:$0xf]
        %v581 = vld [vmem:[#allocation7 + $0x6c] sm:$0xff]
        %v582 = vld [vmem:[#allocation7 + $0x74] sm:$0xf]
        %v583 = vld [vmem:[#allocation7 + $0x78] sm:$0xff]
        %v584 = vld [vmem:[#allocation7 + $0x80] sm:$0xf]
        %v585 = vld [vmem:[#allocation7 + $0x84] sm:$0xff]
        %v586 = vld [vmem:[#allocation7 + $0x8c] sm:$0xf]
        %v587 = vld [vmem:[#allocation7 + $0x90] sm:$0xff]
        %v588 = vld [vmem:[#allocation7 + $0x98] sm:$0xf]
        %v589 = vld [vmem:[#allocation7 + $0x9c] sm:$0xff]
        %v590 = vld [vmem:[#allocation7 + $0xa4] sm:$0xf]
        %v591 = vld [vmem:[#allocation7 + $0xa8] sm:$0xff]
        %v592 = vld [vmem:[#allocation7 + $0xb0] sm:$0xf]
        %v593 = vld [vmem:[#allocation7 + $0xb4] sm:$0xff]
        %v594 = vld [vmem:[#allocation7 + $0xbc] sm:$0xf]
        %v595 = vld [vmem:[#allocation8] sm:$0x7]
        %v597 = vlaneseq
        %v598 = vshrl.u32 %v597, 7
        %v599 = vsub.s32 0, %v598
        %v600 = vrot.slane %v595, %v599
        %v601 = vlaneseq
        %v602 = vshrl.u32 %v601, 7
        %v603 = vsub.s32 1, %v602
        %v604 = vrot.slane %v595, %v603
        %v605 = vlaneseq
        %v606 = vshrl.u32 %v605, 7
        %v607 = vsub.s32 2, %v606
        %v608 = vrot.slane %v595, %v607
        %v644 = vunpack.c.l.b16 %v563
        %v645 = vunpack.c.h.b16 %v563
        %v646 = vunpack.c.l.b16 %v564
        %v647 = vunpack.c.l.b16 %v565
        %v648 = vunpack.c.h.b16 %v565
        %v649 = vunpack.c.l.b16 %v566
        %v650 = vunpack.c.l.b16 %v567
        %v651 = vunpack.c.h.b16 %v567
        %v652 = vunpack.c.l.b16 %v568
        %v653 = vunpack.c.l.b16 %v569
        %v654 = vunpack.c.h.b16 %v569
        %v655 = vunpack.c.l.b16 %v570
        %v656 = vunpack.c.l.b16 %v571
        %v657 = vunpack.c.h.b16 %v571
        %v658 = vunpack.c.l.b16 %v572
        %v659 = vunpack.c.l.b16 %v573
        %v660 = vunpack.c.h.b16 %v573
        %v661 = vunpack.c.l.b16 %v574
        %v662 = vunpack.c.l.b16 %v575
        %v663 = vunpack.c.h.b16 %v575
        %v664 = vunpack.c.l.b16 %v576
        %v665 = vunpack.c.l.b16 %v577
        %v666 = vunpack.c.h.b16 %v577
        %v667 = vunpack.c.l.b16 %v578
        %v668 = vunpack.c.l.b16 %v579
        %v669 = vunpack.c.h.b16 %v579
        %v670 = vunpack.c.l.b16 %v580
        %v671 = vunpack.c.l.b16 %v581
        %v672 = vunpack.c.h.b16 %v581
        %v673 = vunpack.c.l.b16 %v582
        %v674 = vunpack.c.l.b16 %v583
        %v675 = vunpack.c.h.b16 %v583
        %v676 = vunpack.c.l.b16 %v584
        %v677 = vunpack.c.l.b16 %v585
        %v678 = vunpack.c.h.b16 %v585
        %v679 = vunpack.c.l.b16 %v586
        %v680 = vunpack.c.l.b16 %v587
        %v681 = vunpack.c.h.b16 %v587
        %v682 = vunpack.c.l.b16 %v588
        %v683 = vunpack.c.l.b16 %v589
        %v684 = vunpack.c.h.b16 %v589
        %v685 = vunpack.c.l.b16 %v590
        %v686 = vunpack.c.l.b16 %v591
        %v687 = vunpack.c.h.b16 %v591
        %v688 = vunpack.c.l.b16 %v592
        %v689 = vunpack.c.l.b16 %v593
        %v690 = vunpack.c.h.b16 %v593
        %v691 = vunpack.c.l.b16 %v594
        %v692 = vpack.c.b16 %v647, %v644
        %v693 = vpack.c.b16 %v648, %v645
        %v694 = vpack.c.b16 %v649, %v646
        %v695 = vpack.c.b16 %v653, %v650
        %v696 = vpack.c.b16 %v654, %v651
        %v697 = vpack.c.b16 %v655, %v652
        %v698 = vpack.c.b16 %v659, %v656
        %v699 = vpack.c.b16 %v660, %v657
        %v700 = vpack.c.b16 %v661, %v658
        %v701 = vpack.c.b16 %v665, %v662
        %v702 = vpack.c.b16 %v666, %v663
        %v703 = vpack.c.b16 %v667, %v664
        %v704 = vpack.c.b16 %v671, %v668
        %v705 = vpack.c.b16 %v672, %v669
        %v706 = vpack.c.b16 %v673, %v670
        %v707 = vpack.c.b16 %v677, %v674
        %v708 = vpack.c.b16 %v678, %v675
        %v709 = vpack.c.b16 %v679, %v676
        %v710 = vpack.c.b16 %v683, %v680
        %v711 = vpack.c.b16 %v684, %v681
        %v712 = vpack.c.b16 %v685, %v682
        %v713 = vpack.c.b16 %v689, %v686
        %v714 = vpack.c.b16 %v690, %v687
        %v715 = vpack.c.b16 %v691, %v688
        %740 = vmatprep.subr.bf16.mxu0 %v714
        %741 = vmatpush1.bf16.msra.mxu0 %v713
        %742 = vmatprep.subr.bf16.mxu0 %v711
        %743 = vmatpush1.bf16.msra.mxu0 %v710
        %744 = vmatprep.subr.bf16.mxu0 %v708
        %745 = vmatpush1.bf16.msra.mxu0 %v707
        %746 = vmatprep.subr.bf16.mxu0 %v705
        %747 = vmatpush1.bf16.msra.mxu0 %v704
        %748 = vmatprep.subr.bf16.mxu0 %v702
        %749 = vmatpush1.bf16.msra.mxu0 %v701
        %750 = vmatprep.subr.bf16.mxu0 %v699
        %751 = vmatpush1.bf16.msra.mxu0 %v698
        %752 = vmatprep.subr.bf16.mxu0 %v696
        %753 = vmatpush1.bf16.msra.mxu0 %v695
        %754 = vmatprep.subr.bf16.mxu0 %v693
        %755 = vmatpush1.bf16.msra.mxu0 %v692
        %756 = vmatprep.subr.bf16.mxu0 0
        %757 = vmatpush2.bf16.msra.mxu0 0
        %758 = vmatprep.subr.bf16.mxu0 0
        %759 = vmatpush2.bf16.msra.mxu0 0
        %760 = vmatprep.subr.bf16.mxu0 0
        %761 = vmatpush2.bf16.msra.mxu0 0
        %762 = vmatprep.subr.bf16.mxu0 0
        %763 = vmatpush2.bf16.msra.mxu0 0
        %764 = vmatprep.subr.bf16.mxu0 0
        %765 = vmatpush2.bf16.msra.mxu0 0
        %766 = vmatprep.subr.bf16.mxu0 0
        %767 = vmatpush2.bf16.msra.mxu0 0
        %768 = vmatprep.subr.bf16.mxu0 0
        %769 = vmatpush2.bf16.msra.mxu0 0
        %770 = vmatprep.subr.bf16.mxu0 0
        %771 = vmatpush2.bf16.msra.mxu0 0
        %772 = vmatprep.mubr.bf16.mxu0 0
        %773 = vmatmul.mubr.bf16.gmra.mxu0 %v562
        %v774 = vpop.f32.mrf.mxu0
        %v775 = vadd.f32 %v600, %v774
        %v776 = vpop.f32.mrf.mxu0
        %v777 = vadd.f32 %v604, %v776
        %v778 = vpop.f32.mrf.mxu0
        %v779 = vpop.f32.mrf.mxu0
        %780 = vdwg.mxu0
        %781 = vmatprep.subr.bf16.mxu0 0
        %782 = vmatpush1.bf16.msra.mxu0 %v715
        %783 = vmatprep.subr.bf16.mxu0 0
        %784 = vmatpush1.bf16.msra.mxu0 %v712
        %785 = vmatprep.subr.bf16.mxu0 0
        %786 = vmatpush1.bf16.msra.mxu0 %v709
        %787 = vmatprep.subr.bf16.mxu0 0
        %788 = vmatpush1.bf16.msra.mxu0 %v706
        %789 = vmatprep.subr.bf16.mxu0 0
        %790 = vmatpush1.bf16.msra.mxu0 %v703
        %791 = vmatprep.subr.bf16.mxu0 0
        %792 = vmatpush1.bf16.msra.mxu0 %v700
        %793 = vmatprep.subr.bf16.mxu0 0
        %794 = vmatpush1.bf16.msra.mxu0 %v697
        %795 = vmatprep.subr.bf16.mxu0 0
        %796 = vmatpush1.bf16.msra.mxu0 %v694
        %797 = vmatprep.subr.bf16.mxu0 0
        %798 = vmatpush2.bf16.msra.mxu0 0
        %799 = vmatprep.subr.bf16.mxu0 0
        %800 = vmatpush2.bf16.msra.mxu0 0
        %801 = vmatprep.subr.bf16.mxu0 0
        %802 = vmatpush2.bf16.msra.mxu0 0
        %803 = vmatprep.subr.bf16.mxu0 0
        %804 = vmatpush2.bf16.msra.mxu0 0
        %805 = vmatprep.subr.bf16.mxu0 0
        %806 = vmatpush2.bf16.msra.mxu0 0
        %807 = vmatprep.subr.bf16.mxu0 0
        %808 = vmatpush2.bf16.msra.mxu0 0
        %809 = vmatprep.subr.bf16.mxu0 0
        %810 = vmatpush2.bf16.msra.mxu0 0
        %811 = vmatprep.subr.bf16.mxu0 0
        %812 = vmatpush2.bf16.msra.mxu0 0
        %813 = vmatprep.mubr.bf16.mxu0 0
        %814 = vmatmul.mubr.bf16.gmra.mxu0 %v562
        %v815 = vpop.f32.mrf.mxu0
        %v816 = vadd.f32 %v608, %v815
        %v817 = vpop.f32.mrf.mxu0
        %v818 = vpop.f32.mrf.mxu0
        %v819 = vpop.f32.mrf.mxu0
        %820 = vdwg.mxu0
        %v821 = vld [vmem:[#allocation10] sm:$0xf]
        %v822 = vld [vmem:[#allocation10 + $0x4] sm:$0xf]
        %v823 = vld [vmem:[#allocation10 + $0x8] sm:$0xf]
        %v824 = vld [vmem:[#allocation10 + $0xc] sm:$0xf]
        %v825 = vld [vmem:[#allocation10 + $0x10] sm:$0xf]
        %v826 = vpack.c.bf16 %v775, %v775
        %v827 = vpack.c.bf16 %v777, %v777
        %v828 = vpack.c.bf16 %v816, %v816
        %vm829 = vcmask 64512
        %v831 = vsel %vm829, %v826, 0
        %v834 = vsel %vm829, %v827, 0
        %836 = vmatprep.subr.bf16.mxu0 0
        %837 = vmatpush1.bf16.xpose.msra.mxu0 0
        %838 = vmatprep.subr.bf16.mxu0 0
        %839 = vmatpush1.bf16.xpose.msra.mxu0 0
        %840 = vmatprep.subr.bf16.mxu0 0
        %841 = vmatpush1.bf16.xpose.msra.mxu0 0
        %842 = vmatprep.subr.bf16.mxu0 0
        %843 = vmatpush1.bf16.xpose.msra.mxu0 0
        %844 = vmatprep.subr.bf16.mxu0 0
        %845 = vmatpush1.bf16.xpose.msra.mxu0 0
        %846 = vmatprep.subr.bf16.mxu0 0
        %847 = vmatpush1.bf16.xpose.msra.mxu0 0
        %848 = vmatprep.subr.bf16.mxu0 0
        %849 = vmatpush1.bf16.xpose.msra.mxu0 0
        %850 = vmatprep.subr.bf16.mxu0 0
        %851 = vmatpush1.bf16.xpose.msra.mxu0 %v834
        %852 = vmatprep.subr.bf16.mxu0 0
        %853 = vmatpush2.bf16.xpose.msra.mxu0 0
        %854 = vmatprep.subr.bf16.mxu0 0
        %855 = vmatpush2.bf16.xpose.msra.mxu0 0
        %856 = vmatprep.subr.bf16.mxu0 0
        %857 = vmatpush2.bf16.xpose.msra.mxu0 0
        %858 = vmatprep.subr.bf16.mxu0 0
        %859 = vmatpush2.bf16.xpose.msra.mxu0 0
        %860 = vmatprep.subr.bf16.mxu0 0
        %861 = vmatpush2.bf16.xpose.msra.mxu0 0
        %862 = vmatprep.subr.bf16.mxu0 0
        %863 = vmatpush2.bf16.xpose.msra.mxu0 0
        %864 = vmatprep.subr.bf16.mxu0 0
        %865 = vmatpush2.bf16.xpose.msra.mxu0 0
        %866 = vmatprep.subr.bf16.mxu0 0
        %867 = vmatpush2.bf16.xpose.msra.mxu0 0
        %868 = vmatprep.mubr.bf16.mxu0 0
        %869 = vmatmul.mubr.bf16.gmra.mxu0 %v831
        %v870 = vpop.f32.mrf.mxu0
        %v871 = vadd.f32 0.0, %v870
        %v872 = vpop.f32.mrf.mxu0
        %v873 = vpop.f32.mrf.mxu0
        %v874 = vpop.f32.mrf.mxu0
        %875 = vdwg.mxu0
        %v876 = vmul.f32 %v871, 0.70710677
        %v877 = vadd.f32 %v876, %v561
        %v878 = vsel %vm829, %v877, -inf
        %879 = vmax.xlane.f32.xlu0 %v878
        %v880 = vpop.xlane.xlu0 %879
        %v881 = vsub.f32 %v877, %v880
        %v882 = vmul.f32 %v881, 1.442695
        %v883 = vpow.pop %v882
        %v884 = vsel %vm829, %v883, 0.0
        %885 = vadd.xlane.f32.xlu0 %v884
        %v886 = vpop.xlane.xlu0 %885
        %v887 = vrcp.pop %v886
        %v888 = vmul.f32 %v883, %v887
        %v889 = vpack.c.bf16 %v888, %v888
        %v891 = vsel %vm829, %v889, 0
        %vm893 = vcmask 1043456
        %v895 = vsel %vm893, %v828, 0
        %897 = vmatprep.subr.bf16.mxu0 0
        %898 = vmatpush1.bf16.msra.mxu0 0
        %899 = vmatprep.subr.bf16.mxu0 0
        %900 = vmatpush1.bf16.msra.mxu0 0
        %901 = vmatprep.subr.bf16.mxu0 0
        %902 = vmatpush1.bf16.msra.mxu0 0
        %903 = vmatprep.subr.bf16.mxu0 0
        %904 = vmatpush1.bf16.msra.mxu0 0
        %905 = vmatprep.subr.bf16.mxu0 0
        %906 = vmatpush1.bf16.msra.mxu0 0
        %907 = vmatprep.subr.bf16.mxu0 0
        %908 = vmatpush1.bf16.msra.mxu0 0
        %909 = vmatprep.subr.bf16.mxu0 0
        %910 = vmatpush1.bf16.msra.mxu0 0
        %911 = vmatprep.subr.bf16.mxu0 0
        %912 = vmatpush1.bf16.msra.mxu0 %v895
        %913 = vmatprep.subr.bf16.mxu0 0
        %914 = vmatpush2.bf16.msra.mxu0 0
        %915 = vmatprep.subr.bf16.mxu0 0
        %916 = vmatpush2.bf16.msra.mxu0 0
        %917 = vmatprep.subr.bf16.mxu0 0
        %918 = vmatpush2.bf16.msra.mxu0 0
        %919 = vmatprep.subr.bf16.mxu0 0
        %920 = vmatpush2.bf16.msra.mxu0 0
        %921 = vmatprep.subr.bf16.mxu0 0
        %922 = vmatpush2.bf16.msra.mxu0 0
        %923 = vmatprep.subr.bf16.mxu0 0
        %924 = vmatpush2.bf16.msra.mxu0 0
        %925 = vmatprep.subr.bf16.mxu0 0
        %926 = vmatpush2.bf16.msra.mxu0 0
        %927 = vmatprep.subr.bf16.mxu0 0
        %928 = vmatpush2.bf16.msra.mxu0 0
        %929 = vmatprep.mubr.bf16.mxu0 0
        %930 = vmatmul.mubr.bf16.gmra.mxu0 %v891
        %v931 = vpop.f32.mrf.mxu0
        %v932 = vadd.f32 0.0, %v931
        %v933 = vpop.f32.mrf.mxu0
        %v934 = vpop.f32.mrf.mxu0
        %v935 = vpop.f32.mrf.mxu0
        %936 = vdwg.mxu0
        %938 = vrot.lane.b32.xlu0 %v826, 120
        %v939 = vpop.permute.xlu0 %938
        %941 = vrot.lane.b32.xlu0 %v827, 120
        %v942 = vpop.permute.xlu0 %941
        %v944 = vsel %vm829, %v939, 0
        %v947 = vsel %vm829, %v942, 0
        %949 = vmatprep.subr.bf16.mxu0 0
        %950 = vmatpush1.bf16.xpose.msra.mxu0 0
        %951 = vmatprep.subr.bf16.mxu0 0
        %952 = vmatpush1.bf16.xpose.msra.mxu0 0
        %953 = vmatprep.subr.bf16.mxu0 0
        %954 = vmatpush1.bf16.xpose.msra.mxu0 0
        %955 = vmatprep.subr.bf16.mxu0 0
        %956 = vmatpush1.bf16.xpose.msra.mxu0 0
        %957 = vmatprep.subr.bf16.mxu0 0
        %958 = vmatpush1.bf16.xpose.msra.mxu0 0
        %959 = vmatprep.subr.bf16.mxu0 0
        %960 = vmatpush1.bf16.xpose.msra.mxu0 0
        %961 = vmatprep.subr.bf16.mxu0 0
        %962 = vmatpush1.bf16.xpose.msra.mxu0 0
        %963 = vmatprep.subr.bf16.mxu0 0
        %964 = vmatpush1.bf16.xpose.msra.mxu0 %v947
        %965 = vmatprep.subr.bf16.mxu0 0
        %966 = vmatpush2.bf16.xpose.msra.mxu0 0
        %967 = vmatprep.subr.bf16.mxu0 0
        %968 = vmatpush2.bf16.xpose.msra.mxu0 0
        %969 = vmatprep.subr.bf16.mxu0 0
        %970 = vmatpush2.bf16.xpose.msra.mxu0 0
        %971 = vmatprep.subr.bf16.mxu0 0
        %972 = vmatpush2.bf16.xpose.msra.mxu0 0
        %973 = vmatprep.subr.bf16.mxu0 0
        %974 = vmatpush2.bf16.xpose.msra.mxu0 0
        %975 = vmatprep.subr.bf16.mxu0 0
        %976 = vmatpush2.bf16.xpose.msra.mxu0 0
        %977 = vmatprep.subr.bf16.mxu0 0
        %978 = vmatpush2.bf16.xpose.msra.mxu0 0
        %979 = vmatprep.subr.bf16.mxu0 0
        %980 = vmatpush2.bf16.xpose.msra.mxu0 0
        %981 = vmatprep.mubr.bf16.mxu0 0
        %982 = vmatmul.mubr.bf16.gmra.mxu0 %v944
        %v983 = vpop.f32.mrf.mxu0
        %v984 = vadd.f32 0.0, %v983
        %v985 = vpop.f32.mrf.mxu0
        %v986 = vpop.f32.mrf.mxu0
        %v987 = vpop.f32.mrf.mxu0
        %988 = vdwg.mxu0
        %v989 = vmul.f32 %v984, 0.70710677
        %v990 = vadd.f32 %v989, %v561
        %v991 = vsel %vm829, %v990, -inf
        %992 = vmax.xlane.f32.xlu0 %v991
        %v993 = vpop.xlane.xlu0 %992
        %v994 = vsub.f32 %v990, %v993
        %v995 = vmul.f32 %v994, 1.442695
        %v996 = vpow.pop %v995
        %v997 = vsel %vm829, %v996, 0.0
        %998 = vadd.xlane.f32.xlu0 %v997
        %v999 = vpop.xlane.xlu0 %998
        %v1000 = vrcp.pop %v999
        %v1001 = vmul.f32 %v996, %v1000
        %v1002 = vpack.c.bf16 %v1001, %v1001
        %1004 = vrot.lane.b32.xlu0 %v828, 120
        %v1005 = vpop.permute.xlu0 %1004
        %v1007 = vsel %vm829, %v1002, 0
        %v1010 = vsel %vm893, %v1005, 0
        %1012 = vmatprep.subr.bf16.mxu0 0
        %1013 = vmatpush1.bf16.msra.mxu0 0
        %1014 = vmatprep.subr.bf16.mxu0 0
        %1015 = vmatpush1.bf16.msra.mxu0 0
        %1016 = vmatprep.subr.bf16.mxu0 0
        %1017 = vmatpush1.bf16.msra.mxu0 0
        %1018 = vmatprep.subr.bf16.mxu0 0
        %1019 = vmatpush1.bf16.msra.mxu0 0
        %1020 = vmatprep.subr.bf16.mxu0 0
        %1021 = vmatpush1.bf16.msra.mxu0 0
        %1022 = vmatprep.subr.bf16.mxu0 0
        %1023 = vmatpush1.bf16.msra.mxu0 0
        %1024 = vmatprep.subr.bf16.mxu0 0
        %1025 = vmatpush1.bf16.msra.mxu0 0
        %1026 = vmatprep.subr.bf16.mxu0 0
        %1027 = vmatpush1.bf16.msra.mxu0 %v1010
        %1028 = vmatprep.subr.bf16.mxu0 0
        %1029 = vmatpush2.bf16.msra.mxu0 0
        %1030 = vmatprep.subr.bf16.mxu0 0
        %1031 = vmatpush2.bf16.msra.mxu0 0
        %1032 = vmatprep.subr.bf16.mxu0 0
        %1033 = vmatpush2.bf16.msra.mxu0 0
        %1034 = vmatprep.subr.bf16.mxu0 0
        %1035 = vmatpush2.bf16.msra.mxu0 0
        %1036 = vmatprep.subr.bf16.mxu0 0
        %1037 = vmatpush2.bf16.msra.mxu0 0
        %1038 = vmatprep.subr.bf16.mxu0 0
        %1039 = vmatpush2.bf16.msra.mxu0 0
        %1040 = vmatprep.subr.bf16.mxu0 0
        %1041 = vmatpush2.bf16.msra.mxu0 0
        %1042 = vmatprep.subr.bf16.mxu0 0
        %1043 = vmatpush2.bf16.msra.mxu0 0
        %1044 = vmatprep.mubr.bf16.mxu0 0
        %1045 = vmatmul.mubr.bf16.gmra.mxu0 %v1007
        %v1046 = vpop.f32.mrf.mxu0
        %v1047 = vadd.f32 0.0, %v1046
        %v1048 = vpop.f32.mrf.mxu0
        %v1049 = vpop.f32.mrf.mxu0
        %v1050 = vpop.f32.mrf.mxu0
        %1051 = vdwg.mxu0
        %1052 = vrot.lane.b32.xlu0 %v826, 112
        %v1053 = vpop.permute.xlu0 %1052
        %1054 = vrot.lane.b32.xlu0 %v827, 112
        %v1055 = vpop.permute.xlu0 %1054
        %v1057 = vsel %vm829, %v1053, 0
        %v1060 = vsel %vm829, %v1055, 0
        %1062 = vmatprep.subr.bf16.mxu0 0
        %1063 = vmatpush1.bf16.xpose.msra.mxu0 0
        %1064 = vmatprep.subr.bf16.mxu0 0
        %1065 = vmatpush1.bf16.xpose.msra.mxu0 0
        %1066 = vmatprep.subr.bf16.mxu0 0
        %1067 = vmatpush1.bf16.xpose.msra.mxu0 0
        %1068 = vmatprep.subr.bf16.mxu0 0
        %1069 = vmatpush1.bf16.xpose.msra.mxu0 0
        %1070 = vmatprep.subr.bf16.mxu0 0
        %1071 = vmatpush1.bf16.xpose.msra.mxu0 0
        %1072 = vmatprep.subr.bf16.mxu0 0
        %1073 = vmatpush1.bf16.xpose.msra.mxu0 0
        %1074 = vmatprep.subr.bf16.mxu0 0
        %1075 = vmatpush1.bf16.xpose.msra.mxu0 0
        %1076 = vmatprep.subr.bf16.mxu0 0
        %1077 = vmatpush1.bf16.xpose.msra.mxu0 %v1060
        %1078 = vmatprep.subr.bf16.mxu0 0
        %1079 = vmatpush2.bf16.xpose.msra.mxu0 0
        %1080 = vmatprep.subr.bf16.mxu0 0
        %1081 = vmatpush2.bf16.xpose.msra.mxu0 0
        %1082 = vmatprep.subr.bf16.mxu0 0
        %1083 = vmatpush2.bf16.xpose.msra.mxu0 0
        %1084 = vmatprep.subr.bf16.mxu0 0
        %1085 = vmatpush2.bf16.xpose.msra.mxu0 0
        %1086 = vmatprep.subr.bf16.mxu0 0
        %1087 = vmatpush2.bf16.xpose.msra.mxu0 0
        %1088 = vmatprep.subr.bf16.mxu0 0
        %1089 = vmatpush2.bf16.xpose.msra.mxu0 0
        %1090 = vmatprep.subr.bf16.mxu0 0
        %1091 = vmatpush2.bf16.xpose.msra.mxu0 0
        %1092 = vmatprep.subr.bf16.mxu0 0
        %1093 = vmatpush2.bf16.xpose.msra.mxu0 0
        %1094 = vmatprep.mubr.bf16.mxu0 0
        %1095 = vmatmul.mubr.bf16.gmra.mxu0 %v1057
        %v1096 = vpop.f32.mrf.mxu0
        %v1097 = vadd.f32 0.0, %v1096
        %v1098 = vpop.f32.mrf.mxu0
        %v1099 = vpop.f32.mrf.mxu0
        %v1100 = vpop.f32.mrf.mxu0
        %1101 = vdwg.mxu0
        %v1102 = vmul.f32 %v1097, 0.70710677
        %v1103 = vadd.f32 %v1102, %v561
        %v1104 = vsel %vm829, %v1103, -inf
        %1105 = vmax.xlane.f32.xlu0 %v1104
        %v1106 = vpop.xlane.xlu0 %1105
        %v1107 = vsub.f32 %v1103, %v1106
        %v1108 = vmul.f32 %v1107, 1.442695
        %v1109 = vpow.pop %v1108
        %v1110 = vsel %vm829, %v1109, 0.0
        %1111 = vadd.xlane.f32.xlu0 %v1110
        %v1112 = vpop.xlane.xlu0 %1111
        %v1113 = vrcp.pop %v1112
        %v1114 = vmul.f32 %v1109, %v1113
        %v1115 = vpack.c.bf16 %v1114, %v1114
        %1116 = vrot.lane.b32.xlu0 %v828, 112
        %v1117 = vpop.permute.xlu0 %1116
        %v1119 = vsel %vm829, %v1115, 0
        %v1122 = vsel %vm893, %v1117, 0
        %1124 = vmatprep.subr.bf16.mxu0 0
        %1125 = vmatpush1.bf16.msra.mxu0 0
        %1126 = vmatprep.subr.bf16.mxu0 0
        %1127 = vmatpush1.bf16.msra.mxu0 0
        %1128 = vmatprep.subr.bf16.mxu0 0
        %1129 = vmatpush1.bf16.msra.mxu0 0
        %1130 = vmatprep.subr.bf16.mxu0 0
        %1131 = vmatpush1.bf16.msra.mxu0 0
        %1132 = vmatprep.subr.bf16.mxu0 0
        %1133 = vmatpush1.bf16.msra.mxu0 0
        %1134 = vmatprep.subr.bf16.mxu0 0
        %1135 = vmatpush1.bf16.msra.mxu0 0
        %1136 = vmatprep.subr.bf16.mxu0 0
        %1137 = vmatpush1.bf16.msra.mxu0 0
        %1138 = vmatprep.subr.bf16.mxu0 0
        %1139 = vmatpush1.bf16.msra.mxu0 %v1122
        %1140 = vmatprep.subr.bf16.mxu0 0
        %1141 = vmatpush2.bf16.msra.mxu0 0
        %1142 = vmatprep.subr.bf16.mxu0 0
        %1143 = vmatpush2.bf16.msra.mxu0 0
        %1144 = vmatprep.subr.bf16.mxu0 0
        %1145 = vmatpush2.bf16.msra.mxu0 0
        %1146 = vmatprep.subr.bf16.mxu0 0
        %1147 = vmatpush2.bf16.msra.mxu0 0
        %1148 = vmatprep.subr.bf16.mxu0 0
        %1149 = vmatpush2.bf16.msra.mxu0 0
        %1150 = vmatprep.subr.bf16.mxu0 0
        %1151 = vmatpush2.bf16.msra.mxu0 0
        %1152 = vmatprep.subr.bf16.mxu0 0
        %1153 = vmatpush2.bf16.msra.mxu0 0
        %1154 = vmatprep.subr.bf16.mxu0 0
        %1155 = vmatpush2.bf16.msra.mxu0 0
        %1156 = vmatprep.mubr.bf16.mxu0 0
        %1157 = vmatmul.mubr.bf16.gmra.mxu0 %v1119
        %v1158 = vpop.f32.mrf.mxu0
        %v1159 = vadd.f32 0.0, %v1158
        %v1160 = vpop.f32.mrf.mxu0
        %v1161 = vpop.f32.mrf.mxu0
        %v1162 = vpop.f32.mrf.mxu0
        %1163 = vdwg.mxu0
        %1164 = vrot.lane.b32.xlu0 %v826, 104
        %v1165 = vpop.permute.xlu0 %1164
        %1166 = vrot.lane.b32.xlu0 %v827, 104
        %v1167 = vpop.permute.xlu0 %1166
        %v1169 = vsel %vm829, %v1165, 0
        %v1172 = vsel %vm829, %v1167, 0
        %1174 = vmatprep.subr.bf16.mxu0 0
        %1175 = vmatpush1.bf16.xpose.msra.mxu0 0
        %1176 = vmatprep.subr.bf16.mxu0 0
        %1177 = vmatpush1.bf16.xpose.msra.mxu0 0
        %1178 = vmatprep.subr.bf16.mxu0 0
        %1179 = vmatpush1.bf16.xpose.msra.mxu0 0
        %1180 = vmatprep.subr.bf16.mxu0 0
        %1181 = vmatpush1.bf16.xpose.msra.mxu0 0
        %1182 = vmatprep.subr.bf16.mxu0 0
        %1183 = vmatpush1.bf16.xpose.msra.mxu0 0
        %1184 = vmatprep.subr.bf16.mxu0 0
        %1185 = vmatpush1.bf16.xpose.msra.mxu0 0
        %1186 = vmatprep.subr.bf16.mxu0 0
        %1187 = vmatpush1.bf16.xpose.msra.mxu0 0
        %1188 = vmatprep.subr.bf16.mxu0 0
        %1189 = vmatpush1.bf16.xpose.msra.mxu0 %v1172
        %1190 = vmatprep.subr.bf16.mxu0 0
        %1191 = vmatpush2.bf16.xpose.msra.mxu0 0
        %1192 = vmatprep.subr.bf16.mxu0 0
        %1193 = vmatpush2.bf16.xpose.msra.mxu0 0
        %1194 = vmatprep.subr.bf16.mxu0 0
        %1195 = vmatpush2.bf16.xpose.msra.mxu0 0
        %1196 = vmatprep.subr.bf16.mxu0 0
        %1197 = vmatpush2.bf16.xpose.msra.mxu0 0
        %1198 = vmatprep.subr.bf16.mxu0 0
        %1199 = vmatpush2.bf16.xpose.msra.mxu0 0
        %1200 = vmatprep.subr.bf16.mxu0 0
        %1201 = vmatpush2.bf16.xpose.msra.mxu0 0
        %1202 = vmatprep.subr.bf16.mxu0 0
        %1203 = vmatpush2.bf16.xpose.msra.mxu0 0
        %1204 = vmatprep.subr.bf16.mxu0 0
        %1205 = vmatpush2.bf16.xpose.msra.mxu0 0
        %1206 = vmatprep.mubr.bf16.mxu0 0
        %1207 = vmatmul.mubr.bf16.gmra.mxu0 %v1169
        %v1208 = vpop.f32.mrf.mxu0
        %v1209 = vadd.f32 0.0, %v1208
        %v1210 = vpop.f32.mrf.mxu0
        %v1211 = vpop.f32.mrf.mxu0
        %v1212 = vpop.f32.mrf.mxu0
        %1213 = vdwg.mxu0
        %v1214 = vmul.f32 %v1209, 0.70710677
        %v1215 = vadd.f32 %v1214, %v561
        %v1216 = vsel %vm829, %v1215, -inf
        %1217 = vmax.xlane.f32.xlu0 %v1216
        %v1218 = vpop.xlane.xlu0 %1217
        %v1219 = vsub.f32 %v1215, %v1218
        %v1220 = vmul.f32 %v1219, 1.442695
        %v1221 = vpow.pop %v1220
        %v1222 = vsel %vm829, %v1221, 0.0
        %1223 = vadd.xlane.f32.xlu0 %v1222
        %v1224 = vpop.xlane.xlu0 %1223
        %v1225 = vrcp.pop %v1224
        %v1226 = vmul.f32 %v1221, %v1225
        %v1227 = vpack.c.bf16 %v1226, %v1226
        %1228 = vrot.lane.b32.xlu0 %v828, 104
        %v1229 = vpop.permute.xlu0 %1228
        %v1231 = vsel %vm829, %v1227, 0
        %v1234 = vsel %vm893, %v1229, 0
        %1236 = vmatprep.subr.bf16.mxu0 0
        %1237 = vmatpush1.bf16.msra.mxu0 0
        %1238 = vmatprep.subr.bf16.mxu0 0
        %1239 = vmatpush1.bf16.msra.mxu0 0
        %1240 = vmatprep.subr.bf16.mxu0 0
        %1241 = vmatpush1.bf16.msra.mxu0 0
        %1242 = vmatprep.subr.bf16.mxu0 0
        %1243 = vmatpush1.bf16.msra.mxu0 0
        %1244 = vmatprep.subr.bf16.mxu0 0
        %1245 = vmatpush1.bf16.msra.mxu0 0
        %1246 = vmatprep.subr.bf16.mxu0 0
        %1247 = vmatpush1.bf16.msra.mxu0 0
        %1248 = vmatprep.subr.bf16.mxu0 0
        %1249 = vmatpush1.bf16.msra.mxu0 0
        %1250 = vmatprep.subr.bf16.mxu0 0
        %1251 = vmatpush1.bf16.msra.mxu0 %v1234
        %1252 = vmatprep.subr.bf16.mxu0 0
        %1253 = vmatpush2.bf16.msra.mxu0 0
        %1254 = vmatprep.subr.bf16.mxu0 0
        %1255 = vmatpush2.bf16.msra.mxu0 0
        %1256 = vmatprep.subr.bf16.mxu0 0
        %1257 = vmatpush2.bf16.msra.mxu0 0
        %1258 = vmatprep.subr.bf16.mxu0 0
        %1259 = vmatpush2.bf16.msra.mxu0 0
        %1260 = vmatprep.subr.bf16.mxu0 0
        %1261 = vmatpush2.bf16.msra.mxu0 0
        %1262 = vmatprep.subr.bf16.mxu0 0
        %1263 = vmatpush2.bf16.msra.mxu0 0
        %1264 = vmatprep.subr.bf16.mxu0 0
        %1265 = vmatpush2.bf16.msra.mxu0 0
        %1266 = vmatprep.subr.bf16.mxu0 0
        %1267 = vmatpush2.bf16.msra.mxu0 0
        %1268 = vmatprep.mubr.bf16.mxu0 0
        %1269 = vmatmul.mubr.bf16.gmra.mxu0 %v1231
        %v1270 = vpop.f32.mrf.mxu0
        %v1271 = vadd.f32 0.0, %v1270
        %v1272 = vpop.f32.mrf.mxu0
        %v1273 = vpop.f32.mrf.mxu0
        %v1274 = vpop.f32.mrf.mxu0
        %1275 = vdwg.mxu0
        %1276 = vrot.lane.b32.xlu0 %v826, 96
        %v1277 = vpop.permute.xlu0 %1276
        %1278 = vrot.lane.b32.xlu0 %v827, 96
        %v1279 = vpop.permute.xlu0 %1278
        %v1281 = vsel %vm829, %v1277, 0
        %v1284 = vsel %vm829, %v1279, 0
        %1286 = vmatprep.subr.bf16.mxu0 0
        %1287 = vmatpush1.bf16.xpose.msra.mxu0 0
        %1288 = vmatprep.subr.bf16.mxu0 0
        %1289 = vmatpush1.bf16.xpose.msra.mxu0 0
        %1290 = vmatprep.subr.bf16.mxu0 0
        %1291 = vmatpush1.bf16.xpose.msra.mxu0 0
        %1292 = vmatprep.subr.bf16.mxu0 0
        %1293 = vmatpush1.bf16.xpose.msra.mxu0 0
        %1294 = vmatprep.subr.bf16.mxu0 0
        %1295 = vmatpush1.bf16.xpose.msra.mxu0 0
        %1296 = vmatprep.subr.bf16.mxu0 0
        %1297 = vmatpush1.bf16.xpose.msra.mxu0 0
        %1298 = vmatprep.subr.bf16.mxu0 0
        %1299 = vmatpush1.bf16.xpose.msra.mxu0 0
        %1300 = vmatprep.subr.bf16.mxu0 0
        %1301 = vmatpush1.bf16.xpose.msra.mxu0 %v1284
        %1302 = vmatprep.subr.bf16.mxu0 0
        %1303 = vmatpush2.bf16.xpose.msra.mxu0 0
        %1304 = vmatprep.subr.bf16.mxu0 0
        %1305 = vmatpush2.bf16.xpose.msra.mxu0 0
        %1306 = vmatprep.subr.bf16.mxu0 0
        %1307 = vmatpush2.bf16.xpose.msra.mxu0 0
        %1308 = vmatprep.subr.bf16.mxu0 0
        %1309 = vmatpush2.bf16.xpose.msra.mxu0 0
        %1310 = vmatprep.subr.bf16.mxu0 0
        %1311 = vmatpush2.bf16.xpose.msra.mxu0 0
        %1312 = vmatprep.subr.bf16.mxu0 0
        %1313 = vmatpush2.bf16.xpose.msra.mxu0 0
        %1314 = vmatprep.subr.bf16.mxu0 0
        %1315 = vmatpush2.bf16.xpose.msra.mxu0 0
        %1316 = vmatprep.subr.bf16.mxu0 0
        %1317 = vmatpush2.bf16.xpose.msra.mxu0 0
        %1318 = vmatprep.mubr.bf16.mxu0 0
        %1319 = vmatmul.mubr.bf16.gmra.mxu0 %v1281
        %v1320 = vpop.f32.mrf.mxu0
        %v1321 = vadd.f32 0.0, %v1320
        %v1322 = vpop.f32.mrf.mxu0
        %v1323 = vpop.f32.mrf.mxu0
        %v1324 = vpop.f32.mrf.mxu0
        %1325 = vdwg.mxu0
        %v1326 = vmul.f32 %v1321, 0.70710677
        %v1327 = vadd.f32 %v1326, %v561
        %v1328 = vsel %vm829, %v1327, -inf
        %1329 = vmax.xlane.f32.xlu0 %v1328
        %v1330 = vpop.xlane.xlu0 %1329
        %v1331 = vsub.f32 %v1327, %v1330
        %v1332 = vmul.f32 %v1331, 1.442695
        %v1333 = vpow.pop %v1332
        %v1334 = vsel %vm829, %v1333, 0.0
        %1335 = vadd.xlane.f32.xlu0 %v1334
        %v1336 = vpop.xlane.xlu0 %1335
        %v1337 = vrcp.pop %v1336
        %v1338 = vmul.f32 %v1333, %v1337
        %v1339 = vpack.c.bf16 %v1338, %v1338
        %1340 = vrot.lane.b32.xlu0 %v828, 96
        %v1341 = vpop.permute.xlu0 %1340
        %v1343 = vsel %vm829, %v1339, 0
        %v1346 = vsel %vm893, %v1341, 0
        %1348 = vmatprep.subr.bf16.mxu0 0
        %1349 = vmatpush1.bf16.msra.mxu0 0
        %1350 = vmatprep.subr.bf16.mxu0 0
        %1351 = vmatpush1.bf16.msra.mxu0 0
        %1352 = vmatprep.subr.bf16.mxu0 0
        %1353 = vmatpush1.bf16.msra.mxu0 0
        %1354 = vmatprep.subr.bf16.mxu0 0
        %1355 = vmatpush1.bf16.msra.mxu0 0
        %1356 = vmatprep.subr.bf16.mxu0 0
        %1357 = vmatpush1.bf16.msra.mxu0 0
        %1358 = vmatprep.subr.bf16.mxu0 0
        %1359 = vmatpush1.bf16.msra.mxu0 0
        %1360 = vmatprep.subr.bf16.mxu0 0
        %1361 = vmatpush1.bf16.msra.mxu0 0
        %1362 = vmatprep.subr.bf16.mxu0 0
        %1363 = vmatpush1.bf16.msra.mxu0 %v1346
        %1364 = vmatprep.subr.bf16.mxu0 0
        %1365 = vmatpush2.bf16.msra.mxu0 0
        %1366 = vmatprep.subr.bf16.mxu0 0
        %1367 = vmatpush2.bf16.msra.mxu0 0
        %1368 = vmatprep.subr.bf16.mxu0 0
        %1369 = vmatpush2.bf16.msra.mxu0 0
        %1370 = vmatprep.subr.bf16.mxu0 0
        %1371 = vmatpush2.bf16.msra.mxu0 0
        %1372 = vmatprep.subr.bf16.mxu0 0
        %1373 = vmatpush2.bf16.msra.mxu0 0
        %1374 = vmatprep.subr.bf16.mxu0 0
        %1375 = vmatpush2.bf16.msra.mxu0 0
        %1376 = vmatprep.subr.bf16.mxu0 0
        %1377 = vmatpush2.bf16.msra.mxu0 0
        %1378 = vmatprep.subr.bf16.mxu0 0
        %1379 = vmatpush2.bf16.msra.mxu0 0
        %1380 = vmatprep.mubr.bf16.mxu0 0
        %1381 = vmatmul.mubr.bf16.gmra.mxu0 %v1343
        %v1382 = vpop.f32.mrf.mxu0
        %v1383 = vadd.f32 0.0, %v1382
        %v1384 = vpop.f32.mrf.mxu0
        %v1385 = vpop.f32.mrf.mxu0
        %v1386 = vpop.f32.mrf.mxu0
        %1387 = vdwg.mxu0
        %1389 = vrot.lane.b32.xlu0 %v1047, 8
        %v1390 = vpop.permute.xlu0 %1389
        %1393 = vrot.lane.b32.xlu0 %v1159, 16
        %v1394 = vpop.permute.xlu0 %1393
        %1397 = vrot.lane.b32.xlu0 %v1271, 24
        %v1398 = vpop.permute.xlu0 %1397
        %1401 = vrot.lane.b32.xlu0 %v1383, 32
        %v1402 = vpop.permute.xlu0 %1401
        %v1404 = vsel %vm829, %v932, %v1390
        %vm1405 = vcmask 130048
        %v1406 = vsel %vm1405, %v1404, %v1394
        %vm1407 = vcmask 195584
        %v1408 = vsel %vm1407, %v1406, %v1398
        %vm1409 = vcmask 261120
        %v1410 = vsel %vm1409, %v1408, %v1402
        %v1411 = vpack.c.bf16 %v1410, %v1410
        %v1412 = vlaneseq
        %v1413 = vshrl.u32 %v1412, 7
        %v1414 = vsub.s32 0, %v1413
        %v1415 = vrot.slane %v554, %v1414
        %v1421 = vunpack.c.l.b16 %v821
        %v1422 = vunpack.c.l.b16 %v822
        %v1423 = vunpack.c.l.b16 %v823
        %v1424 = vunpack.c.l.b16 %v824
        %v1425 = vunpack.c.l.b16 %v825
        %v1426 = vpack.c.b16 %v1422, %v1421
        %v1427 = vpack.c.b16 %v1424, %v1423
        %v1428 = vpack.c.b16 %v1425, %v1425
        %vm1431 = vcmask 326656
        %v1433 = vsel %vm1431, %v1411, 0
        %v1436 = vsel %vm893, %v1428, 0
        %1438 = vmatprep.subr.bf16.mxu0 0
        %1439 = vmatpush1.bf16.msra.mxu0 0
        %1440 = vmatprep.subr.bf16.mxu0 0
        %1441 = vmatpush1.bf16.msra.mxu0 0
        %1442 = vmatprep.subr.bf16.mxu0 0
        %1443 = vmatpush1.bf16.msra.mxu0 0
        %1444 = vmatprep.subr.bf16.mxu0 0
        %1445 = vmatpush1.bf16.msra.mxu0 0
        %1446 = vmatprep.subr.bf16.mxu0 0
        %1447 = vmatpush1.bf16.msra.mxu0 0
        %1448 = vmatprep.subr.bf16.mxu0 0
        %1449 = vmatpush1.bf16.msra.mxu0 %v1436
        %1450 = vmatprep.subr.bf16.mxu0 0
        %1451 = vmatpush1.bf16.msra.mxu0 %v1427
        %1452 = vmatprep.subr.bf16.mxu0 0
        %1453 = vmatpush1.bf16.msra.mxu0 %v1426
        %1454 = vmatprep.subr.bf16.mxu0 0
        %1455 = vmatpush2.bf16.msra.mxu0 0
        %1456 = vmatprep.subr.bf16.mxu0 0
        %1457 = vmatpush2.bf16.msra.mxu0 0
        %1458 = vmatprep.subr.bf16.mxu0 0
        %1459 = vmatpush2.bf16.msra.mxu0 0
        %1460 = vmatprep.subr.bf16.mxu0 0
        %1461 = vmatpush2.bf16.msra.mxu0 0
        %1462 = vmatprep.subr.bf16.mxu0 0
        %1463 = vmatpush2.bf16.msra.mxu0 0
        %1464 = vmatprep.subr.bf16.mxu0 0
        %1465 = vmatpush2.bf16.msra.mxu0 0
        %1466 = vmatprep.subr.bf16.mxu0 0
        %1467 = vmatpush2.bf16.msra.mxu0 0
        %1468 = vmatprep.subr.bf16.mxu0 0
        %1469 = vmatpush2.bf16.msra.mxu0 0
        %1470 = vmatprep.mubr.bf16.mxu0 0
        %1471 = vmatmul.mubr.bf16.gmra.mxu0 %v1433
        %v1472 = vpop.f32.mrf.mxu0
        %v1473 = vadd.f32 %v1415, %v1472
        %v1474 = vpop.f32.mrf.mxu0
        %v1475 = vpop.f32.mrf.mxu0
        %v1476 = vpop.f32.mrf.mxu0
        %1477 = vdwg.mxu0
        %v1478 = vadd.f32 %v552, %v1473
        %v1479 = vlaneseq
        %v1480 = vshrl.u32 %v1479, 7
        %v1481 = vsub.s32 2, %v1480
        %v1482 = vrot.slane %v555, %v1481
        %v1483 = vmul.f32 %v1478, %v1482
        %1484 = vadd.xlane.f32.xlu0 %v1483
        %v1485 = vpop.xlane.xlu0 %1484
        %v1486 = vmul.f32 %v1485, 0.1
        %v1487 = vsub.f32 %v1478, %v1486
        %v1488 = vmul.f32 %v1487, %v1482
        %v1489 = vmul.f32 %v1488, %v1488
        %1490 = vadd.xlane.f32.xlu0 %v1489
        %v1491 = vpop.xlane.xlu0 %1490
        %v1492 = vmul.f32 %v1491, 0.1
        %v1493 = vadd.f32 %v1492, 1e-05
        %v1494 = vrsqrt.pop %v1493
        %v1495 = vmul.f32 %v1488, %v1494
        %v1496 = vlaneseq
        %v1497 = vshrl.u32 %v1496, 7
        %v1498 = vsub.s32 4, %v1497
        %v1499 = vrot.slane %v554, %v1498
        %v1500 = vmul.f32 %v1495, %v1499
        %v1501 = vlaneseq
        %v1502 = vshrl.u32 %v1501, 7
        %v1503 = vsub.s32 5, %v1502
        %v1504 = vrot.slane %v554, %v1503
        %v1505 = vadd.f32 %v1500, %v1504
        %v1506 = vpack.c.bf16 %v1505, %v1505
        %v1507 = vld [vmem:[#allocation11] sm:$0xf]
        %v1508 = vld [vmem:[#allocation11 + $0xc] sm:$0xf]
        %v1509 = vld [vmem:[#allocation11 + $0x18] sm:$0xf]
        %v1510 = vld [vmem:[#allocation11 + $0x24] sm:$0xf]
        %v1511 = vld [vmem:[#allocation11 + $0x30] sm:$0xf]
        %v1512 = vld [vmem:[#allocation11 + $0x3c] sm:$0xf]
        %v1513 = vld [vmem:[#allocation11 + $0x48] sm:$0xf]
        %v1514 = vld [vmem:[#allocation11 + $0x54] sm:$0xf]
        %v1515 = vld [vmem:[#allocation11 + $0x60] sm:$0xf]
        %v1516 = vld [vmem:[#allocation11 + $0x6c] sm:$0xf]
        %v1517 = vld [vmem:[#allocation11 + $0x78] sm:$0xf]
        %v1518 = vld [vmem:[#allocation11 + $0x84] sm:$0xf]
        %v1519 = vld [vmem:[#allocation11 + $0x90] sm:$0xf]
        %v1520 = vld [vmem:[#allocation11 + $0x9c] sm:$0xf]
        %v1521 = vld [vmem:[#allocation11 + $0xa8] sm:$0xf]
        %v1522 = vld [vmem:[#allocation11 + $0xb4] sm:$0xf]
        %v1523 = vld [vmem:[#allocation13] sm:$0x1]
        %v1525 = vlaneseq
        %v1526 = vshrl.u32 %v1525, 7
        %v1527 = vsub.s32 0, %v1526
        %v1528 = vrot.slane %v1523, %v1527
        %v1546 = vunpack.c.l.b16 %v1507
        %v1547 = vunpack.c.l.b16 %v1508
        %v1548 = vunpack.c.l.b16 %v1509
        %v1549 = vunpack.c.l.b16 %v1510
        %v1550 = vunpack.c.l.b16 %v1511
        %v1551 = vunpack.c.l.b16 %v1512
        %v1552 = vunpack.c.l.b16 %v1513
        %v1553 = vunpack.c.l.b16 %v1514
        %v1554 = vunpack.c.l.b16 %v1515
        %v1555 = vunpack.c.l.b16 %v1516
        %v1556 = vunpack.c.l.b16 %v1517
        %v1557 = vunpack.c.l.b16 %v1518
        %v1558 = vunpack.c.l.b16 %v1519
        %v1559 = vunpack.c.l.b16 %v1520
        %v1560 = vunpack.c.l.b16 %v1521
        %v1561 = vunpack.c.l.b16 %v1522
        %v1562 = vpack.c.b16 %v1547, %v1546
        %v1563 = vpack.c.b16 %v1549, %v1548
        %v1564 = vpack.c.b16 %v1551, %v1550
        %v1565 = vpack.c.b16 %v1553, %v1552
        %v1566 = vpack.c.b16 %v1555, %v1554
        %v1567 = vpack.c.b16 %v1557, %v1556
        %v1568 = vpack.c.b16 %v1559, %v1558
        %v1569 = vpack.c.b16 %v1561, %v1560
        %1578 = vmatprep.subr.bf16.mxu0 0
        %1579 = vmatpush1.bf16.msra.mxu0 %v1569
        %1580 = vmatprep.subr.bf16.mxu0 0
        %1581 = vmatpush1.bf16.msra.mxu0 %v1568
        %1582 = vmatprep.subr.bf16.mxu0 0
        %1583 = vmatpush1.bf16.msra.mxu0 %v1567
        %1584 = vmatprep.subr.bf16.mxu0 0
        %1585 = vmatpush1.bf16.msra.mxu0 %v1566
        %1586 = vmatprep.subr.bf16.mxu0 0
        %1587 = vmatpush1.bf16.msra.mxu0 %v1565
        %1588 = vmatprep.subr.bf16.mxu0 0
        %1589 = vmatpush1.bf16.msra.mxu0 %v1564
        %1590 = vmatprep.subr.bf16.mxu0 0
        %1591 = vmatpush1.bf16.msra.mxu0 %v1563
        %1592 = vmatprep.subr.bf16.mxu0 0
        %1593 = vmatpush1.bf16.msra.mxu0 %v1562
        %1594 = vmatprep.subr.bf16.mxu0 0
        %1595 = vmatpush2.bf16.msra.mxu0 0
        %1596 = vmatprep.subr.bf16.mxu0 0
        %1597 = vmatpush2.bf16.msra.mxu0 0
        %1598 = vmatprep.subr.bf16.mxu0 0
        %1599 = vmatpush2.bf16.msra.mxu0 0
        %1600 = vmatprep.subr.bf16.mxu0 0
        %1601 = vmatpush2.bf16.msra.mxu0 0
        %1602 = vmatprep.subr.bf16.mxu0 0
        %1603 = vmatpush2.bf16.msra.mxu0 0
        %1604 = vmatprep.subr.bf16.mxu0 0
        %1605 = vmatpush2.bf16.msra.mxu0 0
        %1606 = vmatprep.subr.bf16.mxu0 0
        %1607 = vmatpush2.bf16.msra.mxu0 0
        %1608 = vmatprep.subr.bf16.mxu0 0
        %1609 = vmatpush2.bf16.msra.mxu0 0
        %1610 = vmatprep.mubr.bf16.mxu0 0
        %1611 = vmatmul.mubr.bf16.gmra.mxu0 %v1506
        %v1612 = vpop.f32.mrf.mxu0
        %v1613 = vadd.f32 %v1528, %v1612
        %v1614 = vpop.f32.mrf.mxu0
        %v1615 = vpop.f32.mrf.mxu0
        %v1616 = vpop.f32.mrf.mxu0
        %1617 = vdwg.mxu0
        %v1618 = vpack.c.bf16 %v553, %v553
        %v1619 = vld [vmem:[#allocation11 + $0x4] sm:$0xff]
        %v1620 = vld [vmem:[#allocation11 + $0x10] sm:$0xff]
        %v1621 = vld [vmem:[#allocation11 + $0x1c] sm:$0xff]
        %v1622 = vld [vmem:[#allocation11 + $0x28] sm:$0xff]
        %v1623 = vld [vmem:[#allocation11 + $0x34] sm:$0xff]
        %v1624 = vld [vmem:[#allocation11 + $0x40] sm:$0xff]
        %v1625 = vld [vmem:[#allocation11 + $0x4c] sm:$0xff]
        %v1626 = vld [vmem:[#allocation11 + $0x58] sm:$0xff]
        %v1627 = vld [vmem:[#allocation11 + $0x64] sm:$0xff]
        %v1628 = vld [vmem:[#allocation11 + $0x70] sm:$0xff]
        %v1629 = vld [vmem:[#allocation11 + $0x7c] sm:$0xff]
        %v1630 = vld [vmem:[#allocation11 + $0x88] sm:$0xff]
        %v1631 = vld [vmem:[#allocation11 + $0x94] sm:$0xff]
        %v1632 = vld [vmem:[#allocation11 + $0xa0] sm:$0xff]
        %v1633 = vld [vmem:[#allocation11 + $0xac] sm:$0xff]
        %v1634 = vld [vmem:[#allocation11 + $0xb8] sm:$0xff]
        %v1635 = vld [vmem:[#allocation13 + $0x1] sm:$0x3]
        %v1637 = vlaneseq
        %v1638 = vshrl.u32 %v1637, 7
        %v1639 = vsub.s32 0, %v1638
        %v1640 = vrot.slane %v1635, %v1639
        %v1641 = vlaneseq
        %v1642 = vshrl.u32 %v1641, 7
        %v1643 = vsub.s32 1, %v1642
        %v1644 = vrot.slane %v1635, %v1643
        %v1663 = vunpack.c.l.b16 %v1619
        %v1664 = vunpack.c.h.b16 %v1619
        %v1665 = vunpack.c.l.b16 %v1620
        %v1666 = vunpack.c.h.b16 %v1620
        %v1667 = vunpack.c.l.b16 %v1621
        %v1668 = vunpack.c.h.b16 %v1621
        %v1669 = vunpack.c.l.b16 %v1622
        %v1670 = vunpack.c.h.b16 %v1622
        %v1671 = vunpack.c.l.b16 %v1623
        %v1672 = vunpack.c.h.b16 %v1623
        %v1673 = vunpack.c.l.b16 %v1624
        %v1674 = vunpack.c.h.b16 %v1624
        %v1675 = vunpack.c.l.b16 %v1625
        %v1676 = vunpack.c.h.b16 %v1625
        %v1677 = vunpack.c.l.b16 %v1626
        %v1678 = vunpack.c.h.b16 %v1626
        %v1679 = vunpack.c.l.b16 %v1627
        %v1680 = vunpack.c.h.b16 %v1627
        %v1681 = vunpack.c.l.b16 %v1628
        %v1682 = vunpack.c.h.b16 %v1628
        %v1683 = vunpack.c.l.b16 %v1629
        %v1684 = vunpack.c.h.b16 %v1629
        %v1685 = vunpack.c.l.b16 %v1630
        %v1686 = vunpack.c.h.b16 %v1630
        %v1687 = vunpack.c.l.b16 %v1631
        %v1688 = vunpack.c.h.b16 %v1631
        %v1689 = vunpack.c.l.b16 %v1632
        %v1690 = vunpack.c.h.b16 %v1632
        %v1691 = vunpack.c.l.b16 %v1633
        %v1692 = vunpack.c.h.b16 %v1633
        %v1693 = vunpack.c.l.b16 %v1634
        %v1694 = vunpack.c.h.b16 %v1634
        %v1695 = vpack.c.b16 %v1665, %v1663
        %v1696 = vpack.c.b16 %v1666, %v1664
        %v1697 = vpack.c.b16 %v1669, %v1667
        %v1698 = vpack.c.b16 %v1670, %v1668
        %v1699 = vpack.c.b16 %v1673, %v1671
        %v1700 = vpack.c.b16 %v1674, %v1672
        %v1701 = vpack.c.b16 %v1677, %v1675
        %v1702 = vpack.c.b16 %v1678, %v1676
        %v1703 = vpack.c.b16 %v1681, %v1679
        %v1704 = vpack.c.b16 %v1682, %v1680
        %v1705 = vpack.c.b16 %v1685, %v1683
        %v1706 = vpack.c.b16 %v1686, %v1684
        %v1707 = vpack.c.b16 %v1689, %v1687
        %v1708 = vpack.c.b16 %v1690, %v1688
        %v1709 = vpack.c.b16 %v1693, %v1691
        %v1710 = vpack.c.b16 %v1694, %v1692
        %1727 = vmatprep.subr.bf16.mxu0 %v1710
        %1728 = vmatpush1.bf16.msra.mxu0 %v1709
        %1729 = vmatprep.subr.bf16.mxu0 %v1708
        %1730 = vmatpush1.bf16.msra.mxu0 %v1707
        %1731 = vmatprep.subr.bf16.mxu0 %v1706
        %1732 = vmatpush1.bf16.msra.mxu0 %v1705
        %1733 = vmatprep.subr.bf16.mxu0 %v1704
        %1734 = vmatpush1.bf16.msra.mxu0 %v1703
        %1735 = vmatprep.subr.bf16.mxu0 %v1702
        %1736 = vmatpush1.bf16.msra.mxu0 %v1701
        %1737 = vmatprep.subr.bf16.mxu0 %v1700
        %1738 = vmatpush1.bf16.msra.mxu0 %v1699
        %1739 = vmatprep.subr.bf16.mxu0 %v1698
        %1740 = vmatpush1.bf16.msra.mxu0 %v1697
        %1741 = vmatprep.subr.bf16.mxu0 %v1696
        %1742 = vmatpush1.bf16.msra.mxu0 %v1695
        %1743 = vmatprep.subr.bf16.mxu0 0
        %1744 = vmatpush2.bf16.msra.mxu0 0
        %1745 = vmatprep.subr.bf16.mxu0 0
        %1746 = vmatpush2.bf16.msra.mxu0 0
        %1747 = vmatprep.subr.bf16.mxu0 0
        %1748 = vmatpush2.bf16.msra.mxu0 0
        %1749 = vmatprep.subr.bf16.mxu0 0
        %1750 = vmatpush2.bf16.msra.mxu0 0
        %1751 = vmatprep.subr.bf16.mxu0 0
        %1752 = vmatpush2.bf16.msra.mxu0 0
        %1753 = vmatprep.subr.bf16.mxu0 0
        %1754 = vmatpush2.bf16.msra.mxu0 0
        %1755 = vmatprep.subr.bf16.mxu0 0
        %1756 = vmatpush2.bf16.msra.mxu0 0
        %1757 = vmatprep.subr.bf16.mxu0 0
        %1758 = vmatpush2.bf16.msra.mxu0 0
        %1759 = vmatprep.mubr.bf16.mxu0 0
        %1760 = vmatmul.mubr.bf16.gmra.mxu0 %v1618
        %v1761 = vpop.f32.mrf.mxu0
        %v1762 = vadd.f32 %v1640, %v1761
        %v1763 = vpop.f32.mrf.mxu0
        %v1764 = vadd.f32 %v1644, %v1763
        %v1765 = vpop.f32.mrf.mxu0
        %v1766 = vpop.f32.mrf.mxu0
        %1767 = vdwg.mxu0
        %v1768 = vld [vmem:[#allocation14] sm:$0xf]
        %v1769 = vld [vmem:[#allocation14 + $0x4] sm:$0xf]
        %v1770 = vld [vmem:[#allocation14 + $0x8] sm:$0xf]
        %v1771 = vld [vmem:[#allocation14 + $0xc] sm:$0xf]
        %v1772 = vld [vmem:[#allocation14 + $0x10] sm:$0xf]
        %v1773 = vpack.c.bf16 %v1613, %v1613
        %v1774 = vpack.c.bf16 %v1762, %v1762
        %v1775 = vpack.c.bf16 %v1764, %v1764
        %v1777 = vsel %vm829, %v1773, 0
        %v1780 = vsel %vm829, %v1774, 0
        %1782 = vmatprep.subr.bf16.mxu0 0
        %1783 = vmatpush1.bf16.xpose.msra.mxu0 0
        %1784 = vmatprep.subr.bf16.mxu0 0
        %1785 = vmatpush1.bf16.xpose.msra.mxu0 0
        %1786 = vmatprep.subr.bf16.mxu0 0
        %1787 = vmatpush1.bf16.xpose.msra.mxu0 0
        %1788 = vmatprep.subr.bf16.mxu0 0
        %1789 = vmatpush1.bf16.xpose.msra.mxu0 0
        %1790 = vmatprep.subr.bf16.mxu0 0
        %1791 = vmatpush1.bf16.xpose.msra.mxu0 0
        %1792 = vmatprep.subr.bf16.mxu0 0
        %1793 = vmatpush1.bf16.xpose.msra.mxu0 0
        %1794 = vmatprep.subr.bf16.mxu0 0
        %1795 = vmatpush1.bf16.xpose.msra.mxu0 0
        %1796 = vmatprep.subr.bf16.mxu0 0
        %1797 = vmatpush1.bf16.xpose.msra.mxu0 %v1780
        %1798 = vmatprep.subr.bf16.mxu0 0
        %1799 = vmatpush2.bf16.xpose.msra.mxu0 0
        %1800 = vmatprep.subr.bf16.mxu0 0
        %1801 = vmatpush2.bf16.xpose.msra.mxu0 0
        %1802 = vmatprep.subr.bf16.mxu0 0
        %1803 = vmatpush2.bf16.xpose.msra.mxu0 0
        %1804 = vmatprep.subr.bf16.mxu0 0
        %1805 = vmatpush2.bf16.xpose.msra.mxu0 0
        %1806 = vmatprep.subr.bf16.mxu0 0
        %1807 = vmatpush2.bf16.xpose.msra.mxu0 0
        %1808 = vmatprep.subr.bf16.mxu0 0
        %1809 = vmatpush2.bf16.xpose.msra.mxu0 0
        %1810 = vmatprep.subr.bf16.mxu0 0
        %1811 = vmatpush2.bf16.xpose.msra.mxu0 0
        %1812 = vmatprep.subr.bf16.mxu0 0
        %1813 = vmatpush2.bf16.xpose.msra.mxu0 0
        %1814 = vmatprep.mubr.bf16.mxu0 0
        %1815 = vmatmul.mubr.bf16.gmra.mxu0 %v1777
        %v1816 = vpop.f32.mrf.mxu0
        %v1817 = vadd.f32 0.0, %v1816
        %v1818 = vpop.f32.mrf.mxu0
        %v1819 = vpop.f32.mrf.mxu0
        %v1820 = vpop.f32.mrf.mxu0
        %1821 = vdwg.mxu0
        %v1822 = vmul.f32 %v1817, 0.70710677
        %v1823 = vsel %vm829, %v1822, -inf
        %1824 = vmax.xlane.f32.xlu0 %v1823
        %v1825 = vpop.xlane.xlu0 %1824
        %v1826 = vsub.f32 %v1822, %v1825
        %v1827 = vmul.f32 %v1826, 1.442695
        %v1828 = vpow.pop %v1827
        %v1829 = vsel %vm829, %v1828, 0.0
        %1830 = vadd.xlane.f32.xlu0 %v1829
        %v1831 = vpop.xlane.xlu0 %1830
        %v1832 = vrcp.pop %v1831
        %v1833 = vmul.f32 %v1828, %v1832
        %v1834 = vpack.c.bf16 %v1833, %v1833
        %v1836 = vsel %vm829, %v1834, 0
        %v1839 = vsel %vm893, %v1775, 0
        %1841 = vmatprep.subr.bf16.mxu0 0
        %1842 = vmatpush1.bf16.msra.mxu0 0
        %1843 = vmatprep.subr.bf16.mxu0 0
        %1844 = vmatpush1.bf16.msra.mxu0 0
        %1845 = vmatprep.subr.bf16.mxu0 0
        %1846 = vmatpush1.bf16.msra.mxu0 0
        %1847 = vmatprep.subr.bf16.mxu0 0
        %1848 = vmatpush1.bf16.msra.mxu0 0
        %1849 = vmatprep.subr.bf16.mxu0 0
        %1850 = vmatpush1.bf16.msra.mxu0 0
        %1851 = vmatprep.subr.bf16.mxu0 0
        %1852 = vmatpush1.bf16.msra.mxu0 0
        %1853 = vmatprep.subr.bf16.mxu0 0
        %1854 = vmatpush1.bf16.msra.mxu0 0
        %1855 = vmatprep.subr.bf16.mxu0 0
        %1856 = vmatpush1.bf16.msra.mxu0 %v1839
        %1857 = vmatprep.subr.bf16.mxu0 0
        %1858 = vmatpush2.bf16.msra.mxu0 0
        %1859 = vmatprep.subr.bf16.mxu0 0
        %1860 = vmatpush2.bf16.msra.mxu0 0
        %1861 = vmatprep.subr.bf16.mxu0 0
        %1862 = vmatpush2.bf16.msra.mxu0 0
        %1863 = vmatprep.subr.bf16.mxu0 0
        %1864 = vmatpush2.bf16.msra.mxu0 0
        %1865 = vmatprep.subr.bf16.mxu0 0
        %1866 = vmatpush2.bf16.msra.mxu0 0
        %1867 = vmatprep.subr.bf16.mxu0 0
        %1868 = vmatpush2.bf16.msra.mxu0 0
        %1869 = vmatprep.subr.bf16.mxu0 0
        %1870 = vmatpush2.bf16.msra.mxu0 0
        %1871 = vmatprep.subr.bf16.mxu0 0
        %1872 = vmatpush2.bf16.msra.mxu0 0
        %1873 = vmatprep.mubr.bf16.mxu0 0
        %1874 = vmatmul.mubr.bf16.gmra.mxu0 %v1836
        %v1875 = vpop.f32.mrf.mxu0
        %v1876 = vadd.f32 0.0, %v1875
        %v1877 = vpop.f32.mrf.mxu0
        %v1878 = vpop.f32.mrf.mxu0
        %v1879 = vpop.f32.mrf.mxu0
        %1880 = vdwg.mxu0
        %1882 = vrot.lane.b32.xlu0 %v1773, 120
        %v1883 = vpop.permute.xlu0 %1882
        %1885 = vrot.lane.b32.xlu0 %v1774, 120
        %v1886 = vpop.permute.xlu0 %1885
        %v1888 = vsel %vm829, %v1883, 0
        %v1891 = vsel %vm829, %v1886, 0
        %1893 = vmatprep.subr.bf16.mxu0 0
        %1894 = vmatpush1.bf16.xpose.msra.mxu0 0
        %1895 = vmatprep.subr.bf16.mxu0 0
        %1896 = vmatpush1.bf16.xpose.msra.mxu0 0
        %1897 = vmatprep.subr.bf16.mxu0 0
        %1898 = vmatpush1.bf16.xpose.msra.mxu0 0
        %1899 = vmatprep.subr.bf16.mxu0 0
        %1900 = vmatpush1.bf16.xpose.msra.mxu0 0
        %1901 = vmatprep.subr.bf16.mxu0 0
        %1902 = vmatpush1.bf16.xpose.msra.mxu0 0
        %1903 = vmatprep.subr.bf16.mxu0 0
        %1904 = vmatpush1.bf16.xpose.msra.mxu0 0
        %1905 = vmatprep.subr.bf16.mxu0 0
        %1906 = vmatpush1.bf16.xpose.msra.mxu0 0
        %1907 = vmatprep.subr.bf16.mxu0 0
        %1908 = vmatpush1.bf16.xpose.msra.mxu0 %v1891
        %1909 = vmatprep.subr.bf16.mxu0 0
        %1910 = vmatpush2.bf16.xpose.msra.mxu0 0
        %1911 = vmatprep.subr.bf16.mxu0 0
        %1912 = vmatpush2.bf16.xpose.msra.mxu0 0
        %1913 = vmatprep.subr.bf16.mxu0 0
        %1914 = vmatpush2.bf16.xpose.msra.mxu0 0
        %1915 = vmatprep.subr.bf16.mxu0 0
        %1916 = vmatpush2.bf16.xpose.msra.mxu0 0
        %1917 = vmatprep.subr.bf16.mxu0 0
        %1918 = vmatpush2.bf16.xpose.msra.mxu0 0
        %1919 = vmatprep.subr.bf16.mxu0 0
        %1920 = vmatpush2.bf16.xpose.msra.mxu0 0
        %1921 = vmatprep.subr.bf16.mxu0 0
        %1922 = vmatpush2.bf16.xpose.msra.mxu0 0
        %1923 = vmatprep.subr.bf16.mxu0 0
        %1924 = vmatpush2.bf16.xpose.msra.mxu0 0
        %1925 = vmatprep.mubr.bf16.mxu0 0
        %1926 = vmatmul.mubr.bf16.gmra.mxu0 %v1888
        %v1927 = vpop.f32.mrf.mxu0
        %v1928 = vadd.f32 0.0, %v1927
        %v1929 = vpop.f32.mrf.mxu0
        %v1930 = vpop.f32.mrf.mxu0
        %v1931 = vpop.f32.mrf.mxu0
        %1932 = vdwg.mxu0
        %v1933 = vmul.f32 %v1928, 0.70710677
        %v1934 = vsel %vm829, %v1933, -inf
        %1935 = vmax.xlane.f32.xlu0 %v1934
        %v1936 = vpop.xlane.xlu0 %1935
        %v1937 = vsub.f32 %v1933, %v1936
        %v1938 = vmul.f32 %v1937, 1.442695
        %v1939 = vpow.pop %v1938
        %v1940 = vsel %vm829, %v1939, 0.0
        %1941 = vadd.xlane.f32.xlu0 %v1940
        %v1942 = vpop.xlane.xlu0 %1941
        %v1943 = vrcp.pop %v1942
        %v1944 = vmul.f32 %v1939, %v1943
        %v1945 = vpack.c.bf16 %v1944, %v1944
        %1947 = vrot.lane.b32.xlu0 %v1775, 120
        %v1948 = vpop.permute.xlu0 %1947
        %v1950 = vsel %vm829, %v1945, 0
        %v1953 = vsel %vm893, %v1948, 0
        %1955 = vmatprep.subr.bf16.mxu0 0
        %1956 = vmatpush1.bf16.msra.mxu0 0
        %1957 = vmatprep.subr.bf16.mxu0 0
        %1958 = vmatpush1.bf16.msra.mxu0 0
        %1959 = vmatprep.subr.bf16.mxu0 0
        %1960 = vmatpush1.bf16.msra.mxu0 0
        %1961 = vmatprep.subr.bf16.mxu0 0
        %1962 = vmatpush1.bf16.msra.mxu0 0
        %1963 = vmatprep.subr.bf16.mxu0 0
        %1964 = vmatpush1.bf16.msra.mxu0 0
        %1965 = vmatprep.subr.bf16.mxu0 0
        %1966 = vmatpush1.bf16.msra.mxu0 0
        %1967 = vmatprep.subr.bf16.mxu0 0
        %1968 = vmatpush1.bf16.msra.mxu0 0
        %1969 = vmatprep.subr.bf16.mxu0 0
        %1970 = vmatpush1.bf16.msra.mxu0 %v1953
        %1971 = vmatprep.subr.bf16.mxu0 0
        %1972 = vmatpush2.bf16.msra.mxu0 0
        %1973 = vmatprep.subr.bf16.mxu0 0
        %1974 = vmatpush2.bf16.msra.mxu0 0
        %1975 = vmatprep.subr.bf16.mxu0 0
        %1976 = vmatpush2.bf16.msra.mxu0 0
        %1977 = vmatprep.subr.bf16.mxu0 0
        %1978 = vmatpush2.bf16.msra.mxu0 0
        %1979 = vmatprep.subr.bf16.mxu0 0
        %1980 = vmatpush2.bf16.msra.mxu0 0
        %1981 = vmatprep.subr.bf16.mxu0 0
        %1982 = vmatpush2.bf16.msra.mxu0 0
        %1983 = vmatprep.subr.bf16.mxu0 0
        %1984 = vmatpush2.bf16.msra.mxu0 0
        %1985 = vmatprep.subr.bf16.mxu0 0
        %1986 = vmatpush2.bf16.msra.mxu0 0
        %1987 = vmatprep.mubr.bf16.mxu0 0
        %1988 = vmatmul.mubr.bf16.gmra.mxu0 %v1950
        %v1989 = vpop.f32.mrf.mxu0
        %v1990 = vadd.f32 0.0, %v1989
        %v1991 = vpop.f32.mrf.mxu0
        %v1992 = vpop.f32.mrf.mxu0
        %v1993 = vpop.f32.mrf.mxu0
        %1994 = vdwg.mxu0
        %1995 = vrot.lane.b32.xlu0 %v1773, 112
        %v1996 = vpop.permute.xlu0 %1995
        %1997 = vrot.lane.b32.xlu0 %v1774, 112
        %v1998 = vpop.permute.xlu0 %1997
        %v2000 = vsel %vm829, %v1996, 0
        %v2003 = vsel %vm829, %v1998, 0
        %2005 = vmatprep.subr.bf16.mxu0 0
        %2006 = vmatpush1.bf16.xpose.msra.mxu0 0
        %2007 = vmatprep.subr.bf16.mxu0 0
        %2008 = vmatpush1.bf16.xpose.msra.mxu0 0
        %2009 = vmatprep.subr.bf16.mxu0 0
        %2010 = vmatpush1.bf16.xpose.msra.mxu0 0
        %2011 = vmatprep.subr.bf16.mxu0 0
        %2012 = vmatpush1.bf16.xpose.msra.mxu0 0
        %2013 = vmatprep.subr.bf16.mxu0 0
        %2014 = vmatpush1.bf16.xpose.msra.mxu0 0
        %2015 = vmatprep.subr.bf16.mxu0 0
        %2016 = vmatpush1.bf16.xpose.msra.mxu0 0
        %2017 = vmatprep.subr.bf16.mxu0 0
        %2018 = vmatpush1.bf16.xpose.msra.mxu0 0
        %2019 = vmatprep.subr.bf16.mxu0 0
        %2020 = vmatpush1.bf16.xpose.msra.mxu0 %v2003
        %2021 = vmatprep.subr.bf16.mxu0 0
        %2022 = vmatpush2.bf16.xpose.msra.mxu0 0
        %2023 = vmatprep.subr.bf16.mxu0 0
        %2024 = vmatpush2.bf16.xpose.msra.mxu0 0
        %2025 = vmatprep.subr.bf16.mxu0 0
        %2026 = vmatpush2.bf16.xpose.msra.mxu0 0
        %2027 = vmatprep.subr.bf16.mxu0 0
        %2028 = vmatpush2.bf16.xpose.msra.mxu0 0
        %2029 = vmatprep.subr.bf16.mxu0 0
        %2030 = vmatpush2.bf16.xpose.msra.mxu0 0
        %2031 = vmatprep.subr.bf16.mxu0 0
        %2032 = vmatpush2.bf16.xpose.msra.mxu0 0
        %2033 = vmatprep.subr.bf16.mxu0 0
        %2034 = vmatpush2.bf16.xpose.msra.mxu0 0
        %2035 = vmatprep.subr.bf16.mxu0 0
        %2036 = vmatpush2.bf16.xpose.msra.mxu0 0
        %2037 = vmatprep.mubr.bf16.mxu0 0
        %2038 = vmatmul.mubr.bf16.gmra.mxu0 %v2000
        %v2039 = vpop.f32.mrf.mxu0
        %v2040 = vadd.f32 0.0, %v2039
        %v2041 = vpop.f32.mrf.mxu0
        %v2042 = vpop.f32.mrf.mxu0
        %v2043 = vpop.f32.mrf.mxu0
        %2044 = vdwg.mxu0
        %v2045 = vmul.f32 %v2040, 0.70710677
        %v2046 = vsel %vm829, %v2045, -inf
        %2047 = vmax.xlane.f32.xlu0 %v2046
        %v2048 = vpop.xlane.xlu0 %2047
        %v2049 = vsub.f32 %v2045, %v2048
        %v2050 = vmul.f32 %v2049, 1.442695
        %v2051 = vpow.pop %v2050
        %v2052 = vsel %vm829, %v2051, 0.0
        %2053 = vadd.xlane.f32.xlu0 %v2052
        %v2054 = vpop.xlane.xlu0 %2053
        %v2055 = vrcp.pop %v2054
        %v2056 = vmul.f32 %v2051, %v2055
        %v2057 = vpack.c.bf16 %v2056, %v2056
        %2058 = vrot.lane.b32.xlu0 %v1775, 112
        %v2059 = vpop.permute.xlu0 %2058
        %v2061 = vsel %vm829, %v2057, 0
        %v2064 = vsel %vm893, %v2059, 0
        %2066 = vmatprep.subr.bf16.mxu0 0
        %2067 = vmatpush1.bf16.msra.mxu0 0
        %2068 = vmatprep.subr.bf16.mxu0 0
        %2069 = vmatpush1.bf16.msra.mxu0 0
        %2070 = vmatprep.subr.bf16.mxu0 0
        %2071 = vmatpush1.bf16.msra.mxu0 0
        %2072 = vmatprep.subr.bf16.mxu0 0
        %2073 = vmatpush1.bf16.msra.mxu0 0
        %2074 = vmatprep.subr.bf16.mxu0 0
        %2075 = vmatpush1.bf16.msra.mxu0 0
        %2076 = vmatprep.subr.bf16.mxu0 0
        %2077 = vmatpush1.bf16.msra.mxu0 0
        %2078 = vmatprep.subr.bf16.mxu0 0
        %2079 = vmatpush1.bf16.msra.mxu0 0
        %2080 = vmatprep.subr.bf16.mxu0 0
        %2081 = vmatpush1.bf16.msra.mxu0 %v2064
        %2082 = vmatprep.subr.bf16.mxu0 0
        %2083 = vmatpush2.bf16.msra.mxu0 0
        %2084 = vmatprep.subr.bf16.mxu0 0
        %2085 = vmatpush2.bf16.msra.mxu0 0
        %2086 = vmatprep.subr.bf16.mxu0 0
        %2087 = vmatpush2.bf16.msra.mxu0 0
        %2088 = vmatprep.subr.bf16.mxu0 0
        %2089 = vmatpush2.bf16.msra.mxu0 0
        %2090 = vmatprep.subr.bf16.mxu0 0
        %2091 = vmatpush2.bf16.msra.mxu0 0
        %2092 = vmatprep.subr.bf16.mxu0 0
        %2093 = vmatpush2.bf16.msra.mxu0 0
        %2094 = vmatprep.subr.bf16.mxu0 0
        %2095 = vmatpush2.bf16.msra.mxu0 0
        %2096 = vmatprep.subr.bf16.mxu0 0
        %2097 = vmatpush2.bf16.msra.mxu0 0
        %2098 = vmatprep.mubr.bf16.mxu0 0
        %2099 = vmatmul.mubr.bf16.gmra.mxu0 %v2061
        %v2100 = vpop.f32.mrf.mxu0
        %v2101 = vadd.f32 0.0, %v2100
        %v2102 = vpop.f32.mrf.mxu0
        %v2103 = vpop.f32.mrf.mxu0
        %v2104 = vpop.f32.mrf.mxu0
        %2105 = vdwg.mxu0
        %2106 = vrot.lane.b32.xlu0 %v1773, 104
        %v2107 = vpop.permute.xlu0 %2106
        %2108 = vrot.lane.b32.xlu0 %v1774, 104
        %v2109 = vpop.permute.xlu0 %2108
        %v2111 = vsel %vm829, %v2107, 0
        %v2114 = vsel %vm829, %v2109, 0
        %2116 = vmatprep.subr.bf16.mxu0 0
        %2117 = vmatpush1.bf16.xpose.msra.mxu0 0
        %2118 = vmatprep.subr.bf16.mxu0 0
        %2119 = vmatpush1.bf16.xpose.msra.mxu0 0
        %2120 = vmatprep.subr.bf16.mxu0 0
        %2121 = vmatpush1.bf16.xpose.msra.mxu0 0
        %2122 = vmatprep.subr.bf16.mxu0 0
        %2123 = vmatpush1.bf16.xpose.msra.mxu0 0
        %2124 = vmatprep.subr.bf16.mxu0 0
        %2125 = vmatpush1.bf16.xpose.msra.mxu0 0
        %2126 = vmatprep.subr.bf16.mxu0 0
        %2127 = vmatpush1.bf16.xpose.msra.mxu0 0
        %2128 = vmatprep.subr.bf16.mxu0 0
        %2129 = vmatpush1.bf16.xpose.msra.mxu0 0
        %2130 = vmatprep.subr.bf16.mxu0 0
        %2131 = vmatpush1.bf16.xpose.msra.mxu0 %v2114
        %2132 = vmatprep.subr.bf16.mxu0 0
        %2133 = vmatpush2.bf16.xpose.msra.mxu0 0
        %2134 = vmatprep.subr.bf16.mxu0 0
        %2135 = vmatpush2.bf16.xpose.msra.mxu0 0
        %2136 = vmatprep.subr.bf16.mxu0 0
        %2137 = vmatpush2.bf16.xpose.msra.mxu0 0
        %2138 = vmatprep.subr.bf16.mxu0 0
        %2139 = vmatpush2.bf16.xpose.msra.mxu0 0
        %2140 = vmatprep.subr.bf16.mxu0 0
        %2141 = vmatpush2.bf16.xpose.msra.mxu0 0
        %2142 = vmatprep.subr.bf16.mxu0 0
        %2143 = vmatpush2.bf16.xpose.msra.mxu0 0
        %2144 = vmatprep.subr.bf16.mxu0 0
        %2145 = vmatpush2.bf16.xpose.msra.mxu0 0
        %2146 = vmatprep.subr.bf16.mxu0 0
        %2147 = vmatpush2.bf16.xpose.msra.mxu0 0
        %2148 = vmatprep.mubr.bf16.mxu0 0
        %2149 = vmatmul.mubr.bf16.gmra.mxu0 %v2111
        %v2150 = vpop.f32.mrf.mxu0
        %v2151 = vadd.f32 0.0, %v2150
        %v2152 = vpop.f32.mrf.mxu0
        %v2153 = vpop.f32.mrf.mxu0
        %v2154 = vpop.f32.mrf.mxu0
        %2155 = vdwg.mxu0
        %v2156 = vmul.f32 %v2151, 0.70710677
        %v2157 = vsel %vm829, %v2156, -inf
        %2158 = vmax.xlane.f32.xlu0 %v2157
        %v2159 = vpop.xlane.xlu0 %2158
        %v2160 = vsub.f32 %v2156, %v2159
        %v2161 = vmul.f32 %v2160, 1.442695
        %v2162 = vpow.pop %v2161
        %v2163 = vsel %vm829, %v2162, 0.0
        %2164 = vadd.xlane.f32.xlu0 %v2163
        %v2165 = vpop.xlane.xlu0 %2164
        %v2166 = vrcp.pop %v2165
        %v2167 = vmul.f32 %v2162, %v2166
        %v2168 = vpack.c.bf16 %v2167, %v2167
        %2169 = vrot.lane.b32.xlu0 %v1775, 104
        %v2170 = vpop.permute.xlu0 %2169
        %v2172 = vsel %vm829, %v2168, 0
        %v2175 = vsel %vm893, %v2170, 0
        %2177 = vmatprep.subr.bf16.mxu0 0
        %2178 = vmatpush1.bf16.msra.mxu0 0
        %2179 = vmatprep.subr.bf16.mxu0 0
        %2180 = vmatpush1.bf16.msra.mxu0 0
        %2181 = vmatprep.subr.bf16.mxu0 0
        %2182 = vmatpush1.bf16.msra.mxu0 0
        %2183 = vmatprep.subr.bf16.mxu0 0
        %2184 = vmatpush1.bf16.msra.mxu0 0
        %2185 = vmatprep.subr.bf16.mxu0 0
        %2186 = vmatpush1.bf16.msra.mxu0 0
        %2187 = vmatprep.subr.bf16.mxu0 0
        %2188 = vmatpush1.bf16.msra.mxu0 0
        %2189 = vmatprep.subr.bf16.mxu0 0
        %2190 = vmatpush1.bf16.msra.mxu0 0
        %2191 = vmatprep.subr.bf16.mxu0 0
        %2192 = vmatpush1.bf16.msra.mxu0 %v2175
        %2193 = vmatprep.subr.bf16.mxu0 0
        %2194 = vmatpush2.bf16.msra.mxu0 0
        %2195 = vmatprep.subr.bf16.mxu0 0
        %2196 = vmatpush2.bf16.msra.mxu0 0
        %2197 = vmatprep.subr.bf16.mxu0 0
        %2198 = vmatpush2.bf16.msra.mxu0 0
        %2199 = vmatprep.subr.bf16.mxu0 0
        %2200 = vmatpush2.bf16.msra.mxu0 0
        %2201 = vmatprep.subr.bf16.mxu0 0
        %2202 = vmatpush2.bf16.msra.mxu0 0
        %2203 = vmatprep.subr.bf16.mxu0 0
        %2204 = vmatpush2.bf16.msra.mxu0 0
        %2205 = vmatprep.subr.bf16.mxu0 0
        %2206 = vmatpush2.bf16.msra.mxu0 0
        %2207 = vmatprep.subr.bf16.mxu0 0
        %2208 = vmatpush2.bf16.msra.mxu0 0
        %2209 = vmatprep.mubr.bf16.mxu0 0
        %2210 = vmatmul.mubr.bf16.gmra.mxu0 %v2172
        %v2211 = vpop.f32.mrf.mxu0
        %v2212 = vadd.f32 0.0, %v2211
        %v2213 = vpop.f32.mrf.mxu0
        %v2214 = vpop.f32.mrf.mxu0
        %v2215 = vpop.f32.mrf.mxu0
        %2216 = vdwg.mxu0
        %2217 = vrot.lane.b32.xlu0 %v1773, 96
        %v2218 = vpop.permute.xlu0 %2217
        %2219 = vrot.lane.b32.xlu0 %v1774, 96
        %v2220 = vpop.permute.xlu0 %2219
        %v2222 = vsel %vm829, %v2218, 0
        %v2225 = vsel %vm829, %v2220, 0
        %2227 = vmatprep.subr.bf16.mxu0 0
        %2228 = vmatpush1.bf16.xpose.msra.mxu0 0
        %2229 = vmatprep.subr.bf16.mxu0 0
        %2230 = vmatpush1.bf16.xpose.msra.mxu0 0
        %2231 = vmatprep.subr.bf16.mxu0 0
        %2232 = vmatpush1.bf16.xpose.msra.mxu0 0
        %2233 = vmatprep.subr.bf16.mxu0 0
        %2234 = vmatpush1.bf16.xpose.msra.mxu0 0
        %2235 = vmatprep.subr.bf16.mxu0 0
        %2236 = vmatpush1.bf16.xpose.msra.mxu0 0
        %2237 = vmatprep.subr.bf16.mxu0 0
        %2238 = vmatpush1.bf16.xpose.msra.mxu0 0
        %2239 = vmatprep.subr.bf16.mxu0 0
        %2240 = vmatpush1.bf16.xpose.msra.mxu0 0
        %2241 = vmatprep.subr.bf16.mxu0 0
        %2242 = vmatpush1.bf16.xpose.msra.mxu0 %v2225
        %2243 = vmatprep.subr.bf16.mxu0 0
        %2244 = vmatpush2.bf16.xpose.msra.mxu0 0
        %2245 = vmatprep.subr.bf16.mxu0 0
        %2246 = vmatpush2.bf16.xpose.msra.mxu0 0
        %2247 = vmatprep.subr.bf16.mxu0 0
        %2248 = vmatpush2.bf16.xpose.msra.mxu0 0
        %2249 = vmatprep.subr.bf16.mxu0 0
        %2250 = vmatpush2.bf16.xpose.msra.mxu0 0
        %2251 = vmatprep.subr.bf16.mxu0 0
        %2252 = vmatpush2.bf16.xpose.msra.mxu0 0
        %2253 = vmatprep.subr.bf16.mxu0 0
        %2254 = vmatpush2.bf16.xpose.msra.mxu0 0
        %2255 = vmatprep.subr.bf16.mxu0 0
        %2256 = vmatpush2.bf16.xpose.msra.mxu0 0
        %2257 = vmatprep.subr.bf16.mxu0 0
        %2258 = vmatpush2.bf16.xpose.msra.mxu0 0
        %2259 = vmatprep.mubr.bf16.mxu0 0
        %2260 = vmatmul.mubr.bf16.gmra.mxu0 %v2222
        %v2261 = vpop.f32.mrf.mxu0
        %v2262 = vadd.f32 0.0, %v2261
        %v2263 = vpop.f32.mrf.mxu0
        %v2264 = vpop.f32.mrf.mxu0
        %v2265 = vpop.f32.mrf.mxu0
        %2266 = vdwg.mxu0
        %v2267 = vmul.f32 %v2262, 0.70710677
        %v2268 = vsel %vm829, %v2267, -inf
        %2269 = vmax.xlane.f32.xlu0 %v2268
        %v2270 = vpop.xlane.xlu0 %2269
        %v2271 = vsub.f32 %v2267, %v2270
        %v2272 = vmul.f32 %v2271, 1.442695
        %v2273 = vpow.pop %v2272
        %v2274 = vsel %vm829, %v2273, 0.0
        %2275 = vadd.xlane.f32.xlu0 %v2274
        %v2276 = vpop.xlane.xlu0 %2275
        %v2277 = vrcp.pop %v2276
        %v2278 = vmul.f32 %v2273, %v2277
        %v2279 = vpack.c.bf16 %v2278, %v2278
        %2280 = vrot.lane.b32.xlu0 %v1775, 96
        %v2281 = vpop.permute.xlu0 %2280
        %v2283 = vsel %vm829, %v2279, 0
        %v2286 = vsel %vm893, %v2281, 0
        %2288 = vmatprep.subr.bf16.mxu0 0
        %2289 = vmatpush1.bf16.msra.mxu0 0
        %2290 = vmatprep.subr.bf16.mxu0 0
        %2291 = vmatpush1.bf16.msra.mxu0 0
        %2292 = vmatprep.subr.bf16.mxu0 0
        %2293 = vmatpush1.bf16.msra.mxu0 0
        %2294 = vmatprep.subr.bf16.mxu0 0
        %2295 = vmatpush1.bf16.msra.mxu0 0
        %2296 = vmatprep.subr.bf16.mxu0 0
        %2297 = vmatpush1.bf16.msra.mxu0 0
        %2298 = vmatprep.subr.bf16.mxu0 0
        %2299 = vmatpush1.bf16.msra.mxu0 0
        %2300 = vmatprep.subr.bf16.mxu0 0
        %2301 = vmatpush1.bf16.msra.mxu0 0
        %2302 = vmatprep.subr.bf16.mxu0 0
        %2303 = vmatpush1.bf16.msra.mxu0 %v2286
        %2304 = vmatprep.subr.bf16.mxu0 0
        %2305 = vmatpush2.bf16.msra.mxu0 0
        %2306 = vmatprep.subr.bf16.mxu0 0
        %2307 = vmatpush2.bf16.msra.mxu0 0
        %2308 = vmatprep.subr.bf16.mxu0 0
        %2309 = vmatpush2.bf16.msra.mxu0 0
        %2310 = vmatprep.subr.bf16.mxu0 0
        %2311 = vmatpush2.bf16.msra.mxu0 0
        %2312 = vmatprep.subr.bf16.mxu0 0
        %2313 = vmatpush2.bf16.msra.mxu0 0
        %2314 = vmatprep.subr.bf16.mxu0 0
        %2315 = vmatpush2.bf16.msra.mxu0 0
        %2316 = vmatprep.subr.bf16.mxu0 0
        %2317 = vmatpush2.bf16.msra.mxu0 0
        %2318 = vmatprep.subr.bf16.mxu0 0
        %2319 = vmatpush2.bf16.msra.mxu0 0
        %2320 = vmatprep.mubr.bf16.mxu0 0
        %2321 = vmatmul.mubr.bf16.gmra.mxu0 %v2283
        %v2322 = vpop.f32.mrf.mxu0
        %v2323 = vadd.f32 0.0, %v2322
        %v2324 = vpop.f32.mrf.mxu0
        %v2325 = vpop.f32.mrf.mxu0
        %v2326 = vpop.f32.mrf.mxu0
        %2327 = vdwg.mxu0
        %2329 = vrot.lane.b32.xlu0 %v1990, 8
        %v2330 = vpop.permute.xlu0 %2329
        %2333 = vrot.lane.b32.xlu0 %v2101, 16
        %v2334 = vpop.permute.xlu0 %2333
        %2337 = vrot.lane.b32.xlu0 %v2212, 24
        %v2338 = vpop.permute.xlu0 %2337
        %2341 = vrot.lane.b32.xlu0 %v2323, 32
        %v2342 = vpop.permute.xlu0 %2341
        %v2344 = vsel %vm829, %v1876, %v2330
        %v2345 = vsel %vm1405, %v2344, %v2334
        %v2346 = vsel %vm1407, %v2345, %v2338
        %v2347 = vsel %vm1409, %v2346, %v2342
        %v2348 = vpack.c.bf16 %v2347, %v2347
        %v2349 = vlaneseq
        %v2350 = vshrl.u32 %v2349, 7
        %v2351 = vsub.s32 1, %v2350
        %v2352 = vrot.slane %v554, %v2351
        %v2358 = vunpack.c.l.b16 %v1768
        %v2359 = vunpack.c.l.b16 %v1769
        %v2360 = vunpack.c.l.b16 %v1770
        %v2361 = vunpack.c.l.b16 %v1771
        %v2362 = vunpack.c.l.b16 %v1772
        %v2363 = vpack.c.b16 %v2359, %v2358
        %v2364 = vpack.c.b16 %v2361, %v2360
        %v2365 = vpack.c.b16 %v2362, %v2362
        %v2369 = vsel %vm1431, %v2348, 0
        %v2372 = vsel %vm893, %v2365, 0
        %2374 = vmatprep.subr.bf16.mxu0 0
        %2375 = vmatpush1.bf16.msra.mxu0 0
        %2376 = vmatprep.subr.bf16.mxu0 0
        %2377 = vmatpush1.bf16.msra.mxu0 0
        %2378 = vmatprep.subr.bf16.mxu0 0
        %2379 = vmatpush1.bf16.msra.mxu0 0
        %2380 = vmatprep.subr.bf16.mxu0 0
        %2381 = vmatpush1.bf16.msra.mxu0 0
        %2382 = vmatprep.subr.bf16.mxu0 0
        %2383 = vmatpush1.bf16.msra.mxu0 0
        %2384 = vmatprep.subr.bf16.mxu0 0
        %2385 = vmatpush1.bf16.msra.mxu0 %v2372
        %2386 = vmatprep.subr.bf16.mxu0 0
        %2387 = vmatpush1.bf16.msra.mxu0 %v2364
        %2388 = vmatprep.subr.bf16.mxu0 0
        %2389 = vmatpush1.bf16.msra.mxu0 %v2363
        %2390 = vmatprep.subr.bf16.mxu0 0
        %2391 = vmatpush2.bf16.msra.mxu0 0
        %2392 = vmatprep.subr.bf16.mxu0 0
        %2393 = vmatpush2.bf16.msra.mxu0 0
        %2394 = vmatprep.subr.bf16.mxu0 0
        %2395 = vmatpush2.bf16.msra.mxu0 0
        %2396 = vmatprep.subr.bf16.mxu0 0
        %2397 = vmatpush2.bf16.msra.mxu0 0
        %2398 = vmatprep.subr.bf16.mxu0 0
        %2399 = vmatpush2.bf16.msra.mxu0 0
        %2400 = vmatprep.subr.bf16.mxu0 0
        %2401 = vmatpush2.bf16.msra.mxu0 0
        %2402 = vmatprep.subr.bf16.mxu0 0
        %2403 = vmatpush2.bf16.msra.mxu0 0
        %2404 = vmatprep.subr.bf16.mxu0 0
        %2405 = vmatpush2.bf16.msra.mxu0 0
        %2406 = vmatprep.mubr.bf16.mxu0 0
        %2407 = vmatmul.mubr.bf16.gmra.mxu0 %v2369
        %v2408 = vpop.f32.mrf.mxu0
        %v2409 = vadd.f32 %v2352, %v2408
        %v2410 = vpop.f32.mrf.mxu0
        %v2411 = vpop.f32.mrf.mxu0
        %v2412 = vpop.f32.mrf.mxu0
        %2413 = vdwg.mxu0
        %v2414 = vadd.f32 %v1505, %v2409
        %v2415 = vmul.f32 %v2414, %v1482
        %2416 = vadd.xlane.f32.xlu0 %v2415
        %v2417 = vpop.xlane.xlu0 %2416
        %v2418 = vmul.f32 %v2417, 0.1
        %v2419 = vsub.f32 %v2414, %v2418
        %v2420 = vmul.f32 %v2419, %v1482
        %v2421 = vmul.f32 %v2420, %v2420
        %2422 = vadd.xlane.f32.xlu0 %v2421
        %v2423 = vpop.xlane.xlu0 %2422
        %v2424 = vmul.f32 %v2423, 0.1
        %v2425 = vadd.f32 %v2424, 1e-05
        %v2426 = vrsqrt.pop %v2425
        %v2427 = vmul.f32 %v2420, %v2426
        %v2428 = vlaneseq
        %v2429 = vshrl.u32 %v2428, 7
        %v2430 = vsub.s32 6, %v2429
        %v2431 = vrot.slane %v554, %v2430
        %v2432 = vmul.f32 %v2427, %v2431
        %v2433 = vlaneseq
        %v2434 = vshrl.u32 %v2433, 7
        %v2435 = vsub.s32 7, %v2434
        %v2436 = vrot.slane %v554, %v2435
        %v2437 = vadd.f32 %v2432, %v2436
        %v2438 = vpack.c.bf16 %v2437, %v2437
        %v2439 = vld [vmem:[#allocation16] sm:$0xf]
        %v2440 = vld [vmem:[#allocation16 + $0x4] sm:$0xf]
        %v2441 = vld [vmem:[#allocation16 + $0x8] sm:$0xf]
        %v2442 = vld [vmem:[#allocation16 + $0xc] sm:$0xf]
        %v2443 = vld [vmem:[#allocation16 + $0x10] sm:$0xf]
        %v2444 = vld [vmem:[#allocation16 + $0x14] sm:$0xf]
        %v2445 = vld [vmem:[#allocation16 + $0x18] sm:$0xf]
        %v2446 = vld [vmem:[#allocation16 + $0x1c] sm:$0xf]
        %v2447 = vld [vmem:[#allocation16 + $0x20] sm:$0xf]
        %v2448 = vld [vmem:[#allocation16 + $0x24] sm:$0xf]
        %v2449 = vld [vmem:[#allocation16 + $0x28] sm:$0xf]
        %v2450 = vld [vmem:[#allocation16 + $0x2c] sm:$0xf]
        %v2451 = vld [vmem:[#allocation16 + $0x30] sm:$0xf]
        %v2452 = vld [vmem:[#allocation16 + $0x34] sm:$0xf]
        %v2453 = vld [vmem:[#allocation16 + $0x38] sm:$0xf]
        %v2454 = vld [vmem:[#allocation16 + $0x3c] sm:$0xf]
        %v2455 = vlaneseq
        %v2456 = vshrl.u32 %v2455, 7
        %v2457 = vsub.s32 2, %v2456
        %v2458 = vrot.slane %v554, %v2457
        %v2475 = vunpack.c.l.b16 %v2439
        %v2476 = vunpack.c.l.b16 %v2440
        %v2477 = vunpack.c.l.b16 %v2441
        %v2478 = vunpack.c.l.b16 %v2442
        %v2479 = vunpack.c.l.b16 %v2443
        %v2480 = vunpack.c.l.b16 %v2444
        %v2481 = vunpack.c.l.b16 %v2445
        %v2482 = vunpack.c.l.b16 %v2446
        %v2483 = vunpack.c.l.b16 %v2447
        %v2484 = vunpack.c.l.b16 %v2448
        %v2485 = vunpack.c.l.b16 %v2449
        %v2486 = vunpack.c.l.b16 %v2450
        %v2487 = vunpack.c.l.b16 %v2451
        %v2488 = vunpack.c.l.b16 %v2452
        %v2489 = vunpack.c.l.b16 %v2453
        %v2490 = vunpack.c.l.b16 %v2454
        %v2491 = vpack.c.b16 %v2476, %v2475
        %v2492 = vpack.c.b16 %v2478, %v2477
        %v2493 = vpack.c.b16 %v2480, %v2479
        %v2494 = vpack.c.b16 %v2482, %v2481
        %v2495 = vpack.c.b16 %v2484, %v2483
        %v2496 = vpack.c.b16 %v2486, %v2485
        %v2497 = vpack.c.b16 %v2488, %v2487
        %v2498 = vpack.c.b16 %v2490, %v2489
        %2507 = vmatprep.subr.bf16.mxu0 0
        %2508 = vmatpush1.bf16.msra.mxu0 %v2498
        %2509 = vmatprep.subr.bf16.mxu0 0
        %2510 = vmatpush1.bf16.msra.mxu0 %v2497
        %2511 = vmatprep.subr.bf16.mxu0 0
        %2512 = vmatpush1.bf16.msra.mxu0 %v2496
        %2513 = vmatprep.subr.bf16.mxu0 0
        %2514 = vmatpush1.bf16.msra.mxu0 %v2495
        %2515 = vmatprep.subr.bf16.mxu0 0
        %2516 = vmatpush1.bf16.msra.mxu0 %v2494
        %2517 = vmatprep.subr.bf16.mxu0 0
        %2518 = vmatpush1.bf16.msra.mxu0 %v2493
        %2519 = vmatprep.subr.bf16.mxu0 0
        %2520 = vmatpush1.bf16.msra.mxu0 %v2492
        %2521 = vmatprep.subr.bf16.mxu0 0
        %2522 = vmatpush1.bf16.msra.mxu0 %v2491
        %2523 = vmatprep.subr.bf16.mxu0 0
        %2524 = vmatpush2.bf16.msra.mxu0 0
        %2525 = vmatprep.subr.bf16.mxu0 0
        %2526 = vmatpush2.bf16.msra.mxu0 0
        %2527 = vmatprep.subr.bf16.mxu0 0
        %2528 = vmatpush2.bf16.msra.mxu0 0
        %2529 = vmatprep.subr.bf16.mxu0 0
        %2530 = vmatpush2.bf16.msra.mxu0 0
        %2531 = vmatprep.subr.bf16.mxu0 0
        %2532 = vmatpush2.bf16.msra.mxu0 0
        %2533 = vmatprep.subr.bf16.mxu0 0
        %2534 = vmatpush2.bf16.msra.mxu0 0
        %2535 = vmatprep.subr.bf16.mxu0 0
        %2536 = vmatpush2.bf16.msra.mxu0 0
        %2537 = vmatprep.subr.bf16.mxu0 0
        %2538 = vmatpush2.bf16.msra.mxu0 0
        %2539 = vmatprep.mubr.bf16.mxu0 0
        %2540 = vmatmul.mubr.bf16.gmra.mxu0 %v2438
        %v2541 = vpop.f32.mrf.mxu0
        %v2542 = vadd.f32 %v2458, %v2541
        %v2543 = vpop.f32.mrf.mxu0
        %v2544 = vpop.f32.mrf.mxu0
        %v2545 = vpop.f32.mrf.mxu0
        %2546 = vdwg.mxu0
        %v2547 = vmax.f32 %v2542, 0.0
        %v2548 = vpack.c.bf16 %v2547, %v2547
        %v2549 = vld [vmem:[#allocation17] sm:$0xf]
        %v2550 = vld [vmem:[#allocation17 + $0x4] sm:$0xf]
        %v2551 = vld [vmem:[#allocation17 + $0x8] sm:$0xf]
        %v2552 = vld [vmem:[#allocation17 + $0xc] sm:$0xf]
        %v2553 = vld [vmem:[#allocation17 + $0x10] sm:$0xf]
        %v2554 = vld [vmem:[#allocation17 + $0x14] sm:$0xf]
        %v2555 = vld [vmem:[#allocation17 + $0x18] sm:$0xf]
        %v2556 = vld [vmem:[#allocation17 + $0x1c] sm:$0xf]
        %v2557 = vld [vmem:[#allocation17 + $0x20] sm:$0xf]
        %v2558 = vld [vmem:[#allocation17 + $0x24] sm:$0xf]
        %v2559 = vld [vmem:[#allocation17 + $0x28] sm:$0xf]
        %v2560 = vld [vmem:[#allocation17 + $0x2c] sm:$0xf]
        %v2561 = vld [vmem:[#allocation17 + $0x30] sm:$0xf]
        %v2562 = vld [vmem:[#allocation17 + $0x34] sm:$0xf]
        %v2563 = vld [vmem:[#allocation17 + $0x38] sm:$0xf]
        %v2564 = vld [vmem:[#allocation17 + $0x3c] sm:$0xf]
        %v2565 = vlaneseq
        %v2566 = vshrl.u32 %v2565, 7
        %v2567 = vsub.s32 3, %v2566
        %v2568 = vrot.slane %v554, %v2567
        %v2585 = vunpack.c.l.b16 %v2549
        %v2586 = vunpack.c.l.b16 %v2550
        %v2587 = vunpack.c.l.b16 %v2551
        %v2588 = vunpack.c.l.b16 %v2552
        %v2589 = vunpack.c.l.b16 %v2553
        %v2590 = vunpack.c.l.b16 %v2554
        %v2591 = vunpack.c.l.b16 %v2555
        %v2592 = vunpack.c.l.b16 %v2556
        %v2593 = vunpack.c.l.b16 %v2557
        %v2594 = vunpack.c.l.b16 %v2558
        %v2595 = vunpack.c.l.b16 %v2559
        %v2596 = vunpack.c.l.b16 %v2560
        %v2597 = vunpack.c.l.b16 %v2561
        %v2598 = vunpack.c.l.b16 %v2562
        %v2599 = vunpack.c.l.b16 %v2563
        %v2600 = vunpack.c.l.b16 %v2564
        %v2601 = vpack.c.b16 %v2586, %v2585
        %v2602 = vpack.c.b16 %v2588, %v2587
        %v2603 = vpack.c.b16 %v2590, %v2589
        %v2604 = vpack.c.b16 %v2592, %v2591
        %v2605 = vpack.c.b16 %v2594, %v2593
        %v2606 = vpack.c.b16 %v2596, %v2595
        %v2607 = vpack.c.b16 %v2598, %v2597
        %v2608 = vpack.c.b16 %v2600, %v2599
        %2617 = vmatprep.subr.bf16.mxu0 0
        %2618 = vmatpush1.bf16.msra.mxu0 %v2608
        %2619 = vmatprep.subr.bf16.mxu0 0
        %2620 = vmatpush1.bf16.msra.mxu0 %v2607
        %2621 = vmatprep.subr.bf16.mxu0 0
        %2622 = vmatpush1.bf16.msra.mxu0 %v2606
        %2623 = vmatprep.subr.bf16.mxu0 0
        %2624 = vmatpush1.bf16.msra.mxu0 %v2605
        %2625 = vmatprep.subr.bf16.mxu0 0
        %2626 = vmatpush1.bf16.msra.mxu0 %v2604
        %2627 = vmatprep.subr.bf16.mxu0 0
        %2628 = vmatpush1.bf16.msra.mxu0 %v2603
        %2629 = vmatprep.subr.bf16.mxu0 0
        %2630 = vmatpush1.bf16.msra.mxu0 %v2602
        %2631 = vmatprep.subr.bf16.mxu0 0
        %2632 = vmatpush1.bf16.msra.mxu0 %v2601
        %2633 = vmatprep.subr.bf16.mxu0 0
        %2634 = vmatpush2.bf16.msra.mxu0 0
        %2635 = vmatprep.subr.bf16.mxu0 0
        %2636 = vmatpush2.bf16.msra.mxu0 0
        %2637 = vmatprep.subr.bf16.mxu0 0
        %2638 = vmatpush2.bf16.msra.mxu0 0
        %2639 = vmatprep.subr.bf16.mxu0 0
        %2640 = vmatpush2.bf16.msra.mxu0 0
        %2641 = vmatprep.subr.bf16.mxu0 0
        %2642 = vmatpush2.bf16.msra.mxu0 0
        %2643 = vmatprep.subr.bf16.mxu0 0
        %2644 = vmatpush2.bf16.msra.mxu0 0
        %2645 = vmatprep.subr.bf16.mxu0 0
        %2646 = vmatpush2.bf16.msra.mxu0 0
        %2647 = vmatprep.subr.bf16.mxu0 0
        %2648 = vmatpush2.bf16.msra.mxu0 0
        %2649 = vmatprep.mubr.bf16.mxu0 0
        %2650 = vmatmul.mubr.bf16.gmra.mxu0 %v2548
        %v2651 = vpop.f32.mrf.mxu0
        %v2652 = vadd.f32 %v2568, %v2651
        %v2653 = vpop.f32.mrf.mxu0
        %v2654 = vpop.f32.mrf.mxu0
        %v2655 = vpop.f32.mrf.mxu0
        %2656 = vdwg.mxu0
        %v2657 = vadd.f32 %v2437, %v2652
        %v2658 = vmul.f32 %v2657, %v1482
        %2659 = vadd.xlane.f32.xlu0 %v2658
        %v2660 = vpop.xlane.xlu0 %2659
        %v2661 = vmul.f32 %v2660, 0.1
        %v2662 = vsub.f32 %v2657, %v2661
        %v2663 = vmul.f32 %v2662, %v1482
        %v2664 = vmul.f32 %v2663, %v2663
        %2665 = vadd.xlane.f32.xlu0 %v2664
        %v2666 = vpop.xlane.xlu0 %2665
        %v2667 = vmul.f32 %v2666, 0.1
        %v2668 = vadd.f32 %v2667, 1e-05
        %v2669 = vrsqrt.pop %v2668
        %v2670 = vmul.f32 %v2663, %v2669
        %v2671 = vlaneseq
        %v2672 = vshrl.u32 %v2671, 7
        %v2673 = vsub.s32 0, %v2672
        %v2674 = vrot.slane %v555, %v2673
        %v2675 = vmul.f32 %v2670, %v2674
        %v2676 = vlaneseq
        %v2677 = vshrl.u32 %v2676, 7
        %v2678 = vsub.s32 1, %v2677
        %v2679 = vrot.slane %v555, %v2678
        %v2680 = vadd.f32 %v2675, %v2679
        %2681 = vst [vmem:[%s550] sm:$0xff] %v2680
        %s2682 = sand.u32 %s284, 1
        %s2683 = scalar_lea.sflag [#allocation4], %s2682
        %s2684 = sand.u32 %s284, 1
        %s2685 = smul.addr %s2684, 8
        %s2686 = scalar_lea.vmem [#allocation19], %s2685
        // Predicated region
        $region105: #{tpu_custom_call.1} parent=63 // pred_check
          %p2687 = pneg %p294
        $region106: #{tpu_custom_call.1} parent=63 // pred_check_branch
          %2689 = sbr.rel (%p2687) target = $region108
        $region107: #{tpu_custom_call.1} parent=63 // pred_region
          %s2691 = ssub.s32 128, 128
          %2692 = vsyncadd %s2683, %s2691
          %s2693 = smul.addr %s35, 128
          %s2694 = scalar_lea.hbm %s11, %s2693
          %s2696 = sshll.u32 %s2686, 4
          %s2697 = int_to_ptr.vmem [resolvable:$true] %s2696
          %2699 = dma.vmem_to_hbm [thread:$0]  %s2697, 128, %s2694, %s2683
        $region108: #{tpu_custom_call.1} parent=63 // pred_fallthru
          _
      $region64: #{tpu_custom_call.1} parent=5 // pred_fallthru
        _
      %p2700 = scmp.le.s32.totalorder 2, %s30
      // Predicated region
      $region109: #{tpu_custom_call.1} parent=5 // pred_check
        %p2701 = pneg %p2700
      $region110: #{tpu_custom_call.1} parent=5 // pred_check_branch
        %2703 = sbr.rel (%p2701) target = $region112
      $region111: #{tpu_custom_call.1} parent=5 // pred_region
        %s2704 = ssub.s32 %s30, 2
        // Predicated region
        $region113: #{tpu_custom_call.1} parent=111 // pred_check
          %p2705 = pneg %p300
        $region114: #{tpu_custom_call.1} parent=111 // pred_check_branch
          %2707 = sbr.rel (%p2705) target = $region116
        $region115: #{tpu_custom_call.1} parent=111 // pred_region
          %s2708 = sand.u32 %s285, 1
          %s2709 = scalar_lea.sflag [#allocation4], %s2708
          %s2710 = sand.u32 %s285, 1
          %s2711 = smul.addr %s2710, 8
          %s2712 = scalar_lea.vmem [#allocation19], %s2711
          %2713 = dma.done %s2709, 128
        $region116: #{tpu_custom_call.1} parent=111 // pred_fallthru
          _
      $region112: #{tpu_custom_call.1} parent=5 // pred_fallthru
        _
    $region6: #{tpu_custom_call.1} parent=1 // loop_footer
      %s34 = sadd.s32 1, %s30
    $region7: #{tpu_custom_call.1} parent=1 // loop_footer_branch
      %29 = sbr.rel target = $region3
    $region8: #{tpu_custom_call.1} parent=1 // loop_exit
      _
    %2714 = vsyncpa [#allocation3], 1
    %s2715 = scalar_lea.sflag [#allocation3], 1
    %2716 = vsyncpa %s2715, 1
    %2717 = vsyncpa [#allocation6], 1
    %s2718 = scalar_lea.sflag [#allocation6], 1
    %2719 = vsyncpa %s2718, 1
    %2720 = vsyncpa [#allocation9], 1
    %2721 = vsyncpa [#allocation12], 1
    %2722 = vsyncpa [#allocation15], 1
    %2723 = vsyncpa [#allocation18], 1
    %2724 = vsyncpa [#allocation4], 1
    %s2725 = scalar_lea.sflag [#allocation4], 1
    %2726 = vsyncpa %s2725, 1

</llo_original>
